<compile_context>
chip_gen: v7x
topology: tpu7x:2x2x1
jax: 0.10.0
libtpu: 0.0.40
codegen_flags: <defaults>
</compile_context>

<pallas_src>
from functools import partial

import jax
import jax.numpy as jnp
from jax.experimental import pallas as pl
from jax.experimental.pallas import tpu as pltpu


def mlp_logsoftmax_kernel(x_ref, w1_ref, b1_ref, w2_ref, b2_ref,
                          w3_ref, b3_ref, w4_ref, b4_ref, o_ref):
    # ---- Layer 1: Linear(2, F) on the VPU (K=2 -> two broadcast FMAs). ----
    x0 = x_ref[:, 0:1]                                   # [TB, 1]
    x1 = x_ref[:, 1:2]                                   # [TB, 1]
    h = x0 * w1_ref[0:1, :] + x1 * w1_ref[1:2, :] + b1_ref[...]
    h = jnp.maximum(h, 0.0)                              # [TB, FPAD]

    # ---- Layers 2, 3: dense 128-wide MXU matmuls (hidden padded to lanes). ----
    h = jnp.dot(h, w2_ref[...], preferred_element_type=jnp.float32) + b2_ref[...]
    h = jnp.maximum(h, 0.0)
    h = jnp.dot(h, w3_ref[...], preferred_element_type=jnp.float32) + b3_ref[...]
    h = jnp.maximum(h, 0.0)

    # ---- Output head: [TB, FPAD] @ [FPAD, CPAD]; only columns 0,1 are real. ----
    logits = jnp.dot(h, w4_ref[...], preferred_element_type=jnp.float32) + b4_ref[...]

    # ---- 2-class log_softmax, elementwise (no cross-lane reduce). ----
    l0 = logits[:, 0:1]
    l1 = logits[:, 1:2]
    m = jnp.maximum(l0, l1)
    lse = m + jnp.log(jnp.exp(l0 - m) + jnp.exp(l1 - m))  # logaddexp(l0, l1)

    # Store only the two real class columns (tiny, masked store; avoids the
    # 64x-amplified padded writeback + wrapper re-slice of the old layout).
    o_ref[...] = logits[:, 0:2] - lse


def _pad2(a, rows, cols):
    return jnp.zeros((rows, cols), a.dtype).at[:a.shape[0], :a.shape[1]].set(a)


def prepare_padded_params(params):
    """Pad parameters ONCE (hoisted out of the per-call path).

    Hidden width is padded to 128 lanes; head output is padded to 128 lanes
    purely so the last matmul is a clean MXU tile. Padding is zeros so the
    math is unchanged.
    """
    F = params["w1"].shape[1]
    FPAD = max(128, ((F + 127) // 128) * 128)
    CPAD = 128
    padded = {
        "w1": _pad2(params["w1"], 2, FPAD),
        "b1": _pad2(params["b1"], 1, FPAD),
        "w2": _pad2(params["w2"], FPAD, FPAD),
        "b2": _pad2(params["b2"], 1, FPAD),
        "w3": _pad2(params["w3"], FPAD, FPAD),
        "b3": _pad2(params["b3"], 1, FPAD),
        "w4": _pad2(params["w4"], FPAD, CPAD),
        "b4": _pad2(params["b4"], 1, CPAD),
    }
    return padded


@partial(jax.jit, static_argnames=("num_batch_tiles",))
def mlp_forward(x, padded, *, num_batch_tiles=1):
    """x: [B, 2] float32. padded: output of prepare_padded_params.

    num_batch_tiles=1 (default) -> single grid step (best on v5e/v6e, kernel is
    step-overhead bound). Use num_batch_tiles=2 on v7x so the "parallel" axis
    shards one tile per TensorCore.
    """
    B = x.shape[0]
    FPAD = padded["w2"].shape[0]
    CPAD = padded["w4"].shape[1]

    nt = num_batch_tiles
    tile = -(-B // nt)                     # ceil(B / nt)
    tile = ((tile + 7) // 8) * 8           # sublane-aligned batch tile
    Bp = tile * nt
    if Bp != B:
        x = jnp.zeros((Bp, 2), x.dtype).at[:B].set(x)

    def resident(shape):
        # Whole-array block, same block index for every grid step -> stays in
        # VMEM across all batch tiles (single DMA).
        return pl.BlockSpec(shape, lambda i: (0, 0))

    out = pl.pallas_call(
        mlp_logsoftmax_kernel,
        out_shape=jax.ShapeDtypeStruct((Bp, 2), jnp.float32),
        grid=(nt,),
        in_specs=[
            pl.BlockSpec((tile, 2), lambda i: (i, 0)),     # x tile
            resident((2, FPAD)), resident((1, FPAD)),      # w1, b1
            resident((FPAD, FPAD)), resident((1, FPAD)),   # w2, b2
            resident((FPAD, FPAD)), resident((1, FPAD)),   # w3, b3
            resident((FPAD, CPAD)), resident((1, CPAD)),   # w4, b4
        ],
        out_specs=pl.BlockSpec((tile, 2), lambda i: (i, 0)),
        compiler_params=pltpu.CompilerParams(
            dimension_semantics=("parallel",)),
    )(x, padded["w1"], padded["b1"], padded["w2"], padded["b2"],
      padded["w3"], padded["b3"], padded["w4"], padded["b4"])

    return out[:B]


def init_params(key, features):
    """Deterministic init mimicking PyTorch Linear default U(-1/sqrt(fan_in), +)."""
    dims = [(2, features), (features, features), (features, features), (features, 2)]
    params = {}
    for i, (fan_in, fan_out) in enumerate(dims, start=1):
        key, kw, kb = jax.random.split(key, 3)
        bound = 1.0 / jnp.sqrt(jnp.float32(fan_in))
        # stored as [in, out] (transposed w.r.t. PyTorch's [out, in])
        params[f"w{i}"] = jax.random.uniform(
            kw, (fan_in, fan_out), jnp.float32, -bound, bound)
        params[f"b{i}"] = jax.random.uniform(
            kb, (1, fan_out), jnp.float32, -bound, bound)
    return params


def reference_forward(x, p):
    h = jnp.maximum(x @ p["w1"] + p["b1"], 0.0)
    h = jnp.maximum(h @ p["w2"] + p["b2"], 0.0)
    h = jnp.maximum(h @ p["w3"] + p["b3"], 0.0)
    logits = h @ p["w4"] + p["b4"]
    return jax.nn.log_softmax(logits, axis=1)


if __name__ == "__main__":
    key = jax.random.PRNGKey(0)
    k_params, k_x = jax.random.split(key)

    features = 32      # matches the typical two-moons MLP width
    batch = 512        # large enough to be meaningful; single grid step

    params = init_params(k_params, features)
    # Pad weights once, up front (not in the per-call path).
    padded = jax.tree_util.tree_map(jnp.asarray, prepare_padded_params(params))

    # Two-moons style 2-D inputs over roughly the plotting domain.
    x = jax.random.uniform(k_x, (batch, 2), jnp.float32, -3.0, 3.0)

    # num_batch_tiles=1: one grid step (v5e/v6e). On v7x prefer 2 for megacore.
    out = jax.block_until_ready(mlp_forward(x, padded, num_batch_tiles=1))

    ref = reference_forward(x, params)
    assert out.shape == (batch, 2)
    assert jnp.allclose(out, ref, atol=1e-5, rtol=1e-5), "mismatch vs JAX reference"

    print("KERNEL_OK")
</pallas_src>

<mosaic_0001>
module attributes {stable_mosaic.version = 11 : i64} {
  func.func @mlp_logsoftmax_kernel(%arg0: i32, %arg1: memref<512x2xf32, #tpu.memory_space<vmem>>, %arg2: memref<2x128xf32, #tpu.memory_space<vmem>>, %arg3: memref<1x128xf32, #tpu.memory_space<vmem>>, %arg4: memref<128x128xf32, #tpu.memory_space<vmem>>, %arg5: memref<1x128xf32, #tpu.memory_space<vmem>>, %arg6: memref<128x128xf32, #tpu.memory_space<vmem>>, %arg7: memref<1x128xf32, #tpu.memory_space<vmem>>, %arg8: memref<128x128xf32, #tpu.memory_space<vmem>>, %arg9: memref<1x128xf32, #tpu.memory_space<vmem>>, %arg10: memref<512x2xf32, #tpu.memory_space<vmem>>) attributes {dimension_semantics = [#tpu.dimension_semantics<parallel>], iteration_bounds = array<i64: 1>, scalar_prefetch = 0 : i64, scratch_operands = 0 : i64, tpu.core_type = #tpu.core_type<tc>, window_params = [{transform_indices = @transform_0, window_bounds = array<i64: 512, 2>}, {pipeline_mode = #tpu.pipeline_mode<synchronous>, transform_indices = @transform_1, window_bounds = array<i64: 2, 128>}, {pipeline_mode = #tpu.pipeline_mode<synchronous>, transform_indices = @transform_2, window_bounds = array<i64: 1, 128>}, {pipeline_mode = #tpu.pipeline_mode<synchronous>, transform_indices = @transform_3, window_bounds = array<i64: 128, 128>}, {pipeline_mode = #tpu.pipeline_mode<synchronous>, transform_indices = @transform_4, window_bounds = array<i64: 1, 128>}, {pipeline_mode = #tpu.pipeline_mode<synchronous>, transform_indices = @transform_5, window_bounds = array<i64: 128, 128>}, {pipeline_mode = #tpu.pipeline_mode<synchronous>, transform_indices = @transform_6, window_bounds = array<i64: 1, 128>}, {pipeline_mode = #tpu.pipeline_mode<synchronous>, transform_indices = @transform_7, window_bounds = array<i64: 128, 128>}, {pipeline_mode = #tpu.pipeline_mode<synchronous>, transform_indices = @transform_8, window_bounds = array<i64: 1, 128>}, {transform_indices = @transform_9, window_bounds = array<i64: 512, 2>}]} {
    %c0 = arith.constant 0 : index
    %c0_0 = arith.constant 0 : index
    %0 = vector.load %arg1[%c0, %c0_0] : memref<512x2xf32, #tpu.memory_space<vmem>>, vector<512x1xf32>
    %c0_1 = arith.constant 0 : index
    %c1 = arith.constant 1 : index
    %1 = vector.load %arg1[%c0_1, %c1] : memref<512x2xf32, #tpu.memory_space<vmem>>, vector<512x1xf32>
    %c0_2 = arith.constant 0 : index
    %c0_3 = arith.constant 0 : index
    %2 = vector.load %arg2[%c0_2, %c0_3] : memref<2x128xf32, #tpu.memory_space<vmem>>, vector<1x128xf32>
    %3 = vector.broadcast %0 : vector<512x1xf32> to vector<512x128xf32>
    %4 = vector.broadcast %2 : vector<1x128xf32> to vector<512x128xf32>
    %5 = arith.mulf %3, %4 : vector<512x128xf32>
    %c1_4 = arith.constant 1 : index
    %c0_5 = arith.constant 0 : index
    %6 = vector.load %arg2[%c1_4, %c0_5] : memref<2x128xf32, #tpu.memory_space<vmem>>, vector<1x128xf32>
    %7 = vector.broadcast %1 : vector<512x1xf32> to vector<512x128xf32>
    %8 = vector.broadcast %6 : vector<1x128xf32> to vector<512x128xf32>
    %9 = arith.mulf %7, %8 : vector<512x128xf32>
    %10 = arith.addf %5, %9 : vector<512x128xf32>
    %c0_6 = arith.constant 0 : index
    %c0_7 = arith.constant 0 : index
    %11 = vector.load %arg3[%c0_6, %c0_7] : memref<1x128xf32, #tpu.memory_space<vmem>>, vector<1x128xf32>
    %12 = vector.broadcast %11 : vector<1x128xf32> to vector<512x128xf32>
    %13 = arith.addf %10, %12 : vector<512x128xf32>
    %cst = arith.constant 0.000000e+00 : f32
    %14 = vector.broadcast %cst : f32 to vector<512x128xf32>
    %15 = arith.maximumf %13, %14 : vector<512x128xf32>
    %c0_8 = arith.constant 0 : index
    %c0_9 = arith.constant 0 : index
    %16 = vector.load %arg4[%c0_8, %c0_9] : memref<128x128xf32, #tpu.memory_space<vmem>>, vector<128x128xf32>
    %cst_10 = arith.constant dense<0.000000e+00> : vector<512x128xf32>
    %17 = tpu.matmul %15, %16, %cst_10 {dimension_numbers = #tpu.dot_dimension_numbers<[1], [0], [0], [1], [0, 0, 1, 1], [], []>} : vector<512x128xf32>, vector<128x128xf32>, vector<512x128xf32> -> vector<512x128xf32>
    %c0_11 = arith.constant 0 : index
    %c0_12 = arith.constant 0 : index
    %18 = vector.load %arg5[%c0_11, %c0_12] : memref<1x128xf32, #tpu.memory_space<vmem>>, vector<1x128xf32>
    %19 = vector.broadcast %18 : vector<1x128xf32> to vector<512x128xf32>
    %20 = arith.addf %17, %19 : vector<512x128xf32>
    %cst_13 = arith.constant 0.000000e+00 : f32
    %21 = vector.broadcast %cst_13 : f32 to vector<512x128xf32>
    %22 = arith.maximumf %20, %21 : vector<512x128xf32>
    %c0_14 = arith.constant 0 : index
    %c0_15 = arith.constant 0 : index
    %23 = vector.load %arg6[%c0_14, %c0_15] : memref<128x128xf32, #tpu.memory_space<vmem>>, vector<128x128xf32>
    %cst_16 = arith.constant dense<0.000000e+00> : vector<512x128xf32>
    %24 = tpu.matmul %22, %23, %cst_16 {dimension_numbers = #tpu.dot_dimension_numbers<[1], [0], [0], [1], [0, 0, 1, 1], [], []>} : vector<512x128xf32>, vector<128x128xf32>, vector<512x128xf32> -> vector<512x128xf32>
    %c0_17 = arith.constant 0 : index
    %c0_18 = arith.constant 0 : index
    %25 = vector.load %arg7[%c0_17, %c0_18] : memref<1x128xf32, #tpu.memory_space<vmem>>, vector<1x128xf32>
    %26 = vector.broadcast %25 : vector<1x128xf32> to vector<512x128xf32>
    %27 = arith.addf %24, %26 : vector<512x128xf32>
    %cst_19 = arith.constant 0.000000e+00 : f32
    %28 = vector.broadcast %cst_19 : f32 to vector<512x128xf32>
    %29 = arith.maximumf %27, %28 : vector<512x128xf32>
    %c0_20 = arith.constant 0 : index
    %c0_21 = arith.constant 0 : index
    %30 = vector.load %arg8[%c0_20, %c0_21] : memref<128x128xf32, #tpu.memory_space<vmem>>, vector<128x128xf32>
    %cst_22 = arith.constant dense<0.000000e+00> : vector<512x128xf32>
    %31 = tpu.matmul %29, %30, %cst_22 {dimension_numbers = #tpu.dot_dimension_numbers<[1], [0], [0], [1], [0, 0, 1, 1], [], []>} : vector<512x128xf32>, vector<128x128xf32>, vector<512x128xf32> -> vector<512x128xf32>
    %c0_23 = arith.constant 0 : index
    %c0_24 = arith.constant 0 : index
    %32 = vector.load %arg9[%c0_23, %c0_24] : memref<1x128xf32, #tpu.memory_space<vmem>>, vector<1x128xf32>
    %33 = vector.broadcast %32 : vector<1x128xf32> to vector<512x128xf32>
    %34 = arith.addf %31, %33 : vector<512x128xf32>
    %35 = vector.extract_strided_slice %34 {offsets = [0, 0], sizes = [512, 1], strides = [1, 1]} : vector<512x128xf32> to vector<512x1xf32>
    %36 = vector.extract_strided_slice %34 {offsets = [0, 1], sizes = [512, 1], strides = [1, 1]} : vector<512x128xf32> to vector<512x1xf32>
    %37 = arith.maximumf %35, %36 : vector<512x1xf32>
    %38 = arith.subf %35, %37 : vector<512x1xf32>
    %39 = math.exp %38 : vector<512x1xf32>
    %40 = arith.subf %36, %37 : vector<512x1xf32>
    %41 = math.exp %40 : vector<512x1xf32>
    %42 = arith.addf %39, %41 : vector<512x1xf32>
    %43 = math.log %42 : vector<512x1xf32>
    %44 = arith.addf %37, %43 : vector<512x1xf32>
    %45 = vector.extract_strided_slice %34 {offsets = [0, 0], sizes = [512, 2], strides = [1, 1]} : vector<512x128xf32> to vector<512x2xf32>
    %46 = vector.broadcast %44 : vector<512x1xf32> to vector<512x2xf32>
    %47 = arith.subf %45, %46 : vector<512x2xf32>
    %c0_25 = arith.constant 0 : index
    %c0_26 = arith.constant 0 : index
    %48 = vector.load %arg10[%c0_25, %c0_26] : memref<512x2xf32, #tpu.memory_space<vmem>>, vector<512x2xf32>
    tpu.vector_store %arg10[%c0_25, %c0_26], %47 {strides = array<i32>} : memref<512x2xf32, #tpu.memory_space<vmem>>, vector<512x2xf32>,
    return
  }
  func.func @transform_0(%arg0: i32) -> (i32, i32) {
    %c0_i32 = arith.constant 0 : i32
    %c0_i32_0 = arith.constant 0 : i32
    return %arg0, %c0_i32 : i32, i32
  }
  func.func @transform_1(%arg0: i32) -> (i32, i32) {
    %c0_i32 = arith.constant 0 : i32
    %c0_i32_0 = arith.constant 0 : i32
    %c0_i32_1 = arith.constant 0 : i32
    return %c0_i32, %c0_i32_0 : i32, i32
  }
  func.func @transform_2(%arg0: i32) -> (i32, i32) {
    %c0_i32 = arith.constant 0 : i32
    %c0_i32_0 = arith.constant 0 : i32
    %c0_i32_1 = arith.constant 0 : i32
    return %c0_i32, %c0_i32_0 : i32, i32
  }
  func.func @transform_3(%arg0: i32) -> (i32, i32) {
    %c0_i32 = arith.constant 0 : i32
    %c0_i32_0 = arith.constant 0 : i32
    %c0_i32_1 = arith.constant 0 : i32
    return %c0_i32, %c0_i32_0 : i32, i32
  }
  func.func @transform_4(%arg0: i32) -> (i32, i32) {
    %c0_i32 = arith.constant 0 : i32
    %c0_i32_0 = arith.constant 0 : i32
    %c0_i32_1 = arith.constant 0 : i32
    return %c0_i32, %c0_i32_0 : i32, i32
  }
  func.func @transform_5(%arg0: i32) -> (i32, i32) {
    %c0_i32 = arith.constant 0 : i32
    %c0_i32_0 = arith.constant 0 : i32
    %c0_i32_1 = arith.constant 0 : i32
    return %c0_i32, %c0_i32_0 : i32, i32
  }
  func.func @transform_6(%arg0: i32) -> (i32, i32) {
    %c0_i32 = arith.constant 0 : i32
    %c0_i32_0 = arith.constant 0 : i32
    %c0_i32_1 = arith.constant 0 : i32
    return %c0_i32, %c0_i32_0 : i32, i32
  }
  func.func @transform_7(%arg0: i32) -> (i32, i32) {
    %c0_i32 = arith.constant 0 : i32
    %c0_i32_0 = arith.constant 0 : i32
    %c0_i32_1 = arith.constant 0 : i32
    return %c0_i32, %c0_i32_0 : i32, i32
  }
  func.func @transform_8(%arg0: i32) -> (i32, i32) {
    %c0_i32 = arith.constant 0 : i32
    %c0_i32_0 = arith.constant 0 : i32
    %c0_i32_1 = arith.constant 0 : i32
    return %c0_i32, %c0_i32_0 : i32, i32
  }
  func.func @transform_9(%arg0: i32) -> (i32, i32) {
    %c0_i32 = arith.constant 0 : i32
    %c0_i32_0 = arith.constant 0 : i32
    return %arg0, %c0_i32 : i32, i32
  }
}

</mosaic_0001>

<llo_original>
// kernel: mlp_forward.1
$region0: #{mlp_forward.1}
  #allocation0 [shape = 'u32[]', space=smem, size = 0x4, offset = 0x4, fixed_abs, tag = 'smem constant byte address 0x4 - core index']
  #allocation1 [shape = 'u32[144,128]{1,0:T(1,128)}', space=vmem, size = 0x12000, scoped, tag = 'internal scratch']
  %s0 = inlined_call_operand.vmem [shape: f32[512,2], index: 0, kind: input, shape index: {}]
  %s1 = inlined_call_operand.vmem [shape: f32[2,128], index: 1, kind: input, shape index: {}]
  %s2 = inlined_call_operand.vmem [shape: f32[1,128], index: 2, kind: input, shape index: {}]
  %s3 = inlined_call_operand.vmem [shape: f32[128,128], index: 3, kind: input, shape index: {}]
  %s4 = inlined_call_operand.vmem [shape: f32[1,128], index: 4, kind: input, shape index: {}]
  %s5 = inlined_call_operand.vmem [shape: f32[128,128], index: 5, kind: input, shape index: {}]
  %s6 = inlined_call_operand.vmem [shape: f32[1,128], index: 6, kind: input, shape index: {}]
  %s7 = inlined_call_operand.vmem [shape: f32[128,128], index: 7, kind: input, shape index: {}]
  %s8 = inlined_call_operand.vmem [shape: f32[1,128], index: 8, kind: input, shape index: {}]
  %s9 = inlined_call_operand.vmem [shape: f32[512,2], index: 9, kind: output, shape index: {}]
  %s10 = sld [smem:[#allocation0]]
  $region46: #{mlp_forward.1} parent=0
    _
  %s12 = ssub.s32 1, %s10
  %s13 = scalar_select 0, %s12, %s10
  // Predicated region
  $region2: #{mlp_forward.1} parent=0 // pred_check
    _
  $region3: #{mlp_forward.1} parent=0 // pred_check_branch
    %15 = sbr.rel (0) target = $region5
  $region4: #{mlp_forward.1} parent=0 // pred_region
    _
  $region5: #{mlp_forward.1} parent=0 // pred_fallthru
    _
  // Predicated region
  $region6: #{mlp_forward.1} parent=0 // pred_check
    _
  $region7: #{mlp_forward.1} parent=0 // pred_check_branch
    %17 = sbr.rel (0) target = $region9
  $region8: #{mlp_forward.1} parent=0 // pred_region
    _
  $region9: #{mlp_forward.1} parent=0 // pred_fallthru
    _
  // Predicated region
  $region10: #{mlp_forward.1} parent=0 // pred_check
    _
  $region11: #{mlp_forward.1} parent=0 // pred_check_branch
    %19 = sbr.rel (0) target = $region13
  $region12: #{mlp_forward.1} parent=0 // pred_region
    _
  $region13: #{mlp_forward.1} parent=0 // pred_fallthru
    _
  // Predicated region
  $region14: #{mlp_forward.1} parent=0 // pred_check
    _
  $region15: #{mlp_forward.1} parent=0 // pred_check_branch
    %21 = sbr.rel (0) target = $region17
  $region16: #{mlp_forward.1} parent=0 // pred_region
    _
  $region17: #{mlp_forward.1} parent=0 // pred_fallthru
    _
  // Predicated region
  $region18: #{mlp_forward.1} parent=0 // pred_check
    _
  $region19: #{mlp_forward.1} parent=0 // pred_check_branch
    %23 = sbr.rel (0) target = $region21
  $region20: #{mlp_forward.1} parent=0 // pred_region
    _
  $region21: #{mlp_forward.1} parent=0 // pred_fallthru
    _
  // Predicated region
  $region22: #{mlp_forward.1} parent=0 // pred_check
    _
  $region23: #{mlp_forward.1} parent=0 // pred_check_branch
    %25 = sbr.rel (0) target = $region25
  $region24: #{mlp_forward.1} parent=0 // pred_region
    _
  $region25: #{mlp_forward.1} parent=0 // pred_fallthru
    _
  // Predicated region
  $region26: #{mlp_forward.1} parent=0 // pred_check
    _
  $region27: #{mlp_forward.1} parent=0 // pred_check_branch
    %27 = sbr.rel (0) target = $region29
  $region28: #{mlp_forward.1} parent=0 // pred_region
    _
  $region29: #{mlp_forward.1} parent=0 // pred_fallthru
    _
  // Predicated region
  $region30: #{mlp_forward.1} parent=0 // pred_check
    _
  $region31: #{mlp_forward.1} parent=0 // pred_check_branch
    %29 = sbr.rel (0) target = $region33
  $region32: #{mlp_forward.1} parent=0 // pred_region
    _
  $region33: #{mlp_forward.1} parent=0 // pred_fallthru
    _
  // Predicated region
  $region34: #{mlp_forward.1} parent=0 // pred_check
    _
  $region35: #{mlp_forward.1} parent=0 // pred_check_branch
    %31 = sbr.rel (0) target = $region37
  $region36: #{mlp_forward.1} parent=0 // pred_region
    _
  $region37: #{mlp_forward.1} parent=0 // pred_fallthru
    _
  %v32 = vld [vmem:[%s0] sm:$0xff]
  %v33 = vld [vmem:[%s0 + $0x8] sm:$0xff]
  %v34 = vld [vmem:[%s0 + $0x10] sm:$0xff]
  %v35 = vld [vmem:[%s0 + $0x18] sm:$0xff]
  %v36 = vld [vmem:[%s0 + $0x20] sm:$0xff]
  %v37 = vld [vmem:[%s0 + $0x28] sm:$0xff]
  %v38 = vld [vmem:[%s0 + $0x30] sm:$0xff]
  %v39 = vld [vmem:[%s0 + $0x38] sm:$0xff]
  %v40 = vld [vmem:[%s0 + $0x40] sm:$0xff]
  %v41 = vld [vmem:[%s0 + $0x48] sm:$0xff]
  %v42 = vld [vmem:[%s0 + $0x50] sm:$0xff]
  %v43 = vld [vmem:[%s0 + $0x58] sm:$0xff]
  %v44 = vld [vmem:[%s0 + $0x60] sm:$0xff]
  %v45 = vld [vmem:[%s0 + $0x68] sm:$0xff]
  %v46 = vld [vmem:[%s0 + $0x70] sm:$0xff]
  %v47 = vld [vmem:[%s0 + $0x78] sm:$0xff]
  %v48 = vld [vmem:[%s0 + $0x80] sm:$0xff]
  %v49 = vld [vmem:[%s0 + $0x88] sm:$0xff]
  %v50 = vld [vmem:[%s0 + $0x90] sm:$0xff]
  %v51 = vld [vmem:[%s0 + $0x98] sm:$0xff]
  %v52 = vld [vmem:[%s0 + $0xa0] sm:$0xff]
  %v53 = vld [vmem:[%s0 + $0xa8] sm:$0xff]
  %v54 = vld [vmem:[%s0 + $0xb0] sm:$0xff]
  %v55 = vld [vmem:[%s0 + $0xb8] sm:$0xff]
  %v56 = vld [vmem:[%s0 + $0xc0] sm:$0xff]
  %v57 = vld [vmem:[%s0 + $0xc8] sm:$0xff]
  %v58 = vld [vmem:[%s0 + $0xd0] sm:$0xff]
  %v59 = vld [vmem:[%s0 + $0xd8] sm:$0xff]
  %v60 = vld [vmem:[%s0 + $0xe0] sm:$0xff]
  %v61 = vld [vmem:[%s0 + $0xe8] sm:$0xff]
  %v62 = vld [vmem:[%s0 + $0xf0] sm:$0xff]
  %v63 = vld [vmem:[%s0 + $0xf8] sm:$0xff]
  %v64 = vld [vmem:[%s0 + $0x100] sm:$0xff]
  %v65 = vld [vmem:[%s0 + $0x108] sm:$0xff]
  %v66 = vld [vmem:[%s0 + $0x110] sm:$0xff]
  %v67 = vld [vmem:[%s0 + $0x118] sm:$0xff]
  %v68 = vld [vmem:[%s0 + $0x120] sm:$0xff]
  %v69 = vld [vmem:[%s0 + $0x128] sm:$0xff]
  %v70 = vld [vmem:[%s0 + $0x130] sm:$0xff]
  %v71 = vld [vmem:[%s0 + $0x138] sm:$0xff]
  %v72 = vld [vmem:[%s0 + $0x140] sm:$0xff]
  %v73 = vld [vmem:[%s0 + $0x148] sm:$0xff]
  %v74 = vld [vmem:[%s0 + $0x150] sm:$0xff]
  %v75 = vld [vmem:[%s0 + $0x158] sm:$0xff]
  %v76 = vld [vmem:[%s0 + $0x160] sm:$0xff]
  %v77 = vld [vmem:[%s0 + $0x168] sm:$0xff]
  %v78 = vld [vmem:[%s0 + $0x170] sm:$0xff]
  %v79 = vld [vmem:[%s0 + $0x178] sm:$0xff]
  %v80 = vld [vmem:[%s0 + $0x180] sm:$0xff]
  %v81 = vld [vmem:[%s0 + $0x188] sm:$0xff]
  %v82 = vld [vmem:[%s0 + $0x190] sm:$0xff]
  %v83 = vld [vmem:[%s0 + $0x198] sm:$0xff]
  %v84 = vld [vmem:[%s0 + $0x1a0] sm:$0xff]
  %v85 = vld [vmem:[%s0 + $0x1a8] sm:$0xff]
  %v86 = vld [vmem:[%s0 + $0x1b0] sm:$0xff]
  %v87 = vld [vmem:[%s0 + $0x1b8] sm:$0xff]
  %v88 = vld [vmem:[%s0 + $0x1c0] sm:$0xff]
  %v89 = vld [vmem:[%s0 + $0x1c8] sm:$0xff]
  %v90 = vld [vmem:[%s0 + $0x1d0] sm:$0xff]
  %v91 = vld [vmem:[%s0 + $0x1d8] sm:$0xff]
  %v92 = vld [vmem:[%s0 + $0x1e0] sm:$0xff]
  %v93 = vld [vmem:[%s0 + $0x1e8] sm:$0xff]
  %v94 = vld [vmem:[%s0 + $0x1f0] sm:$0xff]
  %v95 = vld [vmem:[%s0 + $0x1f8] sm:$0xff]
  %v96 = vld [vmem:[%s1] sm:$0x1]
  %98 = vset.pattern.permute.xlu0 0
  %99 = vperm.xlu0 %98, %v32
  %v100 = vpop.permute.xlu0 %99
  %103 = vset.pattern.permute.xlu0 0
  %104 = vperm.xlu0 %103, %v33
  %v105 = vpop.permute.xlu0 %104
  %108 = vset.pattern.permute.xlu0 0
  %109 = vperm.xlu0 %108, %v34
  %v110 = vpop.permute.xlu0 %109
  %113 = vset.pattern.permute.xlu0 0
  %114 = vperm.xlu0 %113, %v35
  %v115 = vpop.permute.xlu0 %114
  %118 = vset.pattern.permute.xlu0 0
  %119 = vperm.xlu0 %118, %v36
  %v120 = vpop.permute.xlu0 %119
  %123 = vset.pattern.permute.xlu0 0
  %124 = vperm.xlu0 %123, %v37
  %v125 = vpop.permute.xlu0 %124
  %128 = vset.pattern.permute.xlu0 0
  %129 = vperm.xlu0 %128, %v38
  %v130 = vpop.permute.xlu0 %129
  %133 = vset.pattern.permute.xlu0 0
  %134 = vperm.xlu0 %133, %v39
  %v135 = vpop.permute.xlu0 %134
  %138 = vset.pattern.permute.xlu0 0
  %139 = vperm.xlu0 %138, %v40
  %v140 = vpop.permute.xlu0 %139
  %143 = vset.pattern.permute.xlu0 0
  %144 = vperm.xlu0 %143, %v41
  %v145 = vpop.permute.xlu0 %144
  %148 = vset.pattern.permute.xlu0 0
  %149 = vperm.xlu0 %148, %v42
  %v150 = vpop.permute.xlu0 %149
  %153 = vset.pattern.permute.xlu0 0
  %154 = vperm.xlu0 %153, %v43
  %v155 = vpop.permute.xlu0 %154
  %158 = vset.pattern.permute.xlu0 0
  %159 = vperm.xlu0 %158, %v44
  %v160 = vpop.permute.xlu0 %159
  %163 = vset.pattern.permute.xlu0 0
  %164 = vperm.xlu0 %163, %v45
  %v165 = vpop.permute.xlu0 %164
  %168 = vset.pattern.permute.xlu0 0
  %169 = vperm.xlu0 %168, %v46
  %v170 = vpop.permute.xlu0 %169
  %173 = vset.pattern.permute.xlu0 0
  %174 = vperm.xlu0 %173, %v47
  %v175 = vpop.permute.xlu0 %174
  %178 = vset.pattern.permute.xlu0 0
  %179 = vperm.xlu0 %178, %v48
  %v180 = vpop.permute.xlu0 %179
  %183 = vset.pattern.permute.xlu0 0
  %184 = vperm.xlu0 %183, %v49
  %v185 = vpop.permute.xlu0 %184
  %188 = vset.pattern.permute.xlu0 0
  %189 = vperm.xlu0 %188, %v50
  %v190 = vpop.permute.xlu0 %189
  %193 = vset.pattern.permute.xlu0 0
  %194 = vperm.xlu0 %193, %v51
  %v195 = vpop.permute.xlu0 %194
  %198 = vset.pattern.permute.xlu0 0
  %199 = vperm.xlu0 %198, %v52
  %v200 = vpop.permute.xlu0 %199
  %203 = vset.pattern.permute.xlu0 0
  %204 = vperm.xlu0 %203, %v53
  %v205 = vpop.permute.xlu0 %204
  %208 = vset.pattern.permute.xlu0 0
  %209 = vperm.xlu0 %208, %v54
  %v210 = vpop.permute.xlu0 %209
  %213 = vset.pattern.permute.xlu0 0
  %214 = vperm.xlu0 %213, %v55
  %v215 = vpop.permute.xlu0 %214
  %218 = vset.pattern.permute.xlu0 0
  %219 = vperm.xlu0 %218, %v56
  %v220 = vpop.permute.xlu0 %219
  %223 = vset.pattern.permute.xlu0 0
  %224 = vperm.xlu0 %223, %v57
  %v225 = vpop.permute.xlu0 %224
  %228 = vset.pattern.permute.xlu0 0
  %229 = vperm.xlu0 %228, %v58
  %v230 = vpop.permute.xlu0 %229
  %233 = vset.pattern.permute.xlu0 0
  %234 = vperm.xlu0 %233, %v59
  %v235 = vpop.permute.xlu0 %234
  %238 = vset.pattern.permute.xlu0 0
  %239 = vperm.xlu0 %238, %v60
  %v240 = vpop.permute.xlu0 %239
  %243 = vset.pattern.permute.xlu0 0
  %244 = vperm.xlu0 %243, %v61
  %v245 = vpop.permute.xlu0 %244
  %248 = vset.pattern.permute.xlu0 0
  %249 = vperm.xlu0 %248, %v62
  %v250 = vpop.permute.xlu0 %249
  %253 = vset.pattern.permute.xlu0 0
  %254 = vperm.xlu0 %253, %v63
  %v255 = vpop.permute.xlu0 %254
  %258 = vset.pattern.permute.xlu0 0
  %259 = vperm.xlu0 %258, %v64
  %v260 = vpop.permute.xlu0 %259
  %263 = vset.pattern.permute.xlu0 0
  %264 = vperm.xlu0 %263, %v65
  %v265 = vpop.permute.xlu0 %264
  %268 = vset.pattern.permute.xlu0 0
  %269 = vperm.xlu0 %268, %v66
  %v270 = vpop.permute.xlu0 %269
  %273 = vset.pattern.permute.xlu0 0
  %274 = vperm.xlu0 %273, %v67
  %v275 = vpop.permute.xlu0 %274
  %278 = vset.pattern.permute.xlu0 0
  %279 = vperm.xlu0 %278, %v68
  %v280 = vpop.permute.xlu0 %279
  %283 = vset.pattern.permute.xlu0 0
  %284 = vperm.xlu0 %283, %v69
  %v285 = vpop.permute.xlu0 %284
  %288 = vset.pattern.permute.xlu0 0
  %289 = vperm.xlu0 %288, %v70
  %v290 = vpop.permute.xlu0 %289
  %293 = vset.pattern.permute.xlu0 0
  %294 = vperm.xlu0 %293, %v71
  %v295 = vpop.permute.xlu0 %294
  %298 = vset.pattern.permute.xlu0 0
  %299 = vperm.xlu0 %298, %v72
  %v300 = vpop.permute.xlu0 %299
  %303 = vset.pattern.permute.xlu0 0
  %304 = vperm.xlu0 %303, %v73
  %v305 = vpop.permute.xlu0 %304
  %308 = vset.pattern.permute.xlu0 0
  %309 = vperm.xlu0 %308, %v74
  %v310 = vpop.permute.xlu0 %309
  %313 = vset.pattern.permute.xlu0 0
  %314 = vperm.xlu0 %313, %v75
  %v315 = vpop.permute.xlu0 %314
  %318 = vset.pattern.permute.xlu0 0
  %319 = vperm.xlu0 %318, %v76
  %v320 = vpop.permute.xlu0 %319
  %323 = vset.pattern.permute.xlu0 0
  %324 = vperm.xlu0 %323, %v77
  %v325 = vpop.permute.xlu0 %324
  %328 = vset.pattern.permute.xlu0 0
  %329 = vperm.xlu0 %328, %v78
  %v330 = vpop.permute.xlu0 %329
  %333 = vset.pattern.permute.xlu0 0
  %334 = vperm.xlu0 %333, %v79
  %v335 = vpop.permute.xlu0 %334
  %338 = vset.pattern.permute.xlu0 0
  %339 = vperm.xlu0 %338, %v80
  %v340 = vpop.permute.xlu0 %339
  %343 = vset.pattern.permute.xlu0 0
  %344 = vperm.xlu0 %343, %v81
  %v345 = vpop.permute.xlu0 %344
  %348 = vset.pattern.permute.xlu0 0
  %349 = vperm.xlu0 %348, %v82
  %v350 = vpop.permute.xlu0 %349
  %353 = vset.pattern.permute.xlu0 0
  %354 = vperm.xlu0 %353, %v83
  %v355 = vpop.permute.xlu0 %354
  %358 = vset.pattern.permute.xlu0 0
  %359 = vperm.xlu0 %358, %v84
  %v360 = vpop.permute.xlu0 %359
  %363 = vset.pattern.permute.xlu0 0
  %364 = vperm.xlu0 %363, %v85
  %v365 = vpop.permute.xlu0 %364
  %368 = vset.pattern.permute.xlu0 0
  %369 = vperm.xlu0 %368, %v86
  %v370 = vpop.permute.xlu0 %369
  %373 = vset.pattern.permute.xlu0 0
  %374 = vperm.xlu0 %373, %v87
  %v375 = vpop.permute.xlu0 %374
  %378 = vset.pattern.permute.xlu0 0
  %379 = vperm.xlu0 %378, %v88
  %v380 = vpop.permute.xlu0 %379
  %383 = vset.pattern.permute.xlu0 0
  %384 = vperm.xlu0 %383, %v89
  %v385 = vpop.permute.xlu0 %384
  %388 = vset.pattern.permute.xlu0 0
  %389 = vperm.xlu0 %388, %v90
  %v390 = vpop.permute.xlu0 %389
  %393 = vset.pattern.permute.xlu0 0
  %394 = vperm.xlu0 %393, %v91
  %v395 = vpop.permute.xlu0 %394
  %398 = vset.pattern.permute.xlu0 0
  %399 = vperm.xlu0 %398, %v92
  %v400 = vpop.permute.xlu0 %399
  %403 = vset.pattern.permute.xlu0 0
  %404 = vperm.xlu0 %403, %v93
  %v405 = vpop.permute.xlu0 %404
  %408 = vset.pattern.permute.xlu0 0
  %409 = vperm.xlu0 %408, %v94
  %v410 = vpop.permute.xlu0 %409
  %413 = vset.pattern.permute.xlu0 0
  %414 = vperm.xlu0 %413, %v95
  %v415 = vpop.permute.xlu0 %414
  %v417 = vlaneseq
  %v418 = vshrl.u32 %v417, 7
  %v419 = vsub.s32 0, %v418
  %v420 = vrot.slane %v96, %v419
  %v421 = vmul.f32 %v100, %v420
  %v422 = vmul.f32 %v105, %v420
  %v423 = vmul.f32 %v110, %v420
  %v424 = vmul.f32 %v115, %v420
  %v425 = vmul.f32 %v120, %v420
  %v426 = vmul.f32 %v125, %v420
  %v427 = vmul.f32 %v130, %v420
  %v428 = vmul.f32 %v135, %v420
  %v429 = vmul.f32 %v140, %v420
  %v430 = vmul.f32 %v145, %v420
  %v431 = vmul.f32 %v150, %v420
  %v432 = vmul.f32 %v155, %v420
  %v433 = vmul.f32 %v160, %v420
  %v434 = vmul.f32 %v165, %v420
  %v435 = vmul.f32 %v170, %v420
  %v436 = vmul.f32 %v175, %v420
  %v437 = vmul.f32 %v180, %v420
  %v438 = vmul.f32 %v185, %v420
  %v439 = vmul.f32 %v190, %v420
  %v440 = vmul.f32 %v195, %v420
  %v441 = vmul.f32 %v200, %v420
  %v442 = vmul.f32 %v205, %v420
  %v443 = vmul.f32 %v210, %v420
  %v444 = vmul.f32 %v215, %v420
  %v445 = vmul.f32 %v220, %v420
  %v446 = vmul.f32 %v225, %v420
  %v447 = vmul.f32 %v230, %v420
  %v448 = vmul.f32 %v235, %v420
  %v449 = vmul.f32 %v240, %v420
  %v450 = vmul.f32 %v245, %v420
  %v451 = vmul.f32 %v250, %v420
  %v452 = vmul.f32 %v255, %v420
  %v453 = vmul.f32 %v260, %v420
  %v454 = vmul.f32 %v265, %v420
  %v455 = vmul.f32 %v270, %v420
  %v456 = vmul.f32 %v275, %v420
  %v457 = vmul.f32 %v280, %v420
  %v458 = vmul.f32 %v285, %v420
  %v459 = vmul.f32 %v290, %v420
  %v460 = vmul.f32 %v295, %v420
  %v461 = vmul.f32 %v300, %v420
  %v462 = vmul.f32 %v305, %v420
  %v463 = vmul.f32 %v310, %v420
  %v464 = vmul.f32 %v315, %v420
  %v465 = vmul.f32 %v320, %v420
  %v466 = vmul.f32 %v325, %v420
  %v467 = vmul.f32 %v330, %v420
  %v468 = vmul.f32 %v335, %v420
  %v469 = vmul.f32 %v340, %v420
  %v470 = vmul.f32 %v345, %v420
  %v471 = vmul.f32 %v350, %v420
  %v472 = vmul.f32 %v355, %v420
  %v473 = vmul.f32 %v360, %v420
  %v474 = vmul.f32 %v365, %v420
  %v475 = vmul.f32 %v370, %v420
  %v476 = vmul.f32 %v375, %v420
  %v477 = vmul.f32 %v380, %v420
  %v478 = vmul.f32 %v385, %v420
  %v479 = vmul.f32 %v390, %v420
  %v480 = vmul.f32 %v395, %v420
  %v481 = vmul.f32 %v400, %v420
  %v482 = vmul.f32 %v405, %v420
  %v483 = vmul.f32 %v410, %v420
  %v484 = vmul.f32 %v415, %v420
  %v485 = vld [vmem:[%s1 + $0x1] sm:$0x1]
  %486 = vset.pattern.permute.xlu0 1
  %487 = vperm.xlu0 %486, %v32
  %v488 = vpop.permute.xlu0 %487
  %490 = vset.pattern.permute.xlu0 1
  %491 = vperm.xlu0 %490, %v33
  %v492 = vpop.permute.xlu0 %491
  %494 = vset.pattern.permute.xlu0 1
  %495 = vperm.xlu0 %494, %v34
  %v496 = vpop.permute.xlu0 %495
  %498 = vset.pattern.permute.xlu0 1
  %499 = vperm.xlu0 %498, %v35
  %v500 = vpop.permute.xlu0 %499
  %502 = vset.pattern.permute.xlu0 1
  %503 = vperm.xlu0 %502, %v36
  %v504 = vpop.permute.xlu0 %503
  %506 = vset.pattern.permute.xlu0 1
  %507 = vperm.xlu0 %506, %v37
  %v508 = vpop.permute.xlu0 %507
  %510 = vset.pattern.permute.xlu0 1
  %511 = vperm.xlu0 %510, %v38
  %v512 = vpop.permute.xlu0 %511
  %514 = vset.pattern.permute.xlu0 1
  %515 = vperm.xlu0 %514, %v39
  %v516 = vpop.permute.xlu0 %515
  %518 = vset.pattern.permute.xlu0 1
  %519 = vperm.xlu0 %518, %v40
  %v520 = vpop.permute.xlu0 %519
  %522 = vset.pattern.permute.xlu0 1
  %523 = vperm.xlu0 %522, %v41
  %v524 = vpop.permute.xlu0 %523
  %526 = vset.pattern.permute.xlu0 1
  %527 = vperm.xlu0 %526, %v42
  %v528 = vpop.permute.xlu0 %527
  %530 = vset.pattern.permute.xlu0 1
  %531 = vperm.xlu0 %530, %v43
  %v532 = vpop.permute.xlu0 %531
  %534 = vset.pattern.permute.xlu0 1
  %535 = vperm.xlu0 %534, %v44
  %v536 = vpop.permute.xlu0 %535
  %538 = vset.pattern.permute.xlu0 1
  %539 = vperm.xlu0 %538, %v45
  %v540 = vpop.permute.xlu0 %539
  %542 = vset.pattern.permute.xlu0 1
  %543 = vperm.xlu0 %542, %v46
  %v544 = vpop.permute.xlu0 %543
  %546 = vset.pattern.permute.xlu0 1
  %547 = vperm.xlu0 %546, %v47
  %v548 = vpop.permute.xlu0 %547
  %550 = vset.pattern.permute.xlu0 1
  %551 = vperm.xlu0 %550, %v48
  %v552 = vpop.permute.xlu0 %551
  %554 = vset.pattern.permute.xlu0 1
  %555 = vperm.xlu0 %554, %v49
  %v556 = vpop.permute.xlu0 %555
  %558 = vset.pattern.permute.xlu0 1
  %559 = vperm.xlu0 %558, %v50
  %v560 = vpop.permute.xlu0 %559
  %562 = vset.pattern.permute.xlu0 1
  %563 = vperm.xlu0 %562, %v51
  %v564 = vpop.permute.xlu0 %563
  %566 = vset.pattern.permute.xlu0 1
  %567 = vperm.xlu0 %566, %v52
  %v568 = vpop.permute.xlu0 %567
  %570 = vset.pattern.permute.xlu0 1
  %571 = vperm.xlu0 %570, %v53
  %v572 = vpop.permute.xlu0 %571
  %574 = vset.pattern.permute.xlu0 1
  %575 = vperm.xlu0 %574, %v54
  %v576 = vpop.permute.xlu0 %575
  %578 = vset.pattern.permute.xlu0 1
  %579 = vperm.xlu0 %578, %v55
  %v580 = vpop.permute.xlu0 %579
  %582 = vset.pattern.permute.xlu0 1
  %583 = vperm.xlu0 %582, %v56
  %v584 = vpop.permute.xlu0 %583
  %586 = vset.pattern.permute.xlu0 1
  %587 = vperm.xlu0 %586, %v57
  %v588 = vpop.permute.xlu0 %587
  %590 = vset.pattern.permute.xlu0 1
  %591 = vperm.xlu0 %590, %v58
  %v592 = vpop.permute.xlu0 %591
  %594 = vset.pattern.permute.xlu0 1
  %595 = vperm.xlu0 %594, %v59
  %v596 = vpop.permute.xlu0 %595
  %598 = vset.pattern.permute.xlu0 1
  %599 = vperm.xlu0 %598, %v60
  %v600 = vpop.permute.xlu0 %599
  %602 = vset.pattern.permute.xlu0 1
  %603 = vperm.xlu0 %602, %v61
  %v604 = vpop.permute.xlu0 %603
  %606 = vset.pattern.permute.xlu0 1
  %607 = vperm.xlu0 %606, %v62
  %v608 = vpop.permute.xlu0 %607
  %610 = vset.pattern.permute.xlu0 1
  %611 = vperm.xlu0 %610, %v63
  %v612 = vpop.permute.xlu0 %611
  %614 = vset.pattern.permute.xlu0 1
  %615 = vperm.xlu0 %614, %v64
  %v616 = vpop.permute.xlu0 %615
  %618 = vset.pattern.permute.xlu0 1
  %619 = vperm.xlu0 %618, %v65
  %v620 = vpop.permute.xlu0 %619
  %622 = vset.pattern.permute.xlu0 1
  %623 = vperm.xlu0 %622, %v66
  %v624 = vpop.permute.xlu0 %623
  %626 = vset.pattern.permute.xlu0 1
  %627 = vperm.xlu0 %626, %v67
  %v628 = vpop.permute.xlu0 %627
  %630 = vset.pattern.permute.xlu0 1
  %631 = vperm.xlu0 %630, %v68
  %v632 = vpop.permute.xlu0 %631
  %634 = vset.pattern.permute.xlu0 1
  %635 = vperm.xlu0 %634, %v69
  %v636 = vpop.permute.xlu0 %635
  %638 = vset.pattern.permute.xlu0 1
  %639 = vperm.xlu0 %638, %v70
  %v640 = vpop.permute.xlu0 %639
  %642 = vset.pattern.permute.xlu0 1
  %643 = vperm.xlu0 %642, %v71
  %v644 = vpop.permute.xlu0 %643
  %646 = vset.pattern.permute.xlu0 1
  %647 = vperm.xlu0 %646, %v72
  %v648 = vpop.permute.xlu0 %647
  %650 = vset.pattern.permute.xlu0 1
  %651 = vperm.xlu0 %650, %v73
  %v652 = vpop.permute.xlu0 %651
  %654 = vset.pattern.permute.xlu0 1
  %655 = vperm.xlu0 %654, %v74
  %v656 = vpop.permute.xlu0 %655
  %658 = vset.pattern.permute.xlu0 1
  %659 = vperm.xlu0 %658, %v75
  %v660 = vpop.permute.xlu0 %659
  %662 = vset.pattern.permute.xlu0 1
  %663 = vperm.xlu0 %662, %v76
  %v664 = vpop.permute.xlu0 %663
  %666 = vset.pattern.permute.xlu0 1
  %667 = vperm.xlu0 %666, %v77
  %v668 = vpop.permute.xlu0 %667
  %670 = vset.pattern.permute.xlu0 1
  %671 = vperm.xlu0 %670, %v78
  %v672 = vpop.permute.xlu0 %671
  %674 = vset.pattern.permute.xlu0 1
  %675 = vperm.xlu0 %674, %v79
  %v676 = vpop.permute.xlu0 %675
  %678 = vset.pattern.permute.xlu0 1
  %679 = vperm.xlu0 %678, %v80
  %v680 = vpop.permute.xlu0 %679
  %682 = vset.pattern.permute.xlu0 1
  %683 = vperm.xlu0 %682, %v81
  %v684 = vpop.permute.xlu0 %683
  %686 = vset.pattern.permute.xlu0 1
  %687 = vperm.xlu0 %686, %v82
  %v688 = vpop.permute.xlu0 %687
  %690 = vset.pattern.permute.xlu0 1
  %691 = vperm.xlu0 %690, %v83
  %v692 = vpop.permute.xlu0 %691
  %694 = vset.pattern.permute.xlu0 1
  %695 = vperm.xlu0 %694, %v84
  %v696 = vpop.permute.xlu0 %695
  %698 = vset.pattern.permute.xlu0 1
  %699 = vperm.xlu0 %698, %v85
  %v700 = vpop.permute.xlu0 %699
  %702 = vset.pattern.permute.xlu0 1
  %703 = vperm.xlu0 %702, %v86
  %v704 = vpop.permute.xlu0 %703
  %706 = vset.pattern.permute.xlu0 1
  %707 = vperm.xlu0 %706, %v87
  %v708 = vpop.permute.xlu0 %707
  %710 = vset.pattern.permute.xlu0 1
  %711 = vperm.xlu0 %710, %v88
  %v712 = vpop.permute.xlu0 %711
  %714 = vset.pattern.permute.xlu0 1
  %715 = vperm.xlu0 %714, %v89
  %v716 = vpop.permute.xlu0 %715
  %718 = vset.pattern.permute.xlu0 1
  %719 = vperm.xlu0 %718, %v90
  %v720 = vpop.permute.xlu0 %719
  %722 = vset.pattern.permute.xlu0 1
  %723 = vperm.xlu0 %722, %v91
  %v724 = vpop.permute.xlu0 %723
  %726 = vset.pattern.permute.xlu0 1
  %727 = vperm.xlu0 %726, %v92
  %v728 = vpop.permute.xlu0 %727
  %730 = vset.pattern.permute.xlu0 1
  %731 = vperm.xlu0 %730, %v93
  %v732 = vpop.permute.xlu0 %731
  %734 = vset.pattern.permute.xlu0 1
  %735 = vperm.xlu0 %734, %v94
  %v736 = vpop.permute.xlu0 %735
  %738 = vset.pattern.permute.xlu0 1
  %739 = vperm.xlu0 %738, %v95
  %v740 = vpop.permute.xlu0 %739
  %v742 = vlaneseq
  %v743 = vshrl.u32 %v742, 7
  %v744 = vsub.s32 0, %v743
  %v745 = vrot.slane %v485, %v744
  %v746 = vmul.f32 %v488, %v745
  %v747 = vmul.f32 %v492, %v745
  %v748 = vmul.f32 %v496, %v745
  %v749 = vmul.f32 %v500, %v745
  %v750 = vmul.f32 %v504, %v745
  %v751 = vmul.f32 %v508, %v745
  %v752 = vmul.f32 %v512, %v745
  %v753 = vmul.f32 %v516, %v745
  %v754 = vmul.f32 %v520, %v745
  %v755 = vmul.f32 %v524, %v745
  %v756 = vmul.f32 %v528, %v745
  %v757 = vmul.f32 %v532, %v745
  %v758 = vmul.f32 %v536, %v745
  %v759 = vmul.f32 %v540, %v745
  %v760 = vmul.f32 %v544, %v745
  %v761 = vmul.f32 %v548, %v745
  %v762 = vmul.f32 %v552, %v745
  %v763 = vmul.f32 %v556, %v745
  %v764 = vmul.f32 %v560, %v745
  %v765 = vmul.f32 %v564, %v745
  %v766 = vmul.f32 %v568, %v745
  %v767 = vmul.f32 %v572, %v745
  %v768 = vmul.f32 %v576, %v745
  %v769 = vmul.f32 %v580, %v745
  %v770 = vmul.f32 %v584, %v745
  %v771 = vmul.f32 %v588, %v745
  %v772 = vmul.f32 %v592, %v745
  %v773 = vmul.f32 %v596, %v745
  %v774 = vmul.f32 %v600, %v745
  %v775 = vmul.f32 %v604, %v745
  %v776 = vmul.f32 %v608, %v745
  %v777 = vmul.f32 %v612, %v745
  %v778 = vmul.f32 %v616, %v745
  %v779 = vmul.f32 %v620, %v745
  %v780 = vmul.f32 %v624, %v745
  %v781 = vmul.f32 %v628, %v745
  %v782 = vmul.f32 %v632, %v745
  %v783 = vmul.f32 %v636, %v745
  %v784 = vmul.f32 %v640, %v745
  %v785 = vmul.f32 %v644, %v745
  %v786 = vmul.f32 %v648, %v745
  %v787 = vmul.f32 %v652, %v745
  %v788 = vmul.f32 %v656, %v745
  %v789 = vmul.f32 %v660, %v745
  %v790 = vmul.f32 %v664, %v745
  %v791 = vmul.f32 %v668, %v745
  %v792 = vmul.f32 %v672, %v745
  %v793 = vmul.f32 %v676, %v745
  %v794 = vmul.f32 %v680, %v745
  %v795 = vmul.f32 %v684, %v745
  %v796 = vmul.f32 %v688, %v745
  %v797 = vmul.f32 %v692, %v745
  %v798 = vmul.f32 %v696, %v745
  %v799 = vmul.f32 %v700, %v745
  %v800 = vmul.f32 %v704, %v745
  %v801 = vmul.f32 %v708, %v745
  %v802 = vmul.f32 %v712, %v745
  %v803 = vmul.f32 %v716, %v745
  %v804 = vmul.f32 %v720, %v745
  %v805 = vmul.f32 %v724, %v745
  %v806 = vmul.f32 %v728, %v745
  %v807 = vmul.f32 %v732, %v745
  %v808 = vmul.f32 %v736, %v745
  %v809 = vmul.f32 %v740, %v745
  %v810 = vadd.f32 %v421, %v746
  %v811 = vadd.f32 %v422, %v747
  %v812 = vadd.f32 %v423, %v748
  %v813 = vadd.f32 %v424, %v749
  %v814 = vadd.f32 %v425, %v750
  %v815 = vadd.f32 %v426, %v751
  %v816 = vadd.f32 %v427, %v752
  %v817 = vadd.f32 %v428, %v753
  %v818 = vadd.f32 %v429, %v754
  %v819 = vadd.f32 %v430, %v755
  %v820 = vadd.f32 %v431, %v756
  %v821 = vadd.f32 %v432, %v757
  %v822 = vadd.f32 %v433, %v758
  %v823 = vadd.f32 %v434, %v759
  %v824 = vadd.f32 %v435, %v760
  %v825 = vadd.f32 %v436, %v761
  %v826 = vadd.f32 %v437, %v762
  %v827 = vadd.f32 %v438, %v763
  %v828 = vadd.f32 %v439, %v764
  %v829 = vadd.f32 %v440, %v765
  %v830 = vadd.f32 %v441, %v766
  %v831 = vadd.f32 %v442, %v767
  %v832 = vadd.f32 %v443, %v768
  %v833 = vadd.f32 %v444, %v769
  %v834 = vadd.f32 %v445, %v770
  %v835 = vadd.f32 %v446, %v771
  %v836 = vadd.f32 %v447, %v772
  %v837 = vadd.f32 %v448, %v773
  %v838 = vadd.f32 %v449, %v774
  %v839 = vadd.f32 %v450, %v775
  %v840 = vadd.f32 %v451, %v776
  %v841 = vadd.f32 %v452, %v777
  %v842 = vadd.f32 %v453, %v778
  %v843 = vadd.f32 %v454, %v779
  %v844 = vadd.f32 %v455, %v780
  %v845 = vadd.f32 %v456, %v781
  %v846 = vadd.f32 %v457, %v782
  %v847 = vadd.f32 %v458, %v783
  %v848 = vadd.f32 %v459, %v784
  %v849 = vadd.f32 %v460, %v785
  %v850 = vadd.f32 %v461, %v786
  %v851 = vadd.f32 %v462, %v787
  %v852 = vadd.f32 %v463, %v788
  %v853 = vadd.f32 %v464, %v789
  %v854 = vadd.f32 %v465, %v790
  %v855 = vadd.f32 %v466, %v791
  %v856 = vadd.f32 %v467, %v792
  %v857 = vadd.f32 %v468, %v793
  %v858 = vadd.f32 %v469, %v794
  %v859 = vadd.f32 %v470, %v795
  %v860 = vadd.f32 %v471, %v796
  %v861 = vadd.f32 %v472, %v797
  %v862 = vadd.f32 %v473, %v798
  %v863 = vadd.f32 %v474, %v799
  %v864 = vadd.f32 %v475, %v800
  %v865 = vadd.f32 %v476, %v801
  %v866 = vadd.f32 %v477, %v802
  %v867 = vadd.f32 %v478, %v803
  %v868 = vadd.f32 %v479, %v804
  %v869 = vadd.f32 %v480, %v805
  %v870 = vadd.f32 %v481, %v806
  %v871 = vadd.f32 %v482, %v807
  %v872 = vadd.f32 %v483, %v808
  %v873 = vadd.f32 %v484, %v809
  %v874 = vld [vmem:[%s2] sm:$0x1]
  %v876 = vlaneseq
  %v877 = vshrl.u32 %v876, 7
  %v878 = vsub.s32 0, %v877
  %v879 = vrot.slane %v874, %v878
  %v881 = vadd.f32 %v810, %v879
  %v882 = vadd.f32 %v811, %v879
  %v883 = vadd.f32 %v812, %v879
  %v884 = vadd.f32 %v813, %v879
  %v885 = vadd.f32 %v814, %v879
  %v886 = vadd.f32 %v815, %v879
  %v887 = vadd.f32 %v816, %v879
  %v888 = vadd.f32 %v817, %v879
  %v889 = vadd.f32 %v818, %v879
  %v890 = vadd.f32 %v819, %v879
  %v891 = vadd.f32 %v820, %v879
  %v892 = vadd.f32 %v821, %v879
  %v893 = vadd.f32 %v822, %v879
  %v894 = vadd.f32 %v823, %v879
  %v895 = vadd.f32 %v824, %v879
  %v896 = vadd.f32 %v825, %v879
  %v897 = vadd.f32 %v826, %v879
  %v898 = vadd.f32 %v827, %v879
  %v899 = vadd.f32 %v828, %v879
  %v900 = vadd.f32 %v829, %v879
  %v901 = vadd.f32 %v830, %v879
  %v902 = vadd.f32 %v831, %v879
  %v903 = vadd.f32 %v832, %v879
  %v904 = vadd.f32 %v833, %v879
  %v905 = vadd.f32 %v834, %v879
  %v906 = vadd.f32 %v835, %v879
  %v907 = vadd.f32 %v836, %v879
  %v908 = vadd.f32 %v837, %v879
  %v909 = vadd.f32 %v838, %v879
  %v910 = vadd.f32 %v839, %v879
  %v911 = vadd.f32 %v840, %v879
  %v912 = vadd.f32 %v841, %v879
  %v913 = vadd.f32 %v842, %v879
  %v914 = vadd.f32 %v843, %v879
  %v915 = vadd.f32 %v844, %v879
  %v916 = vadd.f32 %v845, %v879
  %v917 = vadd.f32 %v846, %v879
  %v918 = vadd.f32 %v847, %v879
  %v919 = vadd.f32 %v848, %v879
  %v920 = vadd.f32 %v849, %v879
  %v921 = vadd.f32 %v850, %v879
  %v922 = vadd.f32 %v851, %v879
  %v923 = vadd.f32 %v852, %v879
  %v924 = vadd.f32 %v853, %v879
  %v925 = vadd.f32 %v854, %v879
  %v926 = vadd.f32 %v855, %v879
  %v927 = vadd.f32 %v856, %v879
  %v928 = vadd.f32 %v857, %v879
  %v929 = vadd.f32 %v858, %v879
  %v930 = vadd.f32 %v859, %v879
  %v931 = vadd.f32 %v860, %v879
  %v932 = vadd.f32 %v861, %v879
  %v933 = vadd.f32 %v862, %v879
  %v934 = vadd.f32 %v863, %v879
  %v935 = vadd.f32 %v864, %v879
  %v936 = vadd.f32 %v865, %v879
  %v937 = vadd.f32 %v866, %v879
  %v938 = vadd.f32 %v867, %v879
  %v939 = vadd.f32 %v868, %v879
  %v940 = vadd.f32 %v869, %v879
  %v941 = vadd.f32 %v870, %v879
  %v942 = vadd.f32 %v871, %v879
  %v943 = vadd.f32 %v872, %v879
  %v944 = vadd.f32 %v873, %v879
  %v945 = vmax.f32 %v881, 0.0
  %v946 = vmax.f32 %v882, 0.0
  %v947 = vmax.f32 %v883, 0.0
  %v948 = vmax.f32 %v884, 0.0
  %v949 = vmax.f32 %v885, 0.0
  %v950 = vmax.f32 %v886, 0.0
  %v951 = vmax.f32 %v887, 0.0
  %v952 = vmax.f32 %v888, 0.0
  %v953 = vmax.f32 %v889, 0.0
  %v954 = vmax.f32 %v890, 0.0
  %v955 = vmax.f32 %v891, 0.0
  %v956 = vmax.f32 %v892, 0.0
  %v957 = vmax.f32 %v893, 0.0
  %v958 = vmax.f32 %v894, 0.0
  %v959 = vmax.f32 %v895, 0.0
  %v960 = vmax.f32 %v896, 0.0
  %v961 = vmax.f32 %v897, 0.0
  %v962 = vmax.f32 %v898, 0.0
  %v963 = vmax.f32 %v899, 0.0
  %v964 = vmax.f32 %v900, 0.0
  %v965 = vmax.f32 %v901, 0.0
  %v966 = vmax.f32 %v902, 0.0
  %v967 = vmax.f32 %v903, 0.0
  %v968 = vmax.f32 %v904, 0.0
  %v969 = vmax.f32 %v905, 0.0
  %v970 = vmax.f32 %v906, 0.0
  %v971 = vmax.f32 %v907, 0.0
  %v972 = vmax.f32 %v908, 0.0
  %v973 = vmax.f32 %v909, 0.0
  %v974 = vmax.f32 %v910, 0.0
  %v975 = vmax.f32 %v911, 0.0
  %v976 = vmax.f32 %v912, 0.0
  %v977 = vmax.f32 %v913, 0.0
  %v978 = vmax.f32 %v914, 0.0
  %v979 = vmax.f32 %v915, 0.0
  %v980 = vmax.f32 %v916, 0.0
  %v981 = vmax.f32 %v917, 0.0
  %v982 = vmax.f32 %v918, 0.0
  %v983 = vmax.f32 %v919, 0.0
  %v984 = vmax.f32 %v920, 0.0
  %v985 = vmax.f32 %v921, 0.0
  %v986 = vmax.f32 %v922, 0.0
  %v987 = vmax.f32 %v923, 0.0
  %v988 = vmax.f32 %v924, 0.0
  %v989 = vmax.f32 %v925, 0.0
  %v990 = vmax.f32 %v926, 0.0
  %v991 = vmax.f32 %v927, 0.0
  %v992 = vmax.f32 %v928, 0.0
  %v993 = vmax.f32 %v929, 0.0
  %v994 = vmax.f32 %v930, 0.0
  %v995 = vmax.f32 %v931, 0.0
  %v996 = vmax.f32 %v932, 0.0
  %v997 = vmax.f32 %v933, 0.0
  %v998 = vmax.f32 %v934, 0.0
  %v999 = vmax.f32 %v935, 0.0
  %v1000 = vmax.f32 %v936, 0.0
  %v1001 = vmax.f32 %v937, 0.0
  %v1002 = vmax.f32 %v938, 0.0
  %v1003 = vmax.f32 %v939, 0.0
  %v1004 = vmax.f32 %v940, 0.0
  %v1005 = vmax.f32 %v941, 0.0
  %v1006 = vmax.f32 %v942, 0.0
  %v1007 = vmax.f32 %v943, 0.0
  %v1008 = vmax.f32 %v944, 0.0
  %v1009 = vld [vmem:[%s3] sm:$0xff]
  %v1010 = vld [vmem:[%s3 + $0x8] sm:$0xff]
  %v1011 = vld [vmem:[%s3 + $0x10] sm:$0xff]
  %v1012 = vld [vmem:[%s3 + $0x18] sm:$0xff]
  %v1013 = vld [vmem:[%s3 + $0x20] sm:$0xff]
  %v1014 = vld [vmem:[%s3 + $0x28] sm:$0xff]
  %v1015 = vld [vmem:[%s3 + $0x30] sm:$0xff]
  %v1016 = vld [vmem:[%s3 + $0x38] sm:$0xff]
  %v1017 = vld [vmem:[%s3 + $0x40] sm:$0xff]
  %v1018 = vld [vmem:[%s3 + $0x48] sm:$0xff]
  %v1019 = vld [vmem:[%s3 + $0x50] sm:$0xff]
  %v1020 = vld [vmem:[%s3 + $0x58] sm:$0xff]
  %v1021 = vld [vmem:[%s3 + $0x60] sm:$0xff]
  %v1022 = vld [vmem:[%s3 + $0x68] sm:$0xff]
  %v1023 = vld [vmem:[%s3 + $0x70] sm:$0xff]
  %v1024 = vld [vmem:[%s3 + $0x78] sm:$0xff]
  %v1025 = vld [vmem:[%s4] sm:$0x1]
  %v1027 = vlaneseq
  %v1028 = vshrl.u32 %v1027, 7
  %v1029 = vsub.s32 0, %v1028
  %v1030 = vrot.slane %v1025, %v1029
  %1032 = vmatprep.subr.mxu0 0.0
  %1033 = vmatpush1.msra.mxu0 %v1009
  %1034 = vmatprep.subr.mxu0 0.0
  %1035 = vmatpush1.msra.mxu0 %v1010
  %1036 = vmatprep.subr.mxu0 0.0
  %1037 = vmatpush1.msra.mxu0 %v1011
  %1038 = vmatprep.subr.mxu0 0.0
  %1039 = vmatpush1.msra.mxu0 %v1012
  %1040 = vmatprep.subr.mxu0 0.0
  %1041 = vmatpush1.msra.mxu0 %v1013
  %1042 = vmatprep.subr.mxu0 0.0
  %1043 = vmatpush1.msra.mxu0 %v1014
  %1044 = vmatprep.subr.mxu0 0.0
  %1045 = vmatpush1.msra.mxu0 %v1015
  %1046 = vmatprep.subr.mxu0 0.0
  %1047 = vmatpush1.msra.mxu0 %v1016
  %1048 = vmatprep.subr.mxu0 0.0
  %1049 = vmatpush1.msra.mxu0 %v1017
  %1050 = vmatprep.subr.mxu0 0.0
  %1051 = vmatpush1.msra.mxu0 %v1018
  %1052 = vmatprep.subr.mxu0 0.0
  %1053 = vmatpush1.msra.mxu0 %v1019
  %1054 = vmatprep.subr.mxu0 0.0
  %1055 = vmatpush1.msra.mxu0 %v1020
  %1056 = vmatprep.subr.mxu0 0.0
  %1057 = vmatpush1.msra.mxu0 %v1021
  %1058 = vmatprep.subr.mxu0 0.0
  %1059 = vmatpush1.msra.mxu0 %v1022
  %1060 = vmatprep.subr.mxu0 0.0
  %1061 = vmatpush1.msra.mxu0 %v1023
  %1062 = vmatprep.subr.mxu0 0.0
  %1063 = vmatpush1.msra.mxu0 %v1024
  %1064 = vmatprep.subr.mxu0 0.0
  %1065 = vmatpush1.msra.mxu0 0.0
  %1066 = vmatprep.subr.mxu0 0.0
  %1067 = vmatpush1.msra.mxu0 0.0
  %1068 = vmatprep.subr.mxu0 0.0
  %1069 = vmatpush1.msra.mxu0 0.0
  %1070 = vmatprep.subr.mxu0 0.0
  %1071 = vmatpush1.msra.mxu0 0.0
  %1072 = vmatprep.subr.mxu0 0.0
  %1073 = vmatpush1.msra.mxu0 0.0
  %1074 = vmatprep.subr.mxu0 0.0
  %1075 = vmatpush1.msra.mxu0 0.0
  %1076 = vmatprep.subr.mxu0 0.0
  %1077 = vmatpush1.msra.mxu0 0.0
  %1078 = vmatprep.subr.mxu0 0.0
  %1079 = vmatpush1.msra.mxu0 0.0
  %1080 = vmatprep.subr.mxu0 0.0
  %1081 = vmatpush1.msra.mxu0 0.0
  %1082 = vmatprep.subr.mxu0 0.0
  %1083 = vmatpush1.msra.mxu0 0.0
  %1084 = vmatprep.subr.mxu0 0.0
  %1085 = vmatpush1.msra.mxu0 0.0
  %1086 = vmatprep.subr.mxu0 0.0
  %1087 = vmatpush1.msra.mxu0 0.0
  %1088 = vmatprep.subr.mxu0 0.0
  %1089 = vmatpush1.msra.mxu0 0.0
  %1090 = vmatprep.subr.mxu0 0.0
  %1091 = vmatpush1.msra.mxu0 0.0
  %1092 = vmatprep.subr.mxu0 0.0
  %1093 = vmatpush1.msra.mxu0 0.0
  %1094 = vmatprep.subr.mxu0 0.0
  %1095 = vmatpush1.msra.mxu0 0.0
  %1096 = vmatprep.mubr.f32.mxu0 0.0
  %1097 = vmatmul.mubr.f32.gmra.mrb[0].mxu0 %v945
  %v1098 = vpop.f32.mrb[0].mxu0
  %v1099 = vadd.f32 %v1030, %v1098
  %v1100 = vpop.f32.mrb[0].mxu0
  %1101 = vmatprep.mubr.f32.mxu0 0.0
  %1102 = vmatmul.mubr.f32.gmra.mrb[0].mxu0 %v946
  %v1103 = vpop.f32.mrb[0].mxu0
  %v1104 = vadd.f32 %v1030, %v1103
  %v1105 = vpop.f32.mrb[0].mxu0
  %1106 = vmatprep.mubr.f32.mxu0 0.0
  %1107 = vmatmul.mubr.f32.gmra.mrb[0].mxu0 %v947
  %v1108 = vpop.f32.mrb[0].mxu0
  %v1109 = vadd.f32 %v1030, %v1108
  %v1110 = vpop.f32.mrb[0].mxu0
  %1111 = vmatprep.mubr.f32.mxu0 0.0
  %1112 = vmatmul.mubr.f32.gmra.mrb[0].mxu0 %v948
  %v1113 = vpop.f32.mrb[0].mxu0
  %v1114 = vadd.f32 %v1030, %v1113
  %v1115 = vpop.f32.mrb[0].mxu0
  %1116 = vmatprep.mubr.f32.mxu0 0.0
  %1117 = vmatmul.mubr.f32.gmra.mrb[0].mxu0 %v949
  %v1118 = vpop.f32.mrb[0].mxu0
  %v1119 = vadd.f32 %v1030, %v1118
  %v1120 = vpop.f32.mrb[0].mxu0
  %1121 = vmatprep.mubr.f32.mxu0 0.0
  %1122 = vmatmul.mubr.f32.gmra.mrb[0].mxu0 %v950
  %v1123 = vpop.f32.mrb[0].mxu0
  %v1124 = vadd.f32 %v1030, %v1123
  %v1125 = vpop.f32.mrb[0].mxu0
  %1126 = vmatprep.mubr.f32.mxu0 0.0
  %1127 = vmatmul.mubr.f32.gmra.mrb[0].mxu0 %v951
  %v1128 = vpop.f32.mrb[0].mxu0
  %v1129 = vadd.f32 %v1030, %v1128
  %v1130 = vpop.f32.mrb[0].mxu0
  %1131 = vmatprep.mubr.f32.mxu0 0.0
  %1132 = vmatmul.mubr.f32.gmra.mrb[0].mxu0 %v952
  %v1133 = vpop.f32.mrb[0].mxu0
  %v1134 = vadd.f32 %v1030, %v1133
  %v1135 = vpop.f32.mrb[0].mxu0
  %1136 = vmatprep.mubr.f32.mxu0 0.0
  %1137 = vmatmul.mubr.f32.gmra.mrb[0].mxu0 %v953
  %v1138 = vpop.f32.mrb[0].mxu0
  %v1139 = vadd.f32 %v1030, %v1138
  %v1140 = vpop.f32.mrb[0].mxu0
  %1141 = vmatprep.mubr.f32.mxu0 0.0
  %1142 = vmatmul.mubr.f32.gmra.mrb[0].mxu0 %v954
  %v1143 = vpop.f32.mrb[0].mxu0
  %v1144 = vadd.f32 %v1030, %v1143
  %v1145 = vpop.f32.mrb[0].mxu0
  %1146 = vmatprep.mubr.f32.mxu0 0.0
  %1147 = vmatmul.mubr.f32.gmra.mrb[0].mxu0 %v955
  %v1148 = vpop.f32.mrb[0].mxu0
  %v1149 = vadd.f32 %v1030, %v1148
  %v1150 = vpop.f32.mrb[0].mxu0
  %1151 = vmatprep.mubr.f32.mxu0 0.0
  %1152 = vmatmul.mubr.f32.gmra.mrb[0].mxu0 %v956
  %v1153 = vpop.f32.mrb[0].mxu0
  %v1154 = vadd.f32 %v1030, %v1153
  %v1155 = vpop.f32.mrb[0].mxu0
  %1156 = vmatprep.mubr.f32.mxu0 0.0
  %1157 = vmatmul.mubr.f32.gmra.mrb[0].mxu0 %v957
  %v1158 = vpop.f32.mrb[0].mxu0
  %v1159 = vadd.f32 %v1030, %v1158
  %v1160 = vpop.f32.mrb[0].mxu0
  %1161 = vmatprep.mubr.f32.mxu0 0.0
  %1162 = vmatmul.mubr.f32.gmra.mrb[0].mxu0 %v958
  %v1163 = vpop.f32.mrb[0].mxu0
  %v1164 = vadd.f32 %v1030, %v1163
  %v1165 = vpop.f32.mrb[0].mxu0
  %1166 = vmatprep.mubr.f32.mxu0 0.0
  %1167 = vmatmul.mubr.f32.gmra.mrb[0].mxu0 %v959
  %v1168 = vpop.f32.mrb[0].mxu0
  %v1169 = vadd.f32 %v1030, %v1168
  %v1170 = vpop.f32.mrb[0].mxu0
  %1171 = vmatprep.mubr.f32.mxu0 0.0
  %1172 = vmatmul.mubr.f32.gmra.mrb[0].mxu0 %v960
  %v1173 = vpop.f32.mrb[0].mxu0
  %v1174 = vadd.f32 %v1030, %v1173
  %v1175 = vpop.f32.mrb[0].mxu0
  %1176 = vmatprep.mubr.f32.mxu0 0.0
  %1177 = vmatmul.mubr.f32.gmra.mrb[0].mxu0 %v961
  %v1178 = vpop.f32.mrb[0].mxu0
  %v1179 = vadd.f32 %v1030, %v1178
  %v1180 = vpop.f32.mrb[0].mxu0
  %1181 = vmatprep.mubr.f32.mxu0 0.0
  %1182 = vmatmul.mubr.f32.gmra.mrb[0].mxu0 %v962
  %v1183 = vpop.f32.mrb[0].mxu0
  %v1184 = vadd.f32 %v1030, %v1183
  %v1185 = vpop.f32.mrb[0].mxu0
  %1186 = vmatprep.mubr.f32.mxu0 0.0
  %1187 = vmatmul.mubr.f32.gmra.mrb[0].mxu0 %v963
  %v1188 = vpop.f32.mrb[0].mxu0
  %v1189 = vadd.f32 %v1030, %v1188
  %v1190 = vpop.f32.mrb[0].mxu0
  %1191 = vmatprep.mubr.f32.mxu0 0.0
  %1192 = vmatmul.mubr.f32.gmra.mrb[0].mxu0 %v964
  %v1193 = vpop.f32.mrb[0].mxu0
  %v1194 = vadd.f32 %v1030, %v1193
  %v1195 = vpop.f32.mrb[0].mxu0
  %1196 = vmatprep.mubr.f32.mxu0 0.0
  %1197 = vmatmul.mubr.f32.gmra.mrb[0].mxu0 %v965
  %v1198 = vpop.f32.mrb[0].mxu0
  %v1199 = vadd.f32 %v1030, %v1198
  %v1200 = vpop.f32.mrb[0].mxu0
  %1201 = vmatprep.mubr.f32.mxu0 0.0
  %1202 = vmatmul.mubr.f32.gmra.mrb[0].mxu0 %v966
  %v1203 = vpop.f32.mrb[0].mxu0
  %v1204 = vadd.f32 %v1030, %v1203
  %v1205 = vpop.f32.mrb[0].mxu0
  %1206 = vmatprep.mubr.f32.mxu0 0.0
  %1207 = vmatmul.mubr.f32.gmra.mrb[0].mxu0 %v967
  %v1208 = vpop.f32.mrb[0].mxu0
  %v1209 = vadd.f32 %v1030, %v1208
  %v1210 = vpop.f32.mrb[0].mxu0
  %1211 = vmatprep.mubr.f32.mxu0 0.0
  %1212 = vmatmul.mubr.f32.gmra.mrb[0].mxu0 %v968
  %v1213 = vpop.f32.mrb[0].mxu0
  %v1214 = vadd.f32 %v1030, %v1213
  %v1215 = vpop.f32.mrb[0].mxu0
  %1216 = vmatprep.mubr.f32.mxu0 0.0
  %1217 = vmatmul.mubr.f32.gmra.mrb[0].mxu0 %v969
  %v1218 = vpop.f32.mrb[0].mxu0
  %v1219 = vadd.f32 %v1030, %v1218
  %v1220 = vpop.f32.mrb[0].mxu0
  %1221 = vmatprep.mubr.f32.mxu0 0.0
  %1222 = vmatmul.mubr.f32.gmra.mrb[0].mxu0 %v970
  %v1223 = vpop.f32.mrb[0].mxu0
  %v1224 = vadd.f32 %v1030, %v1223
  %v1225 = vpop.f32.mrb[0].mxu0
  %1226 = vmatprep.mubr.f32.mxu0 0.0
  %1227 = vmatmul.mubr.f32.gmra.mrb[0].mxu0 %v971
  %v1228 = vpop.f32.mrb[0].mxu0
  %v1229 = vadd.f32 %v1030, %v1228
  %v1230 = vpop.f32.mrb[0].mxu0
  %1231 = vmatprep.mubr.f32.mxu0 0.0
  %1232 = vmatmul.mubr.f32.gmra.mrb[0].mxu0 %v972
  %v1233 = vpop.f32.mrb[0].mxu0
  %v1234 = vadd.f32 %v1030, %v1233
  %v1235 = vpop.f32.mrb[0].mxu0
  %1236 = vmatprep.mubr.f32.mxu0 0.0
  %1237 = vmatmul.mubr.f32.gmra.mrb[0].mxu0 %v973
  %v1238 = vpop.f32.mrb[0].mxu0
  %v1239 = vadd.f32 %v1030, %v1238
  %v1240 = vpop.f32.mrb[0].mxu0
  %1241 = vmatprep.mubr.f32.mxu0 0.0
  %1242 = vmatmul.mubr.f32.gmra.mrb[0].mxu0 %v974
  %v1243 = vpop.f32.mrb[0].mxu0
  %v1244 = vadd.f32 %v1030, %v1243
  %v1245 = vpop.f32.mrb[0].mxu0
  %1246 = vmatprep.mubr.f32.mxu0 0.0
  %1247 = vmatmul.mubr.f32.gmra.mrb[0].mxu0 %v975
  %v1248 = vpop.f32.mrb[0].mxu0
  %v1249 = vadd.f32 %v1030, %v1248
  %v1250 = vpop.f32.mrb[0].mxu0
  %1251 = vmatprep.mubr.f32.mxu0 0.0
  %1252 = vmatmul.mubr.f32.gmra.mrb[0].mxu0 %v976
  %v1253 = vpop.f32.mrb[0].mxu0
  %v1254 = vadd.f32 %v1030, %v1253
  %v1255 = vpop.f32.mrb[0].mxu0
  %1256 = vmatprep.mubr.f32.mxu0 0.0
  %1257 = vmatmul.mubr.f32.gmra.mrb[0].mxu0 %v977
  %v1258 = vpop.f32.mrb[0].mxu0
  %v1259 = vadd.f32 %v1030, %v1258
  %v1260 = vpop.f32.mrb[0].mxu0
  %1261 = vmatprep.mubr.f32.mxu0 0.0
  %1262 = vmatmul.mubr.f32.gmra.mrb[0].mxu0 %v978
  %v1263 = vpop.f32.mrb[0].mxu0
  %v1264 = vadd.f32 %v1030, %v1263
  %v1265 = vpop.f32.mrb[0].mxu0
  %1266 = vmatprep.mubr.f32.mxu0 0.0
  %1267 = vmatmul.mubr.f32.gmra.mrb[0].mxu0 %v979
  %v1268 = vpop.f32.mrb[0].mxu0
  %v1269 = vadd.f32 %v1030, %v1268
  %v1270 = vpop.f32.mrb[0].mxu0
  %1271 = vmatprep.mubr.f32.mxu0 0.0
  %1272 = vmatmul.mubr.f32.gmra.mrb[0].mxu0 %v980
  %v1273 = vpop.f32.mrb[0].mxu0
  %v1274 = vadd.f32 %v1030, %v1273
  %v1275 = vpop.f32.mrb[0].mxu0
  %1276 = vmatprep.mubr.f32.mxu0 0.0
  %1277 = vmatmul.mubr.f32.gmra.mrb[0].mxu0 %v981
  %v1278 = vpop.f32.mrb[0].mxu0
  %v1279 = vadd.f32 %v1030, %v1278
  %v1280 = vpop.f32.mrb[0].mxu0
  %1281 = vmatprep.mubr.f32.mxu0 0.0
  %1282 = vmatmul.mubr.f32.gmra.mrb[0].mxu0 %v982
  %v1283 = vpop.f32.mrb[0].mxu0
  %v1284 = vadd.f32 %v1030, %v1283
  %v1285 = vpop.f32.mrb[0].mxu0
  %1286 = vmatprep.mubr.f32.mxu0 0.0
  %1287 = vmatmul.mubr.f32.gmra.mrb[0].mxu0 %v983
  %v1288 = vpop.f32.mrb[0].mxu0
  %v1289 = vadd.f32 %v1030, %v1288
  %v1290 = vpop.f32.mrb[0].mxu0
  %1291 = vmatprep.mubr.f32.mxu0 0.0
  %1292 = vmatmul.mubr.f32.gmra.mrb[0].mxu0 %v984
  %v1293 = vpop.f32.mrb[0].mxu0
  %v1294 = vadd.f32 %v1030, %v1293
  %v1295 = vpop.f32.mrb[0].mxu0
  %1296 = vmatprep.mubr.f32.mxu0 0.0
  %1297 = vmatmul.mubr.f32.gmra.mrb[0].mxu0 %v985
  %v1298 = vpop.f32.mrb[0].mxu0
  %v1299 = vadd.f32 %v1030, %v1298
  %v1300 = vpop.f32.mrb[0].mxu0
  %1301 = vmatprep.mubr.f32.mxu0 0.0
  %1302 = vmatmul.mubr.f32.gmra.mrb[0].mxu0 %v986
  %v1303 = vpop.f32.mrb[0].mxu0
  %v1304 = vadd.f32 %v1030, %v1303
  %v1305 = vpop.f32.mrb[0].mxu0
  %1306 = vmatprep.mubr.f32.mxu0 0.0
  %1307 = vmatmul.mubr.f32.gmra.mrb[0].mxu0 %v987
  %v1308 = vpop.f32.mrb[0].mxu0
  %v1309 = vadd.f32 %v1030, %v1308
  %v1310 = vpop.f32.mrb[0].mxu0
  %1311 = vmatprep.mubr.f32.mxu0 0.0
  %1312 = vmatmul.mubr.f32.gmra.mrb[0].mxu0 %v988
  %v1313 = vpop.f32.mrb[0].mxu0
  %v1314 = vadd.f32 %v1030, %v1313
  %v1315 = vpop.f32.mrb[0].mxu0
  %1316 = vmatprep.mubr.f32.mxu0 0.0
  %1317 = vmatmul.mubr.f32.gmra.mrb[0].mxu0 %v989
  %v1318 = vpop.f32.mrb[0].mxu0
  %v1319 = vadd.f32 %v1030, %v1318
  %v1320 = vpop.f32.mrb[0].mxu0
  %1321 = vmatprep.mubr.f32.mxu0 0.0
  %1322 = vmatmul.mubr.f32.gmra.mrb[0].mxu0 %v990
  %v1323 = vpop.f32.mrb[0].mxu0
  %v1324 = vadd.f32 %v1030, %v1323
  %v1325 = vpop.f32.mrb[0].mxu0
  %1326 = vmatprep.mubr.f32.mxu0 0.0
  %1327 = vmatmul.mubr.f32.gmra.mrb[0].mxu0 %v991
  %v1328 = vpop.f32.mrb[0].mxu0
  %v1329 = vadd.f32 %v1030, %v1328
  %v1330 = vpop.f32.mrb[0].mxu0
  %1331 = vmatprep.mubr.f32.mxu0 0.0
  %1332 = vmatmul.mubr.f32.gmra.mrb[0].mxu0 %v992
  %v1333 = vpop.f32.mrb[0].mxu0
  %v1334 = vadd.f32 %v1030, %v1333
  %v1335 = vpop.f32.mrb[0].mxu0
  %1336 = vmatprep.mubr.f32.mxu0 0.0
  %1337 = vmatmul.mubr.f32.gmra.mrb[0].mxu0 %v993
  %v1338 = vpop.f32.mrb[0].mxu0
  %v1339 = vadd.f32 %v1030, %v1338
  %v1340 = vpop.f32.mrb[0].mxu0
  %1341 = vmatprep.mubr.f32.mxu0 0.0
  %1342 = vmatmul.mubr.f32.gmra.mrb[0].mxu0 %v994
  %v1343 = vpop.f32.mrb[0].mxu0
  %v1344 = vadd.f32 %v1030, %v1343
  %v1345 = vpop.f32.mrb[0].mxu0
  %1346 = vmatprep.mubr.f32.mxu0 0.0
  %1347 = vmatmul.mubr.f32.gmra.mrb[0].mxu0 %v995
  %v1348 = vpop.f32.mrb[0].mxu0
  %v1349 = vadd.f32 %v1030, %v1348
  %v1350 = vpop.f32.mrb[0].mxu0
  %1351 = vmatprep.mubr.f32.mxu0 0.0
  %1352 = vmatmul.mubr.f32.gmra.mrb[0].mxu0 %v996
  %v1353 = vpop.f32.mrb[0].mxu0
  %v1354 = vadd.f32 %v1030, %v1353
  %v1355 = vpop.f32.mrb[0].mxu0
  %1356 = vmatprep.mubr.f32.mxu0 0.0
  %1357 = vmatmul.mubr.f32.gmra.mrb[0].mxu0 %v997
  %v1358 = vpop.f32.mrb[0].mxu0
  %v1359 = vadd.f32 %v1030, %v1358
  %v1360 = vpop.f32.mrb[0].mxu0
  %1361 = vmatprep.mubr.f32.mxu0 0.0
  %1362 = vmatmul.mubr.f32.gmra.mrb[0].mxu0 %v998
  %v1363 = vpop.f32.mrb[0].mxu0
  %v1364 = vadd.f32 %v1030, %v1363
  %v1365 = vpop.f32.mrb[0].mxu0
  %1366 = vmatprep.mubr.f32.mxu0 0.0
  %1367 = vmatmul.mubr.f32.gmra.mrb[0].mxu0 %v999
  %v1368 = vpop.f32.mrb[0].mxu0
  %v1369 = vadd.f32 %v1030, %v1368
  %v1370 = vpop.f32.mrb[0].mxu0
  %1371 = vmatprep.mubr.f32.mxu0 0.0
  %1372 = vmatmul.mubr.f32.gmra.mrb[0].mxu0 %v1000
  %v1373 = vpop.f32.mrb[0].mxu0
  %v1374 = vadd.f32 %v1030, %v1373
  %v1375 = vpop.f32.mrb[0].mxu0
  %1376 = vmatprep.mubr.f32.mxu0 0.0
  %1377 = vmatmul.mubr.f32.gmra.mrb[0].mxu0 %v1001
  %v1378 = vpop.f32.mrb[0].mxu0
  %v1379 = vadd.f32 %v1030, %v1378
  %v1380 = vpop.f32.mrb[0].mxu0
  %1381 = vmatprep.mubr.f32.mxu0 0.0
  %1382 = vmatmul.mubr.f32.gmra.mrb[0].mxu0 %v1002
  %v1383 = vpop.f32.mrb[0].mxu0
  %v1384 = vadd.f32 %v1030, %v1383
  %v1385 = vpop.f32.mrb[0].mxu0
  %1386 = vmatprep.mubr.f32.mxu0 0.0
  %1387 = vmatmul.mubr.f32.gmra.mrb[0].mxu0 %v1003
  %v1388 = vpop.f32.mrb[0].mxu0
  %v1389 = vadd.f32 %v1030, %v1388
  %v1390 = vpop.f32.mrb[0].mxu0
  %1391 = vmatprep.mubr.f32.mxu0 0.0
  %1392 = vmatmul.mubr.f32.gmra.mrb[0].mxu0 %v1004
  %v1393 = vpop.f32.mrb[0].mxu0
  %v1394 = vadd.f32 %v1030, %v1393
  %v1395 = vpop.f32.mrb[0].mxu0
  %1396 = vmatprep.mubr.f32.mxu0 0.0
  %1397 = vmatmul.mubr.f32.gmra.mrb[0].mxu0 %v1005
  %v1398 = vpop.f32.mrb[0].mxu0
  %v1399 = vadd.f32 %v1030, %v1398
  %v1400 = vpop.f32.mrb[0].mxu0
  %1401 = vmatprep.mubr.f32.mxu0 0.0
  %1402 = vmatmul.mubr.f32.gmra.mrb[0].mxu0 %v1006
  %v1403 = vpop.f32.mrb[0].mxu0
  %v1404 = vadd.f32 %v1030, %v1403
  %v1405 = vpop.f32.mrb[0].mxu0
  %1406 = vmatprep.mubr.f32.mxu0 0.0
  %1407 = vmatmul.mubr.f32.gmra.mrb[0].mxu0 %v1007
  %v1408 = vpop.f32.mrb[0].mxu0
  %v1409 = vadd.f32 %v1030, %v1408
  %v1410 = vpop.f32.mrb[0].mxu0
  %1411 = vmatprep.mubr.f32.mxu0 0.0
  %1412 = vmatmul.mubr.f32.gmra.mrb[0].mxu0 %v1008
  %v1413 = vpop.f32.mrb[0].mxu0
  %v1414 = vadd.f32 %v1030, %v1413
  %v1415 = vpop.f32.mrb[0].mxu0
  %1416 = vdwg.mxu0
  %v1417 = vmax.f32 %v1099, 0.0
  %v1418 = vmax.f32 %v1104, 0.0
  %v1419 = vmax.f32 %v1109, 0.0
  %v1420 = vmax.f32 %v1114, 0.0
  %v1421 = vmax.f32 %v1119, 0.0
  %v1422 = vmax.f32 %v1124, 0.0
  %v1423 = vmax.f32 %v1129, 0.0
  %v1424 = vmax.f32 %v1134, 0.0
  %v1425 = vmax.f32 %v1139, 0.0
  %v1426 = vmax.f32 %v1144, 0.0
  %v1427 = vmax.f32 %v1149, 0.0
  %v1428 = vmax.f32 %v1154, 0.0
  %v1429 = vmax.f32 %v1159, 0.0
  %v1430 = vmax.f32 %v1164, 0.0
  %v1431 = vmax.f32 %v1169, 0.0
  %v1432 = vmax.f32 %v1174, 0.0
  %v1433 = vmax.f32 %v1179, 0.0
  %v1434 = vmax.f32 %v1184, 0.0
  %v1435 = vmax.f32 %v1189, 0.0
  %v1436 = vmax.f32 %v1194, 0.0
  %v1437 = vmax.f32 %v1199, 0.0
  %v1438 = vmax.f32 %v1204, 0.0
  %v1439 = vmax.f32 %v1209, 0.0
  %v1440 = vmax.f32 %v1214, 0.0
  %v1441 = vmax.f32 %v1219, 0.0
  %v1442 = vmax.f32 %v1224, 0.0
  %v1443 = vmax.f32 %v1229, 0.0
  %v1444 = vmax.f32 %v1234, 0.0
  %v1445 = vmax.f32 %v1239, 0.0
  %v1446 = vmax.f32 %v1244, 0.0
  %v1447 = vmax.f32 %v1249, 0.0
  %v1448 = vmax.f32 %v1254, 0.0
  %v1449 = vmax.f32 %v1259, 0.0
  %v1450 = vmax.f32 %v1264, 0.0
  %v1451 = vmax.f32 %v1269, 0.0
  %v1452 = vmax.f32 %v1274, 0.0
  %v1453 = vmax.f32 %v1279, 0.0
  %v1454 = vmax.f32 %v1284, 0.0
  %v1455 = vmax.f32 %v1289, 0.0
  %v1456 = vmax.f32 %v1294, 0.0
  %v1457 = vmax.f32 %v1299, 0.0
  %v1458 = vmax.f32 %v1304, 0.0
  %v1459 = vmax.f32 %v1309, 0.0
  %v1460 = vmax.f32 %v1314, 0.0
  %v1461 = vmax.f32 %v1319, 0.0
  %v1462 = vmax.f32 %v1324, 0.0
  %v1463 = vmax.f32 %v1329, 0.0
  %v1464 = vmax.f32 %v1334, 0.0
  %v1465 = vmax.f32 %v1339, 0.0
  %v1466 = vmax.f32 %v1344, 0.0
  %v1467 = vmax.f32 %v1349, 0.0
  %v1468 = vmax.f32 %v1354, 0.0
  %v1469 = vmax.f32 %v1359, 0.0
  %v1470 = vmax.f32 %v1364, 0.0
  %v1471 = vmax.f32 %v1369, 0.0
  %v1472 = vmax.f32 %v1374, 0.0
  %v1473 = vmax.f32 %v1379, 0.0
  %v1474 = vmax.f32 %v1384, 0.0
  %v1475 = vmax.f32 %v1389, 0.0
  %v1476 = vmax.f32 %v1394, 0.0
  %v1477 = vmax.f32 %v1399, 0.0
  %v1478 = vmax.f32 %v1404, 0.0
  %v1479 = vmax.f32 %v1409, 0.0
  %v1480 = vmax.f32 %v1414, 0.0
  %v1481 = vld [vmem:[%s5] sm:$0xff]
  %v1482 = vld [vmem:[%s5 + $0x8] sm:$0xff]
  %v1483 = vld [vmem:[%s5 + $0x10] sm:$0xff]
  %v1484 = vld [vmem:[%s5 + $0x18] sm:$0xff]
  %v1485 = vld [vmem:[%s5 + $0x20] sm:$0xff]
  %v1486 = vld [vmem:[%s5 + $0x28] sm:$0xff]
  %v1487 = vld [vmem:[%s5 + $0x30] sm:$0xff]
  %v1488 = vld [vmem:[%s5 + $0x38] sm:$0xff]
  %v1489 = vld [vmem:[%s5 + $0x40] sm:$0xff]
  %v1490 = vld [vmem:[%s5 + $0x48] sm:$0xff]
  %v1491 = vld [vmem:[%s5 + $0x50] sm:$0xff]
  %v1492 = vld [vmem:[%s5 + $0x58] sm:$0xff]
  %v1493 = vld [vmem:[%s5 + $0x60] sm:$0xff]
  %v1494 = vld [vmem:[%s5 + $0x68] sm:$0xff]
  %v1495 = vld [vmem:[%s5 + $0x70] sm:$0xff]
  %v1496 = vld [vmem:[%s5 + $0x78] sm:$0xff]
  %v1497 = vld [vmem:[%s6] sm:$0x1]
  %v1499 = vlaneseq
  %v1500 = vshrl.u32 %v1499, 7
  %v1501 = vsub.s32 0, %v1500
  %v1502 = vrot.slane %v1497, %v1501
  %1504 = vmatprep.subr.mxu0 0.0
  %1505 = vmatpush1.msra.mxu0 %v1481
  %1506 = vmatprep.subr.mxu0 0.0
  %1507 = vmatpush1.msra.mxu0 %v1482
  %1508 = vmatprep.subr.mxu0 0.0
  %1509 = vmatpush1.msra.mxu0 %v1483
  %1510 = vmatprep.subr.mxu0 0.0
  %1511 = vmatpush1.msra.mxu0 %v1484
  %1512 = vmatprep.subr.mxu0 0.0
  %1513 = vmatpush1.msra.mxu0 %v1485
  %1514 = vmatprep.subr.mxu0 0.0
  %1515 = vmatpush1.msra.mxu0 %v1486
  %1516 = vmatprep.subr.mxu0 0.0
  %1517 = vmatpush1.msra.mxu0 %v1487
  %1518 = vmatprep.subr.mxu0 0.0
  %1519 = vmatpush1.msra.mxu0 %v1488
  %1520 = vmatprep.subr.mxu0 0.0
  %1521 = vmatpush1.msra.mxu0 %v1489
  %1522 = vmatprep.subr.mxu0 0.0
  %1523 = vmatpush1.msra.mxu0 %v1490
  %1524 = vmatprep.subr.mxu0 0.0
  %1525 = vmatpush1.msra.mxu0 %v1491
  %1526 = vmatprep.subr.mxu0 0.0
  %1527 = vmatpush1.msra.mxu0 %v1492
  %1528 = vmatprep.subr.mxu0 0.0
  %1529 = vmatpush1.msra.mxu0 %v1493
  %1530 = vmatprep.subr.mxu0 0.0
  %1531 = vmatpush1.msra.mxu0 %v1494
  %1532 = vmatprep.subr.mxu0 0.0
  %1533 = vmatpush1.msra.mxu0 %v1495
  %1534 = vmatprep.subr.mxu0 0.0
  %1535 = vmatpush1.msra.mxu0 %v1496
  %1536 = vmatprep.subr.mxu0 0.0
  %1537 = vmatpush1.msra.mxu0 0.0
  %1538 = vmatprep.subr.mxu0 0.0
  %1539 = vmatpush1.msra.mxu0 0.0
  %1540 = vmatprep.subr.mxu0 0.0
  %1541 = vmatpush1.msra.mxu0 0.0
  %1542 = vmatprep.subr.mxu0 0.0
  %1543 = vmatpush1.msra.mxu0 0.0
  %1544 = vmatprep.subr.mxu0 0.0
  %1545 = vmatpush1.msra.mxu0 0.0
  %1546 = vmatprep.subr.mxu0 0.0
  %1547 = vmatpush1.msra.mxu0 0.0
  %1548 = vmatprep.subr.mxu0 0.0
  %1549 = vmatpush1.msra.mxu0 0.0
  %1550 = vmatprep.subr.mxu0 0.0
  %1551 = vmatpush1.msra.mxu0 0.0
  %1552 = vmatprep.subr.mxu0 0.0
  %1553 = vmatpush1.msra.mxu0 0.0
  %1554 = vmatprep.subr.mxu0 0.0
  %1555 = vmatpush1.msra.mxu0 0.0
  %1556 = vmatprep.subr.mxu0 0.0
  %1557 = vmatpush1.msra.mxu0 0.0
  %1558 = vmatprep.subr.mxu0 0.0
  %1559 = vmatpush1.msra.mxu0 0.0
  %1560 = vmatprep.subr.mxu0 0.0
  %1561 = vmatpush1.msra.mxu0 0.0
  %1562 = vmatprep.subr.mxu0 0.0
  %1563 = vmatpush1.msra.mxu0 0.0
  %1564 = vmatprep.subr.mxu0 0.0
  %1565 = vmatpush1.msra.mxu0 0.0
  %1566 = vmatprep.subr.mxu0 0.0
  %1567 = vmatpush1.msra.mxu0 0.0
  %1568 = vmatprep.mubr.f32.mxu0 0.0
  %1569 = vmatmul.mubr.f32.gmra.mrb[0].mxu0 %v1417
  %v1570 = vpop.f32.mrb[0].mxu0
  %v1571 = vadd.f32 %v1502, %v1570
  %v1572 = vpop.f32.mrb[0].mxu0
  %1573 = vmatprep.mubr.f32.mxu0 0.0
  %1574 = vmatmul.mubr.f32.gmra.mrb[0].mxu0 %v1418
  %v1575 = vpop.f32.mrb[0].mxu0
  %v1576 = vadd.f32 %v1502, %v1575
  %v1577 = vpop.f32.mrb[0].mxu0
  %1578 = vmatprep.mubr.f32.mxu0 0.0
  %1579 = vmatmul.mubr.f32.gmra.mrb[0].mxu0 %v1419
  %v1580 = vpop.f32.mrb[0].mxu0
  %v1581 = vadd.f32 %v1502, %v1580
  %v1582 = vpop.f32.mrb[0].mxu0
  %1583 = vmatprep.mubr.f32.mxu0 0.0
  %1584 = vmatmul.mubr.f32.gmra.mrb[0].mxu0 %v1420
  %v1585 = vpop.f32.mrb[0].mxu0
  %v1586 = vadd.f32 %v1502, %v1585
  %v1587 = vpop.f32.mrb[0].mxu0
  %1588 = vmatprep.mubr.f32.mxu0 0.0
  %1589 = vmatmul.mubr.f32.gmra.mrb[0].mxu0 %v1421
  %v1590 = vpop.f32.mrb[0].mxu0
  %v1591 = vadd.f32 %v1502, %v1590
  %v1592 = vpop.f32.mrb[0].mxu0
  %1593 = vmatprep.mubr.f32.mxu0 0.0
  %1594 = vmatmul.mubr.f32.gmra.mrb[0].mxu0 %v1422
  %v1595 = vpop.f32.mrb[0].mxu0
  %v1596 = vadd.f32 %v1502, %v1595
  %v1597 = vpop.f32.mrb[0].mxu0
  %1598 = vmatprep.mubr.f32.mxu0 0.0
  %1599 = vmatmul.mubr.f32.gmra.mrb[0].mxu0 %v1423
  %v1600 = vpop.f32.mrb[0].mxu0
  %v1601 = vadd.f32 %v1502, %v1600
  %v1602 = vpop.f32.mrb[0].mxu0
  %1603 = vmatprep.mubr.f32.mxu0 0.0
  %1604 = vmatmul.mubr.f32.gmra.mrb[0].mxu0 %v1424
  %v1605 = vpop.f32.mrb[0].mxu0
  %v1606 = vadd.f32 %v1502, %v1605
  %v1607 = vpop.f32.mrb[0].mxu0
  %1608 = vmatprep.mubr.f32.mxu0 0.0
  %1609 = vmatmul.mubr.f32.gmra.mrb[0].mxu0 %v1425
  %v1610 = vpop.f32.mrb[0].mxu0
  %v1611 = vadd.f32 %v1502, %v1610
  %v1612 = vpop.f32.mrb[0].mxu0
  %1613 = vmatprep.mubr.f32.mxu0 0.0
  %1614 = vmatmul.mubr.f32.gmra.mrb[0].mxu0 %v1426
  %v1615 = vpop.f32.mrb[0].mxu0
  %v1616 = vadd.f32 %v1502, %v1615
  %v1617 = vpop.f32.mrb[0].mxu0
  %1618 = vmatprep.mubr.f32.mxu0 0.0
  %1619 = vmatmul.mubr.f32.gmra.mrb[0].mxu0 %v1427
  %v1620 = vpop.f32.mrb[0].mxu0
  %v1621 = vadd.f32 %v1502, %v1620
  %v1622 = vpop.f32.mrb[0].mxu0
  %1623 = vmatprep.mubr.f32.mxu0 0.0
  %1624 = vmatmul.mubr.f32.gmra.mrb[0].mxu0 %v1428
  %v1625 = vpop.f32.mrb[0].mxu0
  %v1626 = vadd.f32 %v1502, %v1625
  %v1627 = vpop.f32.mrb[0].mxu0
  %1628 = vmatprep.mubr.f32.mxu0 0.0
  %1629 = vmatmul.mubr.f32.gmra.mrb[0].mxu0 %v1429
  %v1630 = vpop.f32.mrb[0].mxu0
  %v1631 = vadd.f32 %v1502, %v1630
  %v1632 = vpop.f32.mrb[0].mxu0
  %1633 = vmatprep.mubr.f32.mxu0 0.0
  %1634 = vmatmul.mubr.f32.gmra.mrb[0].mxu0 %v1430
  %v1635 = vpop.f32.mrb[0].mxu0
  %v1636 = vadd.f32 %v1502, %v1635
  %v1637 = vpop.f32.mrb[0].mxu0
  %1638 = vmatprep.mubr.f32.mxu0 0.0
  %1639 = vmatmul.mubr.f32.gmra.mrb[0].mxu0 %v1431
  %v1640 = vpop.f32.mrb[0].mxu0
  %v1641 = vadd.f32 %v1502, %v1640
  %v1642 = vpop.f32.mrb[0].mxu0
  %1643 = vmatprep.mubr.f32.mxu0 0.0
  %1644 = vmatmul.mubr.f32.gmra.mrb[0].mxu0 %v1432
  %v1645 = vpop.f32.mrb[0].mxu0
  %v1646 = vadd.f32 %v1502, %v1645
  %v1647 = vpop.f32.mrb[0].mxu0
  %1648 = vmatprep.mubr.f32.mxu0 0.0
  %1649 = vmatmul.mubr.f32.gmra.mrb[0].mxu0 %v1433
  %v1650 = vpop.f32.mrb[0].mxu0
  %v1651 = vadd.f32 %v1502, %v1650
  %v1652 = vpop.f32.mrb[0].mxu0
  %1653 = vmatprep.mubr.f32.mxu0 0.0
  %1654 = vmatmul.mubr.f32.gmra.mrb[0].mxu0 %v1434
  %v1655 = vpop.f32.mrb[0].mxu0
  %v1656 = vadd.f32 %v1502, %v1655
  %v1657 = vpop.f32.mrb[0].mxu0
  %1658 = vmatprep.mubr.f32.mxu0 0.0
  %1659 = vmatmul.mubr.f32.gmra.mrb[0].mxu0 %v1435
  %v1660 = vpop.f32.mrb[0].mxu0
  %v1661 = vadd.f32 %v1502, %v1660
  %v1662 = vpop.f32.mrb[0].mxu0
  %1663 = vmatprep.mubr.f32.mxu0 0.0
  %1664 = vmatmul.mubr.f32.gmra.mrb[0].mxu0 %v1436
  %v1665 = vpop.f32.mrb[0].mxu0
  %v1666 = vadd.f32 %v1502, %v1665
  %v1667 = vpop.f32.mrb[0].mxu0
  %1668 = vmatprep.mubr.f32.mxu0 0.0
  %1669 = vmatmul.mubr.f32.gmra.mrb[0].mxu0 %v1437
  %v1670 = vpop.f32.mrb[0].mxu0
  %v1671 = vadd.f32 %v1502, %v1670
  %v1672 = vpop.f32.mrb[0].mxu0
  %1673 = vmatprep.mubr.f32.mxu0 0.0
  %1674 = vmatmul.mubr.f32.gmra.mrb[0].mxu0 %v1438
  %v1675 = vpop.f32.mrb[0].mxu0
  %v1676 = vadd.f32 %v1502, %v1675
  %v1677 = vpop.f32.mrb[0].mxu0
  %1678 = vmatprep.mubr.f32.mxu0 0.0
  %1679 = vmatmul.mubr.f32.gmra.mrb[0].mxu0 %v1439
  %v1680 = vpop.f32.mrb[0].mxu0
  %v1681 = vadd.f32 %v1502, %v1680
  %v1682 = vpop.f32.mrb[0].mxu0
  %1683 = vmatprep.mubr.f32.mxu0 0.0
  %1684 = vmatmul.mubr.f32.gmra.mrb[0].mxu0 %v1440
  %v1685 = vpop.f32.mrb[0].mxu0
  %v1686 = vadd.f32 %v1502, %v1685
  %v1687 = vpop.f32.mrb[0].mxu0
  %1688 = vmatprep.mubr.f32.mxu0 0.0
  %1689 = vmatmul.mubr.f32.gmra.mrb[0].mxu0 %v1441
  %v1690 = vpop.f32.mrb[0].mxu0
  %v1691 = vadd.f32 %v1502, %v1690
  %v1692 = vpop.f32.mrb[0].mxu0
  %1693 = vmatprep.mubr.f32.mxu0 0.0
  %1694 = vmatmul.mubr.f32.gmra.mrb[0].mxu0 %v1442
  %v1695 = vpop.f32.mrb[0].mxu0
  %v1696 = vadd.f32 %v1502, %v1695
  %v1697 = vpop.f32.mrb[0].mxu0
  %1698 = vmatprep.mubr.f32.mxu0 0.0
  %1699 = vmatmul.mubr.f32.gmra.mrb[0].mxu0 %v1443
  %v1700 = vpop.f32.mrb[0].mxu0
  %v1701 = vadd.f32 %v1502, %v1700
  %v1702 = vpop.f32.mrb[0].mxu0
  %1703 = vmatprep.mubr.f32.mxu0 0.0
  %1704 = vmatmul.mubr.f32.gmra.mrb[0].mxu0 %v1444
  %v1705 = vpop.f32.mrb[0].mxu0
  %v1706 = vadd.f32 %v1502, %v1705
  %v1707 = vpop.f32.mrb[0].mxu0
  %1708 = vmatprep.mubr.f32.mxu0 0.0
  %1709 = vmatmul.mubr.f32.gmra.mrb[0].mxu0 %v1445
  %v1710 = vpop.f32.mrb[0].mxu0
  %v1711 = vadd.f32 %v1502, %v1710
  %v1712 = vpop.f32.mrb[0].mxu0
  %1713 = vmatprep.mubr.f32.mxu0 0.0
  %1714 = vmatmul.mubr.f32.gmra.mrb[0].mxu0 %v1446
  %v1715 = vpop.f32.mrb[0].mxu0
  %v1716 = vadd.f32 %v1502, %v1715
  %v1717 = vpop.f32.mrb[0].mxu0
  %1718 = vmatprep.mubr.f32.mxu0 0.0
  %1719 = vmatmul.mubr.f32.gmra.mrb[0].mxu0 %v1447
  %v1720 = vpop.f32.mrb[0].mxu0
  %v1721 = vadd.f32 %v1502, %v1720
  %v1722 = vpop.f32.mrb[0].mxu0
  %1723 = vmatprep.mubr.f32.mxu0 0.0
  %1724 = vmatmul.mubr.f32.gmra.mrb[0].mxu0 %v1448
  %v1725 = vpop.f32.mrb[0].mxu0
  %v1726 = vadd.f32 %v1502, %v1725
  %v1727 = vpop.f32.mrb[0].mxu0
  %1728 = vmatprep.mubr.f32.mxu0 0.0
  %1729 = vmatmul.mubr.f32.gmra.mrb[0].mxu0 %v1449
  %v1730 = vpop.f32.mrb[0].mxu0
  %v1731 = vadd.f32 %v1502, %v1730
  %v1732 = vpop.f32.mrb[0].mxu0
  %1733 = vmatprep.mubr.f32.mxu0 0.0
  %1734 = vmatmul.mubr.f32.gmra.mrb[0].mxu0 %v1450
  %v1735 = vpop.f32.mrb[0].mxu0
  %v1736 = vadd.f32 %v1502, %v1735
  %v1737 = vpop.f32.mrb[0].mxu0
  %1738 = vmatprep.mubr.f32.mxu0 0.0
  %1739 = vmatmul.mubr.f32.gmra.mrb[0].mxu0 %v1451
  %v1740 = vpop.f32.mrb[0].mxu0
  %v1741 = vadd.f32 %v1502, %v1740
  %v1742 = vpop.f32.mrb[0].mxu0
  %1743 = vmatprep.mubr.f32.mxu0 0.0
  %1744 = vmatmul.mubr.f32.gmra.mrb[0].mxu0 %v1452
  %v1745 = vpop.f32.mrb[0].mxu0
  %v1746 = vadd.f32 %v1502, %v1745
  %v1747 = vpop.f32.mrb[0].mxu0
  %1748 = vmatprep.mubr.f32.mxu0 0.0
  %1749 = vmatmul.mubr.f32.gmra.mrb[0].mxu0 %v1453
  %v1750 = vpop.f32.mrb[0].mxu0
  %v1751 = vadd.f32 %v1502, %v1750
  %v1752 = vpop.f32.mrb[0].mxu0
  %1753 = vmatprep.mubr.f32.mxu0 0.0
  %1754 = vmatmul.mubr.f32.gmra.mrb[0].mxu0 %v1454
  %v1755 = vpop.f32.mrb[0].mxu0
  %v1756 = vadd.f32 %v1502, %v1755
  %v1757 = vpop.f32.mrb[0].mxu0
  %1758 = vmatprep.mubr.f32.mxu0 0.0
  %1759 = vmatmul.mubr.f32.gmra.mrb[0].mxu0 %v1455
  %v1760 = vpop.f32.mrb[0].mxu0
  %v1761 = vadd.f32 %v1502, %v1760
  %v1762 = vpop.f32.mrb[0].mxu0
  %1763 = vmatprep.mubr.f32.mxu0 0.0
  %1764 = vmatmul.mubr.f32.gmra.mrb[0].mxu0 %v1456
  %v1765 = vpop.f32.mrb[0].mxu0
  %v1766 = vadd.f32 %v1502, %v1765
  %v1767 = vpop.f32.mrb[0].mxu0
  %1768 = vmatprep.mubr.f32.mxu0 0.0
  %1769 = vmatmul.mubr.f32.gmra.mrb[0].mxu0 %v1457
  %v1770 = vpop.f32.mrb[0].mxu0
  %v1771 = vadd.f32 %v1502, %v1770
  %v1772 = vpop.f32.mrb[0].mxu0
  %1773 = vmatprep.mubr.f32.mxu0 0.0
  %1774 = vmatmul.mubr.f32.gmra.mrb[0].mxu0 %v1458
  %v1775 = vpop.f32.mrb[0].mxu0
  %v1776 = vadd.f32 %v1502, %v1775
  %v1777 = vpop.f32.mrb[0].mxu0
  %1778 = vmatprep.mubr.f32.mxu0 0.0
  %1779 = vmatmul.mubr.f32.gmra.mrb[0].mxu0 %v1459
  %v1780 = vpop.f32.mrb[0].mxu0
  %v1781 = vadd.f32 %v1502, %v1780
  %v1782 = vpop.f32.mrb[0].mxu0
  %1783 = vmatprep.mubr.f32.mxu0 0.0
  %1784 = vmatmul.mubr.f32.gmra.mrb[0].mxu0 %v1460
  %v1785 = vpop.f32.mrb[0].mxu0
  %v1786 = vadd.f32 %v1502, %v1785
  %v1787 = vpop.f32.mrb[0].mxu0
  %1788 = vmatprep.mubr.f32.mxu0 0.0
  %1789 = vmatmul.mubr.f32.gmra.mrb[0].mxu0 %v1461
  %v1790 = vpop.f32.mrb[0].mxu0
  %v1791 = vadd.f32 %v1502, %v1790
  %v1792 = vpop.f32.mrb[0].mxu0
  %1793 = vmatprep.mubr.f32.mxu0 0.0
  %1794 = vmatmul.mubr.f32.gmra.mrb[0].mxu0 %v1462
  %v1795 = vpop.f32.mrb[0].mxu0
  %v1796 = vadd.f32 %v1502, %v1795
  %v1797 = vpop.f32.mrb[0].mxu0
  %1798 = vmatprep.mubr.f32.mxu0 0.0
  %1799 = vmatmul.mubr.f32.gmra.mrb[0].mxu0 %v1463
  %v1800 = vpop.f32.mrb[0].mxu0
  %v1801 = vadd.f32 %v1502, %v1800
  %v1802 = vpop.f32.mrb[0].mxu0
  %1803 = vmatprep.mubr.f32.mxu0 0.0
  %1804 = vmatmul.mubr.f32.gmra.mrb[0].mxu0 %v1464
  %v1805 = vpop.f32.mrb[0].mxu0
  %v1806 = vadd.f32 %v1502, %v1805
  %v1807 = vpop.f32.mrb[0].mxu0
  %1808 = vmatprep.mubr.f32.mxu0 0.0
  %1809 = vmatmul.mubr.f32.gmra.mrb[0].mxu0 %v1465
  %v1810 = vpop.f32.mrb[0].mxu0
  %v1811 = vadd.f32 %v1502, %v1810
  %v1812 = vpop.f32.mrb[0].mxu0
  %1813 = vmatprep.mubr.f32.mxu0 0.0
  %1814 = vmatmul.mubr.f32.gmra.mrb[0].mxu0 %v1466
  %v1815 = vpop.f32.mrb[0].mxu0
  %v1816 = vadd.f32 %v1502, %v1815
  %v1817 = vpop.f32.mrb[0].mxu0
  %1818 = vmatprep.mubr.f32.mxu0 0.0
  %1819 = vmatmul.mubr.f32.gmra.mrb[0].mxu0 %v1467
  %v1820 = vpop.f32.mrb[0].mxu0
  %v1821 = vadd.f32 %v1502, %v1820
  %v1822 = vpop.f32.mrb[0].mxu0
  %1823 = vmatprep.mubr.f32.mxu0 0.0
  %1824 = vmatmul.mubr.f32.gmra.mrb[0].mxu0 %v1468
  %v1825 = vpop.f32.mrb[0].mxu0
  %v1826 = vadd.f32 %v1502, %v1825
  %v1827 = vpop.f32.mrb[0].mxu0
  %1828 = vmatprep.mubr.f32.mxu0 0.0
  %1829 = vmatmul.mubr.f32.gmra.mrb[0].mxu0 %v1469
  %v1830 = vpop.f32.mrb[0].mxu0
  %v1831 = vadd.f32 %v1502, %v1830
  %v1832 = vpop.f32.mrb[0].mxu0
  %1833 = vmatprep.mubr.f32.mxu0 0.0
  %1834 = vmatmul.mubr.f32.gmra.mrb[0].mxu0 %v1470
  %v1835 = vpop.f32.mrb[0].mxu0
  %v1836 = vadd.f32 %v1502, %v1835
  %v1837 = vpop.f32.mrb[0].mxu0
  %1838 = vmatprep.mubr.f32.mxu0 0.0
  %1839 = vmatmul.mubr.f32.gmra.mrb[0].mxu0 %v1471
  %v1840 = vpop.f32.mrb[0].mxu0
  %v1841 = vadd.f32 %v1502, %v1840
  %v1842 = vpop.f32.mrb[0].mxu0
  %1843 = vmatprep.mubr.f32.mxu0 0.0
  %1844 = vmatmul.mubr.f32.gmra.mrb[0].mxu0 %v1472
  %v1845 = vpop.f32.mrb[0].mxu0
  %v1846 = vadd.f32 %v1502, %v1845
  %v1847 = vpop.f32.mrb[0].mxu0
  %1848 = vmatprep.mubr.f32.mxu0 0.0
  %1849 = vmatmul.mubr.f32.gmra.mrb[0].mxu0 %v1473
  %v1850 = vpop.f32.mrb[0].mxu0
  %v1851 = vadd.f32 %v1502, %v1850
  %v1852 = vpop.f32.mrb[0].mxu0
  %1853 = vmatprep.mubr.f32.mxu0 0.0
  %1854 = vmatmul.mubr.f32.gmra.mrb[0].mxu0 %v1474
  %v1855 = vpop.f32.mrb[0].mxu0
  %v1856 = vadd.f32 %v1502, %v1855
  %v1857 = vpop.f32.mrb[0].mxu0
  %1858 = vmatprep.mubr.f32.mxu0 0.0
  %1859 = vmatmul.mubr.f32.gmra.mrb[0].mxu0 %v1475
  %v1860 = vpop.f32.mrb[0].mxu0
  %v1861 = vadd.f32 %v1502, %v1860
  %v1862 = vpop.f32.mrb[0].mxu0
  %1863 = vmatprep.mubr.f32.mxu0 0.0
  %1864 = vmatmul.mubr.f32.gmra.mrb[0].mxu0 %v1476
  %v1865 = vpop.f32.mrb[0].mxu0
  %v1866 = vadd.f32 %v1502, %v1865
  %v1867 = vpop.f32.mrb[0].mxu0
  %1868 = vmatprep.mubr.f32.mxu0 0.0
  %1869 = vmatmul.mubr.f32.gmra.mrb[0].mxu0 %v1477
  %v1870 = vpop.f32.mrb[0].mxu0
  %v1871 = vadd.f32 %v1502, %v1870
  %v1872 = vpop.f32.mrb[0].mxu0
  %1873 = vmatprep.mubr.f32.mxu0 0.0
  %1874 = vmatmul.mubr.f32.gmra.mrb[0].mxu0 %v1478
  %v1875 = vpop.f32.mrb[0].mxu0
  %v1876 = vadd.f32 %v1502, %v1875
  %v1877 = vpop.f32.mrb[0].mxu0
  %1878 = vmatprep.mubr.f32.mxu0 0.0
  %1879 = vmatmul.mubr.f32.gmra.mrb[0].mxu0 %v1479
  %v1880 = vpop.f32.mrb[0].mxu0
  %v1881 = vadd.f32 %v1502, %v1880
  %v1882 = vpop.f32.mrb[0].mxu0
  %1883 = vmatprep.mubr.f32.mxu0 0.0
  %1884 = vmatmul.mubr.f32.gmra.mrb[0].mxu0 %v1480
  %v1885 = vpop.f32.mrb[0].mxu0
  %v1886 = vadd.f32 %v1502, %v1885
  %v1887 = vpop.f32.mrb[0].mxu0
  %1888 = vdwg.mxu0
  %v1889 = vmax.f32 %v1571, 0.0
  %v1890 = vmax.f32 %v1576, 0.0
  %v1891 = vmax.f32 %v1581, 0.0
  %v1892 = vmax.f32 %v1586, 0.0
  %v1893 = vmax.f32 %v1591, 0.0
  %v1894 = vmax.f32 %v1596, 0.0
  %v1895 = vmax.f32 %v1601, 0.0
  %v1896 = vmax.f32 %v1606, 0.0
  %v1897 = vmax.f32 %v1611, 0.0
  %v1898 = vmax.f32 %v1616, 0.0
  %v1899 = vmax.f32 %v1621, 0.0
  %v1900 = vmax.f32 %v1626, 0.0
  %v1901 = vmax.f32 %v1631, 0.0
  %v1902 = vmax.f32 %v1636, 0.0
  %v1903 = vmax.f32 %v1641, 0.0
  %v1904 = vmax.f32 %v1646, 0.0
  %v1905 = vmax.f32 %v1651, 0.0
  %v1906 = vmax.f32 %v1656, 0.0
  %v1907 = vmax.f32 %v1661, 0.0
  %v1908 = vmax.f32 %v1666, 0.0
  %v1909 = vmax.f32 %v1671, 0.0
  %v1910 = vmax.f32 %v1676, 0.0
  %v1911 = vmax.f32 %v1681, 0.0
  %v1912 = vmax.f32 %v1686, 0.0
  %v1913 = vmax.f32 %v1691, 0.0
  %v1914 = vmax.f32 %v1696, 0.0
  %v1915 = vmax.f32 %v1701, 0.0
  %v1916 = vmax.f32 %v1706, 0.0
  %v1917 = vmax.f32 %v1711, 0.0
  %v1918 = vmax.f32 %v1716, 0.0
  %v1919 = vmax.f32 %v1721, 0.0
  %v1920 = vmax.f32 %v1726, 0.0
  %v1921 = vmax.f32 %v1731, 0.0
  %v1922 = vmax.f32 %v1736, 0.0
  %v1923 = vmax.f32 %v1741, 0.0
  %v1924 = vmax.f32 %v1746, 0.0
  %v1925 = vmax.f32 %v1751, 0.0
  %v1926 = vmax.f32 %v1756, 0.0
  %v1927 = vmax.f32 %v1761, 0.0
  %v1928 = vmax.f32 %v1766, 0.0
  %v1929 = vmax.f32 %v1771, 0.0
  %v1930 = vmax.f32 %v1776, 0.0
  %v1931 = vmax.f32 %v1781, 0.0
  %v1932 = vmax.f32 %v1786, 0.0
  %v1933 = vmax.f32 %v1791, 0.0
  %v1934 = vmax.f32 %v1796, 0.0
  %v1935 = vmax.f32 %v1801, 0.0
  %v1936 = vmax.f32 %v1806, 0.0
  %v1937 = vmax.f32 %v1811, 0.0
  %v1938 = vmax.f32 %v1816, 0.0
  %v1939 = vmax.f32 %v1821, 0.0
  %v1940 = vmax.f32 %v1826, 0.0
  %v1941 = vmax.f32 %v1831, 0.0
  %v1942 = vmax.f32 %v1836, 0.0
  %v1943 = vmax.f32 %v1841, 0.0
  %v1944 = vmax.f32 %v1846, 0.0
  %v1945 = vmax.f32 %v1851, 0.0
  %v1946 = vmax.f32 %v1856, 0.0
  %v1947 = vmax.f32 %v1861, 0.0
  %v1948 = vmax.f32 %v1866, 0.0
  %v1949 = vmax.f32 %v1871, 0.0
  %v1950 = vmax.f32 %v1876, 0.0
  %v1951 = vmax.f32 %v1881, 0.0
  %v1952 = vmax.f32 %v1886, 0.0
  %v1953 = vld [vmem:[%s7] sm:$0xff]
  %v1954 = vld [vmem:[%s7 + $0x8] sm:$0xff]
  %v1955 = vld [vmem:[%s7 + $0x10] sm:$0xff]
  %v1956 = vld [vmem:[%s7 + $0x18] sm:$0xff]
  %v1957 = vld [vmem:[%s7 + $0x20] sm:$0xff]
  %v1958 = vld [vmem:[%s7 + $0x28] sm:$0xff]
  %v1959 = vld [vmem:[%s7 + $0x30] sm:$0xff]
  %v1960 = vld [vmem:[%s7 + $0x38] sm:$0xff]
  %v1961 = vld [vmem:[%s7 + $0x40] sm:$0xff]
  %v1962 = vld [vmem:[%s7 + $0x48] sm:$0xff]
  %v1963 = vld [vmem:[%s7 + $0x50] sm:$0xff]
  %v1964 = vld [vmem:[%s7 + $0x58] sm:$0xff]
  %v1965 = vld [vmem:[%s7 + $0x60] sm:$0xff]
  %v1966 = vld [vmem:[%s7 + $0x68] sm:$0xff]
  %v1967 = vld [vmem:[%s7 + $0x70] sm:$0xff]
  %v1968 = vld [vmem:[%s7 + $0x78] sm:$0xff]
  %v1969 = vld [vmem:[%s8] sm:$0x1]
  %v1971 = vlaneseq
  %v1972 = vshrl.u32 %v1971, 7
  %v1973 = vsub.s32 0, %v1972
  %v1974 = vrot.slane %v1969, %v1973
  %1976 = vmatprep.subr.mxu0 0.0
  %1977 = vmatpush1.msra.mxu0 %v1953
  %1978 = vmatprep.subr.mxu0 0.0
  %1979 = vmatpush1.msra.mxu0 %v1954
  %1980 = vmatprep.subr.mxu0 0.0
  %1981 = vmatpush1.msra.mxu0 %v1955
  %1982 = vmatprep.subr.mxu0 0.0
  %1983 = vmatpush1.msra.mxu0 %v1956
  %1984 = vmatprep.subr.mxu0 0.0
  %1985 = vmatpush1.msra.mxu0 %v1957
  %1986 = vmatprep.subr.mxu0 0.0
  %1987 = vmatpush1.msra.mxu0 %v1958
  %1988 = vmatprep.subr.mxu0 0.0
  %1989 = vmatpush1.msra.mxu0 %v1959
  %1990 = vmatprep.subr.mxu0 0.0
  %1991 = vmatpush1.msra.mxu0 %v1960
  %1992 = vmatprep.subr.mxu0 0.0
  %1993 = vmatpush1.msra.mxu0 %v1961
  %1994 = vmatprep.subr.mxu0 0.0
  %1995 = vmatpush1.msra.mxu0 %v1962
  %1996 = vmatprep.subr.mxu0 0.0
  %1997 = vmatpush1.msra.mxu0 %v1963
  %1998 = vmatprep.subr.mxu0 0.0
  %1999 = vmatpush1.msra.mxu0 %v1964
  %2000 = vmatprep.subr.mxu0 0.0
  %2001 = vmatpush1.msra.mxu0 %v1965
  %2002 = vmatprep.subr.mxu0 0.0
  %2003 = vmatpush1.msra.mxu0 %v1966
  %2004 = vmatprep.subr.mxu0 0.0
  %2005 = vmatpush1.msra.mxu0 %v1967
  %2006 = vmatprep.subr.mxu0 0.0
  %2007 = vmatpush1.msra.mxu0 %v1968
  %2008 = vmatprep.subr.mxu0 0.0
  %2009 = vmatpush1.msra.mxu0 0.0
  %2010 = vmatprep.subr.mxu0 0.0
  %2011 = vmatpush1.msra.mxu0 0.0
  %2012 = vmatprep.subr.mxu0 0.0
  %2013 = vmatpush1.msra.mxu0 0.0
  %2014 = vmatprep.subr.mxu0 0.0
  %2015 = vmatpush1.msra.mxu0 0.0
  %2016 = vmatprep.subr.mxu0 0.0
  %2017 = vmatpush1.msra.mxu0 0.0
  %2018 = vmatprep.subr.mxu0 0.0
  %2019 = vmatpush1.msra.mxu0 0.0
  %2020 = vmatprep.subr.mxu0 0.0
  %2021 = vmatpush1.msra.mxu0 0.0
  %2022 = vmatprep.subr.mxu0 0.0
  %2023 = vmatpush1.msra.mxu0 0.0
  %2024 = vmatprep.subr.mxu0 0.0
  %2025 = vmatpush1.msra.mxu0 0.0
  %2026 = vmatprep.subr.mxu0 0.0
  %2027 = vmatpush1.msra.mxu0 0.0
  %2028 = vmatprep.subr.mxu0 0.0
  %2029 = vmatpush1.msra.mxu0 0.0
  %2030 = vmatprep.subr.mxu0 0.0
  %2031 = vmatpush1.msra.mxu0 0.0
  %2032 = vmatprep.subr.mxu0 0.0
  %2033 = vmatpush1.msra.mxu0 0.0
  %2034 = vmatprep.subr.mxu0 0.0
  %2035 = vmatpush1.msra.mxu0 0.0
  %2036 = vmatprep.subr.mxu0 0.0
  %2037 = vmatpush1.msra.mxu0 0.0
  %2038 = vmatprep.subr.mxu0 0.0
  %2039 = vmatpush1.msra.mxu0 0.0
  %2040 = vmatprep.mubr.f32.mxu0 0.0
  %2041 = vmatmul.mubr.f32.gmra.mrb[0].mxu0 %v1889
  %v2042 = vpop.f32.mrb[0].mxu0
  %v2043 = vadd.f32 %v1974, %v2042
  %v2044 = vpop.f32.mrb[0].mxu0
  %2045 = vmatprep.mubr.f32.mxu0 0.0
  %2046 = vmatmul.mubr.f32.gmra.mrb[0].mxu0 %v1890
  %v2047 = vpop.f32.mrb[0].mxu0
  %v2048 = vadd.f32 %v1974, %v2047
  %v2049 = vpop.f32.mrb[0].mxu0
  %2050 = vmatprep.mubr.f32.mxu0 0.0
  %2051 = vmatmul.mubr.f32.gmra.mrb[0].mxu0 %v1891
  %v2052 = vpop.f32.mrb[0].mxu0
  %v2053 = vadd.f32 %v1974, %v2052
  %v2054 = vpop.f32.mrb[0].mxu0
  %2055 = vmatprep.mubr.f32.mxu0 0.0
  %2056 = vmatmul.mubr.f32.gmra.mrb[0].mxu0 %v1892
  %v2057 = vpop.f32.mrb[0].mxu0
  %v2058 = vadd.f32 %v1974, %v2057
  %v2059 = vpop.f32.mrb[0].mxu0
  %2060 = vmatprep.mubr.f32.mxu0 0.0
  %2061 = vmatmul.mubr.f32.gmra.mrb[0].mxu0 %v1893
  %v2062 = vpop.f32.mrb[0].mxu0
  %v2063 = vadd.f32 %v1974, %v2062
  %v2064 = vpop.f32.mrb[0].mxu0
  %2065 = vmatprep.mubr.f32.mxu0 0.0
  %2066 = vmatmul.mubr.f32.gmra.mrb[0].mxu0 %v1894
  %v2067 = vpop.f32.mrb[0].mxu0
  %v2068 = vadd.f32 %v1974, %v2067
  %v2069 = vpop.f32.mrb[0].mxu0
  %2070 = vmatprep.mubr.f32.mxu0 0.0
  %2071 = vmatmul.mubr.f32.gmra.mrb[0].mxu0 %v1895
  %v2072 = vpop.f32.mrb[0].mxu0
  %v2073 = vadd.f32 %v1974, %v2072
  %v2074 = vpop.f32.mrb[0].mxu0
  %2075 = vmatprep.mubr.f32.mxu0 0.0
  %2076 = vmatmul.mubr.f32.gmra.mrb[0].mxu0 %v1896
  %v2077 = vpop.f32.mrb[0].mxu0
  %v2078 = vadd.f32 %v1974, %v2077
  %v2079 = vpop.f32.mrb[0].mxu0
  %2080 = vmatprep.mubr.f32.mxu0 0.0
  %2081 = vmatmul.mubr.f32.gmra.mrb[0].mxu0 %v1897
  %v2082 = vpop.f32.mrb[0].mxu0
  %v2083 = vadd.f32 %v1974, %v2082
  %v2084 = vpop.f32.mrb[0].mxu0
  %2085 = vmatprep.mubr.f32.mxu0 0.0
  %2086 = vmatmul.mubr.f32.gmra.mrb[0].mxu0 %v1898
  %v2087 = vpop.f32.mrb[0].mxu0
  %v2088 = vadd.f32 %v1974, %v2087
  %v2089 = vpop.f32.mrb[0].mxu0
  %2090 = vmatprep.mubr.f32.mxu0 0.0
  %2091 = vmatmul.mubr.f32.gmra.mrb[0].mxu0 %v1899
  %v2092 = vpop.f32.mrb[0].mxu0
  %v2093 = vadd.f32 %v1974, %v2092
  %v2094 = vpop.f32.mrb[0].mxu0
  %2095 = vmatprep.mubr.f32.mxu0 0.0
  %2096 = vmatmul.mubr.f32.gmra.mrb[0].mxu0 %v1900
  %v2097 = vpop.f32.mrb[0].mxu0
  %v2098 = vadd.f32 %v1974, %v2097
  %v2099 = vpop.f32.mrb[0].mxu0
  %2100 = vmatprep.mubr.f32.mxu0 0.0
  %2101 = vmatmul.mubr.f32.gmra.mrb[0].mxu0 %v1901
  %v2102 = vpop.f32.mrb[0].mxu0
  %v2103 = vadd.f32 %v1974, %v2102
  %v2104 = vpop.f32.mrb[0].mxu0
  %2105 = vmatprep.mubr.f32.mxu0 0.0
  %2106 = vmatmul.mubr.f32.gmra.mrb[0].mxu0 %v1902
  %v2107 = vpop.f32.mrb[0].mxu0
  %v2108 = vadd.f32 %v1974, %v2107
  %v2109 = vpop.f32.mrb[0].mxu0
  %2110 = vmatprep.mubr.f32.mxu0 0.0
  %2111 = vmatmul.mubr.f32.gmra.mrb[0].mxu0 %v1903
  %v2112 = vpop.f32.mrb[0].mxu0
  %v2113 = vadd.f32 %v1974, %v2112
  %v2114 = vpop.f32.mrb[0].mxu0
  %2115 = vmatprep.mubr.f32.mxu0 0.0
  %2116 = vmatmul.mubr.f32.gmra.mrb[0].mxu0 %v1904
  %v2117 = vpop.f32.mrb[0].mxu0
  %v2118 = vadd.f32 %v1974, %v2117
  %v2119 = vpop.f32.mrb[0].mxu0
  %2120 = vmatprep.mubr.f32.mxu0 0.0
  %2121 = vmatmul.mubr.f32.gmra.mrb[0].mxu0 %v1905
  %v2122 = vpop.f32.mrb[0].mxu0
  %v2123 = vadd.f32 %v1974, %v2122
  %v2124 = vpop.f32.mrb[0].mxu0
  %2125 = vmatprep.mubr.f32.mxu0 0.0
  %2126 = vmatmul.mubr.f32.gmra.mrb[0].mxu0 %v1906
  %v2127 = vpop.f32.mrb[0].mxu0
  %v2128 = vadd.f32 %v1974, %v2127
  %v2129 = vpop.f32.mrb[0].mxu0
  %2130 = vmatprep.mubr.f32.mxu0 0.0
  %2131 = vmatmul.mubr.f32.gmra.mrb[0].mxu0 %v1907
  %v2132 = vpop.f32.mrb[0].mxu0
  %v2133 = vadd.f32 %v1974, %v2132
  %v2134 = vpop.f32.mrb[0].mxu0
  %2135 = vmatprep.mubr.f32.mxu0 0.0
  %2136 = vmatmul.mubr.f32.gmra.mrb[0].mxu0 %v1908
  %v2137 = vpop.f32.mrb[0].mxu0
  %v2138 = vadd.f32 %v1974, %v2137
  %v2139 = vpop.f32.mrb[0].mxu0
  %2140 = vmatprep.mubr.f32.mxu0 0.0
  %2141 = vmatmul.mubr.f32.gmra.mrb[0].mxu0 %v1909
  %v2142 = vpop.f32.mrb[0].mxu0
  %v2143 = vadd.f32 %v1974, %v2142
  %v2144 = vpop.f32.mrb[0].mxu0
  %2145 = vmatprep.mubr.f32.mxu0 0.0
  %2146 = vmatmul.mubr.f32.gmra.mrb[0].mxu0 %v1910
  %v2147 = vpop.f32.mrb[0].mxu0
  %v2148 = vadd.f32 %v1974, %v2147
  %v2149 = vpop.f32.mrb[0].mxu0
  %2150 = vmatprep.mubr.f32.mxu0 0.0
  %2151 = vmatmul.mubr.f32.gmra.mrb[0].mxu0 %v1911
  %v2152 = vpop.f32.mrb[0].mxu0
  %v2153 = vadd.f32 %v1974, %v2152
  %v2154 = vpop.f32.mrb[0].mxu0
  %2155 = vmatprep.mubr.f32.mxu0 0.0
  %2156 = vmatmul.mubr.f32.gmra.mrb[0].mxu0 %v1912
  %v2157 = vpop.f32.mrb[0].mxu0
  %v2158 = vadd.f32 %v1974, %v2157
  %v2159 = vpop.f32.mrb[0].mxu0
  %2160 = vmatprep.mubr.f32.mxu0 0.0
  %2161 = vmatmul.mubr.f32.gmra.mrb[0].mxu0 %v1913
  %v2162 = vpop.f32.mrb[0].mxu0
  %v2163 = vadd.f32 %v1974, %v2162
  %v2164 = vpop.f32.mrb[0].mxu0
  %2165 = vmatprep.mubr.f32.mxu0 0.0
  %2166 = vmatmul.mubr.f32.gmra.mrb[0].mxu0 %v1914
  %v2167 = vpop.f32.mrb[0].mxu0
  %v2168 = vadd.f32 %v1974, %v2167
  %v2169 = vpop.f32.mrb[0].mxu0
  %2170 = vmatprep.mubr.f32.mxu0 0.0
  %2171 = vmatmul.mubr.f32.gmra.mrb[0].mxu0 %v1915
  %v2172 = vpop.f32.mrb[0].mxu0
  %v2173 = vadd.f32 %v1974, %v2172
  %v2174 = vpop.f32.mrb[0].mxu0
  %2175 = vmatprep.mubr.f32.mxu0 0.0
  %2176 = vmatmul.mubr.f32.gmra.mrb[0].mxu0 %v1916
  %v2177 = vpop.f32.mrb[0].mxu0
  %v2178 = vadd.f32 %v1974, %v2177
  %v2179 = vpop.f32.mrb[0].mxu0
  %2180 = vmatprep.mubr.f32.mxu0 0.0
  %2181 = vmatmul.mubr.f32.gmra.mrb[0].mxu0 %v1917
  %v2182 = vpop.f32.mrb[0].mxu0
  %v2183 = vadd.f32 %v1974, %v2182
  %v2184 = vpop.f32.mrb[0].mxu0
  %2185 = vmatprep.mubr.f32.mxu0 0.0
  %2186 = vmatmul.mubr.f32.gmra.mrb[0].mxu0 %v1918
  %v2187 = vpop.f32.mrb[0].mxu0
  %v2188 = vadd.f32 %v1974, %v2187
  %v2189 = vpop.f32.mrb[0].mxu0
  %2190 = vmatprep.mubr.f32.mxu0 0.0
  %2191 = vmatmul.mubr.f32.gmra.mrb[0].mxu0 %v1919
  %v2192 = vpop.f32.mrb[0].mxu0
  %v2193 = vadd.f32 %v1974, %v2192
  %v2194 = vpop.f32.mrb[0].mxu0
  %2195 = vmatprep.mubr.f32.mxu0 0.0
  %2196 = vmatmul.mubr.f32.gmra.mrb[0].mxu0 %v1920
  %v2197 = vpop.f32.mrb[0].mxu0
  %v2198 = vadd.f32 %v1974, %v2197
  %v2199 = vpop.f32.mrb[0].mxu0
  %2200 = vmatprep.mubr.f32.mxu0 0.0
  %2201 = vmatmul.mubr.f32.gmra.mrb[0].mxu0 %v1921
  %v2202 = vpop.f32.mrb[0].mxu0
  %v2203 = vadd.f32 %v1974, %v2202
  %v2204 = vpop.f32.mrb[0].mxu0
  %2205 = vmatprep.mubr.f32.mxu0 0.0
  %2206 = vmatmul.mubr.f32.gmra.mrb[0].mxu0 %v1922
  %v2207 = vpop.f32.mrb[0].mxu0
  %v2208 = vadd.f32 %v1974, %v2207
  %v2209 = vpop.f32.mrb[0].mxu0
  %2210 = vmatprep.mubr.f32.mxu0 0.0
  %2211 = vmatmul.mubr.f32.gmra.mrb[0].mxu0 %v1923
  %v2212 = vpop.f32.mrb[0].mxu0
  %v2213 = vadd.f32 %v1974, %v2212
  %v2214 = vpop.f32.mrb[0].mxu0
  %2215 = vmatprep.mubr.f32.mxu0 0.0
  %2216 = vmatmul.mubr.f32.gmra.mrb[0].mxu0 %v1924
  %v2217 = vpop.f32.mrb[0].mxu0
  %v2218 = vadd.f32 %v1974, %v2217
  %v2219 = vpop.f32.mrb[0].mxu0
  %2220 = vmatprep.mubr.f32.mxu0 0.0
  %2221 = vmatmul.mubr.f32.gmra.mrb[0].mxu0 %v1925
  %v2222 = vpop.f32.mrb[0].mxu0
  %v2223 = vadd.f32 %v1974, %v2222
  %v2224 = vpop.f32.mrb[0].mxu0
  %2225 = vmatprep.mubr.f32.mxu0 0.0
  %2226 = vmatmul.mubr.f32.gmra.mrb[0].mxu0 %v1926
  %v2227 = vpop.f32.mrb[0].mxu0
  %v2228 = vadd.f32 %v1974, %v2227
  %v2229 = vpop.f32.mrb[0].mxu0
  %2230 = vmatprep.mubr.f32.mxu0 0.0
  %2231 = vmatmul.mubr.f32.gmra.mrb[0].mxu0 %v1927
  %v2232 = vpop.f32.mrb[0].mxu0
  %v2233 = vadd.f32 %v1974, %v2232
  %v2234 = vpop.f32.mrb[0].mxu0
  %2235 = vmatprep.mubr.f32.mxu0 0.0
  %2236 = vmatmul.mubr.f32.gmra.mrb[0].mxu0 %v1928
  %v2237 = vpop.f32.mrb[0].mxu0
  %v2238 = vadd.f32 %v1974, %v2237
  %v2239 = vpop.f32.mrb[0].mxu0
  %2240 = vmatprep.mubr.f32.mxu0 0.0
  %2241 = vmatmul.mubr.f32.gmra.mrb[0].mxu0 %v1929
  %v2242 = vpop.f32.mrb[0].mxu0
  %v2243 = vadd.f32 %v1974, %v2242
  %v2244 = vpop.f32.mrb[0].mxu0
  %2245 = vmatprep.mubr.f32.mxu0 0.0
  %2246 = vmatmul.mubr.f32.gmra.mrb[0].mxu0 %v1930
  %v2247 = vpop.f32.mrb[0].mxu0
  %v2248 = vadd.f32 %v1974, %v2247
  %v2249 = vpop.f32.mrb[0].mxu0
  %2250 = vmatprep.mubr.f32.mxu0 0.0
  %2251 = vmatmul.mubr.f32.gmra.mrb[0].mxu0 %v1931
  %v2252 = vpop.f32.mrb[0].mxu0
  %v2253 = vadd.f32 %v1974, %v2252
  %v2254 = vpop.f32.mrb[0].mxu0
  %2255 = vmatprep.mubr.f32.mxu0 0.0
  %2256 = vmatmul.mubr.f32.gmra.mrb[0].mxu0 %v1932
  %v2257 = vpop.f32.mrb[0].mxu0
  %v2258 = vadd.f32 %v1974, %v2257
  %v2259 = vpop.f32.mrb[0].mxu0
  %2260 = vmatprep.mubr.f32.mxu0 0.0
  %2261 = vmatmul.mubr.f32.gmra.mrb[0].mxu0 %v1933
  %v2262 = vpop.f32.mrb[0].mxu0
  %v2263 = vadd.f32 %v1974, %v2262
  %v2264 = vpop.f32.mrb[0].mxu0
  %2265 = vmatprep.mubr.f32.mxu0 0.0
  %2266 = vmatmul.mubr.f32.gmra.mrb[0].mxu0 %v1934
  %v2267 = vpop.f32.mrb[0].mxu0
  %v2268 = vadd.f32 %v1974, %v2267
  %v2269 = vpop.f32.mrb[0].mxu0
  %2270 = vmatprep.mubr.f32.mxu0 0.0
  %2271 = vmatmul.mubr.f32.gmra.mrb[0].mxu0 %v1935
  %v2272 = vpop.f32.mrb[0].mxu0
  %v2273 = vadd.f32 %v1974, %v2272
  %v2274 = vpop.f32.mrb[0].mxu0
  %2275 = vmatprep.mubr.f32.mxu0 0.0
  %2276 = vmatmul.mubr.f32.gmra.mrb[0].mxu0 %v1936
  %v2277 = vpop.f32.mrb[0].mxu0
  %v2278 = vadd.f32 %v1974, %v2277
  %v2279 = vpop.f32.mrb[0].mxu0
  %2280 = vmatprep.mubr.f32.mxu0 0.0
  %2281 = vmatmul.mubr.f32.gmra.mrb[0].mxu0 %v1937
  %v2282 = vpop.f32.mrb[0].mxu0
  %v2283 = vadd.f32 %v1974, %v2282
  %v2284 = vpop.f32.mrb[0].mxu0
  %2285 = vmatprep.mubr.f32.mxu0 0.0
  %2286 = vmatmul.mubr.f32.gmra.mrb[0].mxu0 %v1938
  %v2287 = vpop.f32.mrb[0].mxu0
  %v2288 = vadd.f32 %v1974, %v2287
  %v2289 = vpop.f32.mrb[0].mxu0
  %2290 = vmatprep.mubr.f32.mxu0 0.0
  %2291 = vmatmul.mubr.f32.gmra.mrb[0].mxu0 %v1939
  %v2292 = vpop.f32.mrb[0].mxu0
  %v2293 = vadd.f32 %v1974, %v2292
  %v2294 = vpop.f32.mrb[0].mxu0
  %2295 = vmatprep.mubr.f32.mxu0 0.0
  %2296 = vmatmul.mubr.f32.gmra.mrb[0].mxu0 %v1940
  %v2297 = vpop.f32.mrb[0].mxu0
  %v2298 = vadd.f32 %v1974, %v2297
  %v2299 = vpop.f32.mrb[0].mxu0
  %2300 = vmatprep.mubr.f32.mxu0 0.0
  %2301 = vmatmul.mubr.f32.gmra.mrb[0].mxu0 %v1941
  %v2302 = vpop.f32.mrb[0].mxu0
  %v2303 = vadd.f32 %v1974, %v2302
  %v2304 = vpop.f32.mrb[0].mxu0
  %2305 = vmatprep.mubr.f32.mxu0 0.0
  %2306 = vmatmul.mubr.f32.gmra.mrb[0].mxu0 %v1942
  %v2307 = vpop.f32.mrb[0].mxu0
  %v2308 = vadd.f32 %v1974, %v2307
  %v2309 = vpop.f32.mrb[0].mxu0
  %2310 = vmatprep.mubr.f32.mxu0 0.0
  %2311 = vmatmul.mubr.f32.gmra.mrb[0].mxu0 %v1943
  %v2312 = vpop.f32.mrb[0].mxu0
  %v2313 = vadd.f32 %v1974, %v2312
  %v2314 = vpop.f32.mrb[0].mxu0
  %2315 = vmatprep.mubr.f32.mxu0 0.0
  %2316 = vmatmul.mubr.f32.gmra.mrb[0].mxu0 %v1944
  %v2317 = vpop.f32.mrb[0].mxu0
  %v2318 = vadd.f32 %v1974, %v2317
  %v2319 = vpop.f32.mrb[0].mxu0
  %2320 = vmatprep.mubr.f32.mxu0 0.0
  %2321 = vmatmul.mubr.f32.gmra.mrb[0].mxu0 %v1945
  %v2322 = vpop.f32.mrb[0].mxu0
  %v2323 = vadd.f32 %v1974, %v2322
  %v2324 = vpop.f32.mrb[0].mxu0
  %2325 = vmatprep.mubr.f32.mxu0 0.0
  %2326 = vmatmul.mubr.f32.gmra.mrb[0].mxu0 %v1946
  %v2327 = vpop.f32.mrb[0].mxu0
  %v2328 = vadd.f32 %v1974, %v2327
  %v2329 = vpop.f32.mrb[0].mxu0
  %2330 = vmatprep.mubr.f32.mxu0 0.0
  %2331 = vmatmul.mubr.f32.gmra.mrb[0].mxu0 %v1947
  %v2332 = vpop.f32.mrb[0].mxu0
  %v2333 = vadd.f32 %v1974, %v2332
  %v2334 = vpop.f32.mrb[0].mxu0
  %2335 = vmatprep.mubr.f32.mxu0 0.0
  %2336 = vmatmul.mubr.f32.gmra.mrb[0].mxu0 %v1948
  %v2337 = vpop.f32.mrb[0].mxu0
  %v2338 = vadd.f32 %v1974, %v2337
  %v2339 = vpop.f32.mrb[0].mxu0
  %2340 = vmatprep.mubr.f32.mxu0 0.0
  %2341 = vmatmul.mubr.f32.gmra.mrb[0].mxu0 %v1949
  %v2342 = vpop.f32.mrb[0].mxu0
  %v2343 = vadd.f32 %v1974, %v2342
  %v2344 = vpop.f32.mrb[0].mxu0
  %2345 = vmatprep.mubr.f32.mxu0 0.0
  %2346 = vmatmul.mubr.f32.gmra.mrb[0].mxu0 %v1950
  %v2347 = vpop.f32.mrb[0].mxu0
  %v2348 = vadd.f32 %v1974, %v2347
  %v2349 = vpop.f32.mrb[0].mxu0
  %2350 = vmatprep.mubr.f32.mxu0 0.0
  %2351 = vmatmul.mubr.f32.gmra.mrb[0].mxu0 %v1951
  %v2352 = vpop.f32.mrb[0].mxu0
  %v2353 = vadd.f32 %v1974, %v2352
  %v2354 = vpop.f32.mrb[0].mxu0
  %2355 = vmatprep.mubr.f32.mxu0 0.0
  %2356 = vmatmul.mubr.f32.gmra.mrb[0].mxu0 %v1952
  %v2357 = vpop.f32.mrb[0].mxu0
  %v2358 = vadd.f32 %v1974, %v2357
  %v2359 = vpop.f32.mrb[0].mxu0
  %2360 = vdwg.mxu0
  %2425 = vrot.lane.b32.xlu0 %v2043, 127
  %v2426 = vpop.permute.xlu0 %2425
  %2427 = vrot.lane.b32.xlu0 %v2048, 127
  %v2428 = vpop.permute.xlu0 %2427
  %2429 = vrot.lane.b32.xlu0 %v2053, 127
  %v2430 = vpop.permute.xlu0 %2429
  %2431 = vrot.lane.b32.xlu0 %v2058, 127
  %v2432 = vpop.permute.xlu0 %2431
  %2433 = vrot.lane.b32.xlu0 %v2063, 127
  %v2434 = vpop.permute.xlu0 %2433
  %2435 = vrot.lane.b32.xlu0 %v2068, 127
  %v2436 = vpop.permute.xlu0 %2435
  %2437 = vrot.lane.b32.xlu0 %v2073, 127
  %v2438 = vpop.permute.xlu0 %2437
  %2439 = vrot.lane.b32.xlu0 %v2078, 127
  %v2440 = vpop.permute.xlu0 %2439
  %2441 = vrot.lane.b32.xlu0 %v2083, 127
  %v2442 = vpop.permute.xlu0 %2441
  %2443 = vrot.lane.b32.xlu0 %v2088, 127
  %v2444 = vpop.permute.xlu0 %2443
  %2445 = vrot.lane.b32.xlu0 %v2093, 127
  %v2446 = vpop.permute.xlu0 %2445
  %2447 = vrot.lane.b32.xlu0 %v2098, 127
  %v2448 = vpop.permute.xlu0 %2447
  %2449 = vrot.lane.b32.xlu0 %v2103, 127
  %v2450 = vpop.permute.xlu0 %2449
  %2451 = vrot.lane.b32.xlu0 %v2108, 127
  %v2452 = vpop.permute.xlu0 %2451
  %2453 = vrot.lane.b32.xlu0 %v2113, 127
  %v2454 = vpop.permute.xlu0 %2453
  %2455 = vrot.lane.b32.xlu0 %v2118, 127
  %v2456 = vpop.permute.xlu0 %2455
  %2457 = vrot.lane.b32.xlu0 %v2123, 127
  %v2458 = vpop.permute.xlu0 %2457
  %2459 = vrot.lane.b32.xlu0 %v2128, 127
  %v2460 = vpop.permute.xlu0 %2459
  %2461 = vrot.lane.b32.xlu0 %v2133, 127
  %v2462 = vpop.permute.xlu0 %2461
  %2463 = vrot.lane.b32.xlu0 %v2138, 127
  %v2464 = vpop.permute.xlu0 %2463
  %2465 = vrot.lane.b32.xlu0 %v2143, 127
  %v2466 = vpop.permute.xlu0 %2465
  %2467 = vrot.lane.b32.xlu0 %v2148, 127
  %v2468 = vpop.permute.xlu0 %2467
  %2469 = vrot.lane.b32.xlu0 %v2153, 127
  %v2470 = vpop.permute.xlu0 %2469
  %2471 = vrot.lane.b32.xlu0 %v2158, 127
  %v2472 = vpop.permute.xlu0 %2471
  %2473 = vrot.lane.b32.xlu0 %v2163, 127
  %v2474 = vpop.permute.xlu0 %2473
  %2475 = vrot.lane.b32.xlu0 %v2168, 127
  %v2476 = vpop.permute.xlu0 %2475
  %2477 = vrot.lane.b32.xlu0 %v2173, 127
  %v2478 = vpop.permute.xlu0 %2477
  %2479 = vrot.lane.b32.xlu0 %v2178, 127
  %v2480 = vpop.permute.xlu0 %2479
  %2481 = vrot.lane.b32.xlu0 %v2183, 127
  %v2482 = vpop.permute.xlu0 %2481
  %2483 = vrot.lane.b32.xlu0 %v2188, 127
  %v2484 = vpop.permute.xlu0 %2483
  %2485 = vrot.lane.b32.xlu0 %v2193, 127
  %v2486 = vpop.permute.xlu0 %2485
  %2487 = vrot.lane.b32.xlu0 %v2198, 127
  %v2488 = vpop.permute.xlu0 %2487
  %2489 = vrot.lane.b32.xlu0 %v2203, 127
  %v2490 = vpop.permute.xlu0 %2489
  %2491 = vrot.lane.b32.xlu0 %v2208, 127
  %v2492 = vpop.permute.xlu0 %2491
  %2493 = vrot.lane.b32.xlu0 %v2213, 127
  %v2494 = vpop.permute.xlu0 %2493
  %2495 = vrot.lane.b32.xlu0 %v2218, 127
  %v2496 = vpop.permute.xlu0 %2495
  %2497 = vrot.lane.b32.xlu0 %v2223, 127
  %v2498 = vpop.permute.xlu0 %2497
  %2499 = vrot.lane.b32.xlu0 %v2228, 127
  %v2500 = vpop.permute.xlu0 %2499
  %2501 = vrot.lane.b32.xlu0 %v2233, 127
  %v2502 = vpop.permute.xlu0 %2501
  %2503 = vrot.lane.b32.xlu0 %v2238, 127
  %v2504 = vpop.permute.xlu0 %2503
  %2505 = vrot.lane.b32.xlu0 %v2243, 127
  %v2506 = vpop.permute.xlu0 %2505
  %2507 = vrot.lane.b32.xlu0 %v2248, 127
  %v2508 = vpop.permute.xlu0 %2507
  %2509 = vrot.lane.b32.xlu0 %v2253, 127
  %v2510 = vpop.permute.xlu0 %2509
  %2511 = vrot.lane.b32.xlu0 %v2258, 127
  %v2512 = vpop.permute.xlu0 %2511
  %2513 = vrot.lane.b32.xlu0 %v2263, 127
  %v2514 = vpop.permute.xlu0 %2513
  %2515 = vrot.lane.b32.xlu0 %v2268, 127
  %v2516 = vpop.permute.xlu0 %2515
  %2517 = vrot.lane.b32.xlu0 %v2273, 127
  %v2518 = vpop.permute.xlu0 %2517
  %2519 = vrot.lane.b32.xlu0 %v2278, 127
  %v2520 = vpop.permute.xlu0 %2519
  %2521 = vrot.lane.b32.xlu0 %v2283, 127
  %v2522 = vpop.permute.xlu0 %2521
  %2523 = vrot.lane.b32.xlu0 %v2288, 127
  %v2524 = vpop.permute.xlu0 %2523
  %2525 = vrot.lane.b32.xlu0 %v2293, 127
  %v2526 = vpop.permute.xlu0 %2525
  %2527 = vrot.lane.b32.xlu0 %v2298, 127
  %v2528 = vpop.permute.xlu0 %2527
  %2529 = vrot.lane.b32.xlu0 %v2303, 127
  %v2530 = vpop.permute.xlu0 %2529
  %2531 = vrot.lane.b32.xlu0 %v2308, 127
  %v2532 = vpop.permute.xlu0 %2531
  %2533 = vrot.lane.b32.xlu0 %v2313, 127
  %v2534 = vpop.permute.xlu0 %2533
  %2535 = vrot.lane.b32.xlu0 %v2318, 127
  %v2536 = vpop.permute.xlu0 %2535
  %2537 = vrot.lane.b32.xlu0 %v2323, 127
  %v2538 = vpop.permute.xlu0 %2537
  %2539 = vrot.lane.b32.xlu0 %v2328, 127
  %v2540 = vpop.permute.xlu0 %2539
  %2541 = vrot.lane.b32.xlu0 %v2333, 127
  %v2542 = vpop.permute.xlu0 %2541
  %2543 = vrot.lane.b32.xlu0 %v2338, 127
  %v2544 = vpop.permute.xlu0 %2543
  %2545 = vrot.lane.b32.xlu0 %v2343, 127
  %v2546 = vpop.permute.xlu0 %2545
  %2547 = vrot.lane.b32.xlu0 %v2348, 127
  %v2548 = vpop.permute.xlu0 %2547
  %2549 = vrot.lane.b32.xlu0 %v2353, 127
  %v2550 = vpop.permute.xlu0 %2549
  %2551 = vrot.lane.b32.xlu0 %v2358, 127
  %v2552 = vpop.permute.xlu0 %2551
  %v2617 = vmax.f32 %v2043, %v2426
  %v2618 = vmax.f32 %v2048, %v2428
  %v2619 = vmax.f32 %v2053, %v2430
  %v2620 = vmax.f32 %v2058, %v2432
  %v2621 = vmax.f32 %v2063, %v2434
  %v2622 = vmax.f32 %v2068, %v2436
  %v2623 = vmax.f32 %v2073, %v2438
  %v2624 = vmax.f32 %v2078, %v2440
  %v2625 = vmax.f32 %v2083, %v2442
  %v2626 = vmax.f32 %v2088, %v2444
  %v2627 = vmax.f32 %v2093, %v2446
  %v2628 = vmax.f32 %v2098, %v2448
  %v2629 = vmax.f32 %v2103, %v2450
  %v2630 = vmax.f32 %v2108, %v2452
  %v2631 = vmax.f32 %v2113, %v2454
  %v2632 = vmax.f32 %v2118, %v2456
  %v2633 = vmax.f32 %v2123, %v2458
  %v2634 = vmax.f32 %v2128, %v2460
  %v2635 = vmax.f32 %v2133, %v2462
  %v2636 = vmax.f32 %v2138, %v2464
  %v2637 = vmax.f32 %v2143, %v2466
  %v2638 = vmax.f32 %v2148, %v2468
  %v2639 = vmax.f32 %v2153, %v2470
  %v2640 = vmax.f32 %v2158, %v2472
  %v2641 = vmax.f32 %v2163, %v2474
  %v2642 = vmax.f32 %v2168, %v2476
  %v2643 = vmax.f32 %v2173, %v2478
  %v2644 = vmax.f32 %v2178, %v2480
  %v2645 = vmax.f32 %v2183, %v2482
  %v2646 = vmax.f32 %v2188, %v2484
  %v2647 = vmax.f32 %v2193, %v2486
  %v2648 = vmax.f32 %v2198, %v2488
  %v2649 = vmax.f32 %v2203, %v2490
  %v2650 = vmax.f32 %v2208, %v2492
  %v2651 = vmax.f32 %v2213, %v2494
  %v2652 = vmax.f32 %v2218, %v2496
  %v2653 = vmax.f32 %v2223, %v2498
  %v2654 = vmax.f32 %v2228, %v2500
  %v2655 = vmax.f32 %v2233, %v2502
  %v2656 = vmax.f32 %v2238, %v2504
  %v2657 = vmax.f32 %v2243, %v2506
  %v2658 = vmax.f32 %v2248, %v2508
  %v2659 = vmax.f32 %v2253, %v2510
  %v2660 = vmax.f32 %v2258, %v2512
  %v2661 = vmax.f32 %v2263, %v2514
  %v2662 = vmax.f32 %v2268, %v2516
  %v2663 = vmax.f32 %v2273, %v2518
  %v2664 = vmax.f32 %v2278, %v2520
  %v2665 = vmax.f32 %v2283, %v2522
  %v2666 = vmax.f32 %v2288, %v2524
  %v2667 = vmax.f32 %v2293, %v2526
  %v2668 = vmax.f32 %v2298, %v2528
  %v2669 = vmax.f32 %v2303, %v2530
  %v2670 = vmax.f32 %v2308, %v2532
  %v2671 = vmax.f32 %v2313, %v2534
  %v2672 = vmax.f32 %v2318, %v2536
  %v2673 = vmax.f32 %v2323, %v2538
  %v2674 = vmax.f32 %v2328, %v2540
  %v2675 = vmax.f32 %v2333, %v2542
  %v2676 = vmax.f32 %v2338, %v2544
  %v2677 = vmax.f32 %v2343, %v2546
  %v2678 = vmax.f32 %v2348, %v2548
  %v2679 = vmax.f32 %v2353, %v2550
  %v2680 = vmax.f32 %v2358, %v2552
  %v2681 = vsub.f32 %v2043, %v2617
  %v2682 = vsub.f32 %v2048, %v2618
  %v2683 = vsub.f32 %v2053, %v2619
  %v2684 = vsub.f32 %v2058, %v2620
  %v2685 = vsub.f32 %v2063, %v2621
  %v2686 = vsub.f32 %v2068, %v2622
  %v2687 = vsub.f32 %v2073, %v2623
  %v2688 = vsub.f32 %v2078, %v2624
  %v2689 = vsub.f32 %v2083, %v2625
  %v2690 = vsub.f32 %v2088, %v2626
  %v2691 = vsub.f32 %v2093, %v2627
  %v2692 = vsub.f32 %v2098, %v2628
  %v2693 = vsub.f32 %v2103, %v2629
  %v2694 = vsub.f32 %v2108, %v2630
  %v2695 = vsub.f32 %v2113, %v2631
  %v2696 = vsub.f32 %v2118, %v2632
  %v2697 = vsub.f32 %v2123, %v2633
  %v2698 = vsub.f32 %v2128, %v2634
  %v2699 = vsub.f32 %v2133, %v2635
  %v2700 = vsub.f32 %v2138, %v2636
  %v2701 = vsub.f32 %v2143, %v2637
  %v2702 = vsub.f32 %v2148, %v2638
  %v2703 = vsub.f32 %v2153, %v2639
  %v2704 = vsub.f32 %v2158, %v2640
  %v2705 = vsub.f32 %v2163, %v2641
  %v2706 = vsub.f32 %v2168, %v2642
  %v2707 = vsub.f32 %v2173, %v2643
  %v2708 = vsub.f32 %v2178, %v2644
  %v2709 = vsub.f32 %v2183, %v2645
  %v2710 = vsub.f32 %v2188, %v2646
  %v2711 = vsub.f32 %v2193, %v2647
  %v2712 = vsub.f32 %v2198, %v2648
  %v2713 = vsub.f32 %v2203, %v2649
  %v2714 = vsub.f32 %v2208, %v2650
  %v2715 = vsub.f32 %v2213, %v2651
  %v2716 = vsub.f32 %v2218, %v2652
  %v2717 = vsub.f32 %v2223, %v2653
  %v2718 = vsub.f32 %v2228, %v2654
  %v2719 = vsub.f32 %v2233, %v2655
  %v2720 = vsub.f32 %v2238, %v2656
  %v2721 = vsub.f32 %v2243, %v2657
  %v2722 = vsub.f32 %v2248, %v2658
  %v2723 = vsub.f32 %v2253, %v2659
  %v2724 = vsub.f32 %v2258, %v2660
  %v2725 = vsub.f32 %v2263, %v2661
  %v2726 = vsub.f32 %v2268, %v2662
  %v2727 = vsub.f32 %v2273, %v2663
  %v2728 = vsub.f32 %v2278, %v2664
  %v2729 = vsub.f32 %v2283, %v2665
  %v2730 = vsub.f32 %v2288, %v2666
  %v2731 = vsub.f32 %v2293, %v2667
  %v2732 = vsub.f32 %v2298, %v2668
  %v2733 = vsub.f32 %v2303, %v2669
  %v2734 = vsub.f32 %v2308, %v2670
  %v2735 = vsub.f32 %v2313, %v2671
  %v2736 = vsub.f32 %v2318, %v2672
  %v2737 = vsub.f32 %v2323, %v2673
  %v2738 = vsub.f32 %v2328, %v2674
  %v2739 = vsub.f32 %v2333, %v2675
  %v2740 = vsub.f32 %v2338, %v2676
  %v2741 = vsub.f32 %v2343, %v2677
  %v2742 = vsub.f32 %v2348, %v2678
  %v2743 = vsub.f32 %v2353, %v2679
  %v2744 = vsub.f32 %v2358, %v2680
  %v2745 = vmul.f32 %v2681, 1.442695
  %v2746 = vpow.pop %v2745
  %v2747 = vmul.f32 %v2682, 1.442695
  %v2748 = vpow.pop %v2747
  %v2749 = vmul.f32 %v2683, 1.442695
  %v2750 = vpow.pop %v2749
  %v2751 = vmul.f32 %v2684, 1.442695
  %v2752 = vpow.pop %v2751
  %v2753 = vmul.f32 %v2685, 1.442695
  %v2754 = vpow.pop %v2753
  %v2755 = vmul.f32 %v2686, 1.442695
  %v2756 = vpow.pop %v2755
  %v2757 = vmul.f32 %v2687, 1.442695
  %v2758 = vpow.pop %v2757
  %v2759 = vmul.f32 %v2688, 1.442695
  %v2760 = vpow.pop %v2759
  %v2761 = vmul.f32 %v2689, 1.442695
  %v2762 = vpow.pop %v2761
  %v2763 = vmul.f32 %v2690, 1.442695
  %v2764 = vpow.pop %v2763
  %v2765 = vmul.f32 %v2691, 1.442695
  %v2766 = vpow.pop %v2765
  %v2767 = vmul.f32 %v2692, 1.442695
  %v2768 = vpow.pop %v2767
  %v2769 = vmul.f32 %v2693, 1.442695
  %v2770 = vpow.pop %v2769
  %v2771 = vmul.f32 %v2694, 1.442695
  %v2772 = vpow.pop %v2771
  %v2773 = vmul.f32 %v2695, 1.442695
  %v2774 = vpow.pop %v2773
  %v2775 = vmul.f32 %v2696, 1.442695
  %v2776 = vpow.pop %v2775
  %v2777 = vmul.f32 %v2697, 1.442695
  %v2778 = vpow.pop %v2777
  %v2779 = vmul.f32 %v2698, 1.442695
  %v2780 = vpow.pop %v2779
  %v2781 = vmul.f32 %v2699, 1.442695
  %v2782 = vpow.pop %v2781
  %v2783 = vmul.f32 %v2700, 1.442695
  %v2784 = vpow.pop %v2783
  %v2785 = vmul.f32 %v2701, 1.442695
  %v2786 = vpow.pop %v2785
  %v2787 = vmul.f32 %v2702, 1.442695
  %v2788 = vpow.pop %v2787
  %v2789 = vmul.f32 %v2703, 1.442695
  %v2790 = vpow.pop %v2789
  %v2791 = vmul.f32 %v2704, 1.442695
  %v2792 = vpow.pop %v2791
  %v2793 = vmul.f32 %v2705, 1.442695
  %v2794 = vpow.pop %v2793
  %v2795 = vmul.f32 %v2706, 1.442695
  %v2796 = vpow.pop %v2795
  %v2797 = vmul.f32 %v2707, 1.442695
  %v2798 = vpow.pop %v2797
  %v2799 = vmul.f32 %v2708, 1.442695
  %v2800 = vpow.pop %v2799
  %v2801 = vmul.f32 %v2709, 1.442695
  %v2802 = vpow.pop %v2801
  %v2803 = vmul.f32 %v2710, 1.442695
  %v2804 = vpow.pop %v2803
  %v2805 = vmul.f32 %v2711, 1.442695
  %v2806 = vpow.pop %v2805
  %v2807 = vmul.f32 %v2712, 1.442695
  %v2808 = vpow.pop %v2807
  %v2809 = vmul.f32 %v2713, 1.442695
  %v2810 = vpow.pop %v2809
  %v2811 = vmul.f32 %v2714, 1.442695
  %v2812 = vpow.pop %v2811
  %v2813 = vmul.f32 %v2715, 1.442695
  %v2814 = vpow.pop %v2813
  %v2815 = vmul.f32 %v2716, 1.442695
  %v2816 = vpow.pop %v2815
  %v2817 = vmul.f32 %v2717, 1.442695
  %v2818 = vpow.pop %v2817
  %v2819 = vmul.f32 %v2718, 1.442695
  %v2820 = vpow.pop %v2819
  %v2821 = vmul.f32 %v2719, 1.442695
  %v2822 = vpow.pop %v2821
  %v2823 = vmul.f32 %v2720, 1.442695
  %v2824 = vpow.pop %v2823
  %v2825 = vmul.f32 %v2721, 1.442695
  %v2826 = vpow.pop %v2825
  %v2827 = vmul.f32 %v2722, 1.442695
  %v2828 = vpow.pop %v2827
  %v2829 = vmul.f32 %v2723, 1.442695
  %v2830 = vpow.pop %v2829
  %v2831 = vmul.f32 %v2724, 1.442695
  %v2832 = vpow.pop %v2831
  %v2833 = vmul.f32 %v2725, 1.442695
  %v2834 = vpow.pop %v2833
  %v2835 = vmul.f32 %v2726, 1.442695
  %v2836 = vpow.pop %v2835
  %v2837 = vmul.f32 %v2727, 1.442695
  %v2838 = vpow.pop %v2837
  %v2839 = vmul.f32 %v2728, 1.442695
  %v2840 = vpow.pop %v2839
  %v2841 = vmul.f32 %v2729, 1.442695
  %v2842 = vpow.pop %v2841
  %v2843 = vmul.f32 %v2730, 1.442695
  %v2844 = vpow.pop %v2843
  %v2845 = vmul.f32 %v2731, 1.442695
  %v2846 = vpow.pop %v2845
  %v2847 = vmul.f32 %v2732, 1.442695
  %v2848 = vpow.pop %v2847
  %v2849 = vmul.f32 %v2733, 1.442695
  %v2850 = vpow.pop %v2849
  %v2851 = vmul.f32 %v2734, 1.442695
  %v2852 = vpow.pop %v2851
  %v2853 = vmul.f32 %v2735, 1.442695
  %v2854 = vpow.pop %v2853
  %v2855 = vmul.f32 %v2736, 1.442695
  %v2856 = vpow.pop %v2855
  %v2857 = vmul.f32 %v2737, 1.442695
  %v2858 = vpow.pop %v2857
  %v2859 = vmul.f32 %v2738, 1.442695
  %v2860 = vpow.pop %v2859
  %v2861 = vmul.f32 %v2739, 1.442695
  %v2862 = vpow.pop %v2861
  %v2863 = vmul.f32 %v2740, 1.442695
  %v2864 = vpow.pop %v2863
  %v2865 = vmul.f32 %v2741, 1.442695
  %v2866 = vpow.pop %v2865
  %v2867 = vmul.f32 %v2742, 1.442695
  %v2868 = vpow.pop %v2867
  %v2869 = vmul.f32 %v2743, 1.442695
  %v2870 = vpow.pop %v2869
  %v2871 = vmul.f32 %v2744, 1.442695
  %v2872 = vpow.pop %v2871
  %2937 = vrot.lane.b32.xlu0 %v2617, 1
  %v2938 = vpop.permute.xlu0 %2937
  %2939 = vrot.lane.b32.xlu0 %v2618, 1
  %v2940 = vpop.permute.xlu0 %2939
  %2941 = vrot.lane.b32.xlu0 %v2619, 1
  %v2942 = vpop.permute.xlu0 %2941
  %2943 = vrot.lane.b32.xlu0 %v2620, 1
  %v2944 = vpop.permute.xlu0 %2943
  %2945 = vrot.lane.b32.xlu0 %v2621, 1
  %v2946 = vpop.permute.xlu0 %2945
  %2947 = vrot.lane.b32.xlu0 %v2622, 1
  %v2948 = vpop.permute.xlu0 %2947
  %2949 = vrot.lane.b32.xlu0 %v2623, 1
  %v2950 = vpop.permute.xlu0 %2949
  %2951 = vrot.lane.b32.xlu0 %v2624, 1
  %v2952 = vpop.permute.xlu0 %2951
  %2953 = vrot.lane.b32.xlu0 %v2625, 1
  %v2954 = vpop.permute.xlu0 %2953
  %2955 = vrot.lane.b32.xlu0 %v2626, 1
  %v2956 = vpop.permute.xlu0 %2955
  %2957 = vrot.lane.b32.xlu0 %v2627, 1
  %v2958 = vpop.permute.xlu0 %2957
  %2959 = vrot.lane.b32.xlu0 %v2628, 1
  %v2960 = vpop.permute.xlu0 %2959
  %2961 = vrot.lane.b32.xlu0 %v2629, 1
  %v2962 = vpop.permute.xlu0 %2961
  %2963 = vrot.lane.b32.xlu0 %v2630, 1
  %v2964 = vpop.permute.xlu0 %2963
  %2965 = vrot.lane.b32.xlu0 %v2631, 1
  %v2966 = vpop.permute.xlu0 %2965
  %2967 = vrot.lane.b32.xlu0 %v2632, 1
  %v2968 = vpop.permute.xlu0 %2967
  %2969 = vrot.lane.b32.xlu0 %v2633, 1
  %v2970 = vpop.permute.xlu0 %2969
  %2971 = vrot.lane.b32.xlu0 %v2634, 1
  %v2972 = vpop.permute.xlu0 %2971
  %2973 = vrot.lane.b32.xlu0 %v2635, 1
  %v2974 = vpop.permute.xlu0 %2973
  %2975 = vrot.lane.b32.xlu0 %v2636, 1
  %v2976 = vpop.permute.xlu0 %2975
  %2977 = vrot.lane.b32.xlu0 %v2637, 1
  %v2978 = vpop.permute.xlu0 %2977
  %2979 = vrot.lane.b32.xlu0 %v2638, 1
  %v2980 = vpop.permute.xlu0 %2979
  %2981 = vrot.lane.b32.xlu0 %v2639, 1
  %v2982 = vpop.permute.xlu0 %2981
  %2983 = vrot.lane.b32.xlu0 %v2640, 1
  %v2984 = vpop.permute.xlu0 %2983
  %2985 = vrot.lane.b32.xlu0 %v2641, 1
  %v2986 = vpop.permute.xlu0 %2985
  %2987 = vrot.lane.b32.xlu0 %v2642, 1
  %v2988 = vpop.permute.xlu0 %2987
  %2989 = vrot.lane.b32.xlu0 %v2643, 1
  %v2990 = vpop.permute.xlu0 %2989
  %2991 = vrot.lane.b32.xlu0 %v2644, 1
  %v2992 = vpop.permute.xlu0 %2991
  %2993 = vrot.lane.b32.xlu0 %v2645, 1
  %v2994 = vpop.permute.xlu0 %2993
  %2995 = vrot.lane.b32.xlu0 %v2646, 1
  %v2996 = vpop.permute.xlu0 %2995
  %2997 = vrot.lane.b32.xlu0 %v2647, 1
  %v2998 = vpop.permute.xlu0 %2997
  %2999 = vrot.lane.b32.xlu0 %v2648, 1
  %v3000 = vpop.permute.xlu0 %2999
  %3001 = vrot.lane.b32.xlu0 %v2649, 1
  %v3002 = vpop.permute.xlu0 %3001
  %3003 = vrot.lane.b32.xlu0 %v2650, 1
  %v3004 = vpop.permute.xlu0 %3003
  %3005 = vrot.lane.b32.xlu0 %v2651, 1
  %v3006 = vpop.permute.xlu0 %3005
  %3007 = vrot.lane.b32.xlu0 %v2652, 1
  %v3008 = vpop.permute.xlu0 %3007
  %3009 = vrot.lane.b32.xlu0 %v2653, 1
  %v3010 = vpop.permute.xlu0 %3009
  %3011 = vrot.lane.b32.xlu0 %v2654, 1
  %v3012 = vpop.permute.xlu0 %3011
  %3013 = vrot.lane.b32.xlu0 %v2655, 1
  %v3014 = vpop.permute.xlu0 %3013
  %3015 = vrot.lane.b32.xlu0 %v2656, 1
  %v3016 = vpop.permute.xlu0 %3015
  %3017 = vrot.lane.b32.xlu0 %v2657, 1
  %v3018 = vpop.permute.xlu0 %3017
  %3019 = vrot.lane.b32.xlu0 %v2658, 1
  %v3020 = vpop.permute.xlu0 %3019
  %3021 = vrot.lane.b32.xlu0 %v2659, 1
  %v3022 = vpop.permute.xlu0 %3021
  %3023 = vrot.lane.b32.xlu0 %v2660, 1
  %v3024 = vpop.permute.xlu0 %3023
  %3025 = vrot.lane.b32.xlu0 %v2661, 1
  %v3026 = vpop.permute.xlu0 %3025
  %3027 = vrot.lane.b32.xlu0 %v2662, 1
  %v3028 = vpop.permute.xlu0 %3027
  %3029 = vrot.lane.b32.xlu0 %v2663, 1
  %v3030 = vpop.permute.xlu0 %3029
  %3031 = vrot.lane.b32.xlu0 %v2664, 1
  %v3032 = vpop.permute.xlu0 %3031
  %3033 = vrot.lane.b32.xlu0 %v2665, 1
  %v3034 = vpop.permute.xlu0 %3033
  %3035 = vrot.lane.b32.xlu0 %v2666, 1
  %v3036 = vpop.permute.xlu0 %3035
  %3037 = vrot.lane.b32.xlu0 %v2667, 1
  %v3038 = vpop.permute.xlu0 %3037
  %3039 = vrot.lane.b32.xlu0 %v2668, 1
  %v3040 = vpop.permute.xlu0 %3039
  %3041 = vrot.lane.b32.xlu0 %v2669, 1
  %v3042 = vpop.permute.xlu0 %3041
  %3043 = vrot.lane.b32.xlu0 %v2670, 1
  %v3044 = vpop.permute.xlu0 %3043
  %3045 = vrot.lane.b32.xlu0 %v2671, 1
  %v3046 = vpop.permute.xlu0 %3045
  %3047 = vrot.lane.b32.xlu0 %v2672, 1
  %v3048 = vpop.permute.xlu0 %3047
  %3049 = vrot.lane.b32.xlu0 %v2673, 1
  %v3050 = vpop.permute.xlu0 %3049
  %3051 = vrot.lane.b32.xlu0 %v2674, 1
  %v3052 = vpop.permute.xlu0 %3051
  %3053 = vrot.lane.b32.xlu0 %v2675, 1
  %v3054 = vpop.permute.xlu0 %3053
  %3055 = vrot.lane.b32.xlu0 %v2676, 1
  %v3056 = vpop.permute.xlu0 %3055
  %3057 = vrot.lane.b32.xlu0 %v2677, 1
  %v3058 = vpop.permute.xlu0 %3057
  %3059 = vrot.lane.b32.xlu0 %v2678, 1
  %v3060 = vpop.permute.xlu0 %3059
  %3061 = vrot.lane.b32.xlu0 %v2679, 1
  %v3062 = vpop.permute.xlu0 %3061
  %3063 = vrot.lane.b32.xlu0 %v2680, 1
  %v3064 = vpop.permute.xlu0 %3063
  %v3129 = vsub.f32 %v2043, %v2938
  %v3130 = vsub.f32 %v2048, %v2940
  %v3131 = vsub.f32 %v2053, %v2942
  %v3132 = vsub.f32 %v2058, %v2944
  %v3133 = vsub.f32 %v2063, %v2946
  %v3134 = vsub.f32 %v2068, %v2948
  %v3135 = vsub.f32 %v2073, %v2950
  %v3136 = vsub.f32 %v2078, %v2952
  %v3137 = vsub.f32 %v2083, %v2954
  %v3138 = vsub.f32 %v2088, %v2956
  %v3139 = vsub.f32 %v2093, %v2958
  %v3140 = vsub.f32 %v2098, %v2960
  %v3141 = vsub.f32 %v2103, %v2962
  %v3142 = vsub.f32 %v2108, %v2964
  %v3143 = vsub.f32 %v2113, %v2966
  %v3144 = vsub.f32 %v2118, %v2968
  %v3145 = vsub.f32 %v2123, %v2970
  %v3146 = vsub.f32 %v2128, %v2972
  %v3147 = vsub.f32 %v2133, %v2974
  %v3148 = vsub.f32 %v2138, %v2976
  %v3149 = vsub.f32 %v2143, %v2978
  %v3150 = vsub.f32 %v2148, %v2980
  %v3151 = vsub.f32 %v2153, %v2982
  %v3152 = vsub.f32 %v2158, %v2984
  %v3153 = vsub.f32 %v2163, %v2986
  %v3154 = vsub.f32 %v2168, %v2988
  %v3155 = vsub.f32 %v2173, %v2990
  %v3156 = vsub.f32 %v2178, %v2992
  %v3157 = vsub.f32 %v2183, %v2994
  %v3158 = vsub.f32 %v2188, %v2996
  %v3159 = vsub.f32 %v2193, %v2998
  %v3160 = vsub.f32 %v2198, %v3000
  %v3161 = vsub.f32 %v2203, %v3002
  %v3162 = vsub.f32 %v2208, %v3004
  %v3163 = vsub.f32 %v2213, %v3006
  %v3164 = vsub.f32 %v2218, %v3008
  %v3165 = vsub.f32 %v2223, %v3010
  %v3166 = vsub.f32 %v2228, %v3012
  %v3167 = vsub.f32 %v2233, %v3014
  %v3168 = vsub.f32 %v2238, %v3016
  %v3169 = vsub.f32 %v2243, %v3018
  %v3170 = vsub.f32 %v2248, %v3020
  %v3171 = vsub.f32 %v2253, %v3022
  %v3172 = vsub.f32 %v2258, %v3024
  %v3173 = vsub.f32 %v2263, %v3026
  %v3174 = vsub.f32 %v2268, %v3028
  %v3175 = vsub.f32 %v2273, %v3030
  %v3176 = vsub.f32 %v2278, %v3032
  %v3177 = vsub.f32 %v2283, %v3034
  %v3178 = vsub.f32 %v2288, %v3036
  %v3179 = vsub.f32 %v2293, %v3038
  %v3180 = vsub.f32 %v2298, %v3040
  %v3181 = vsub.f32 %v2303, %v3042
  %v3182 = vsub.f32 %v2308, %v3044
  %v3183 = vsub.f32 %v2313, %v3046
  %v3184 = vsub.f32 %v2318, %v3048
  %v3185 = vsub.f32 %v2323, %v3050
  %v3186 = vsub.f32 %v2328, %v3052
  %v3187 = vsub.f32 %v2333, %v3054
  %v3188 = vsub.f32 %v2338, %v3056
  %v3189 = vsub.f32 %v2343, %v3058
  %v3190 = vsub.f32 %v2348, %v3060
  %v3191 = vsub.f32 %v2353, %v3062
  %v3192 = vsub.f32 %v2358, %v3064
  %v3193 = vmul.f32 %v3129, 1.442695
  %v3194 = vpow.pop %v3193
  %v3195 = vmul.f32 %v3130, 1.442695
  %v3196 = vpow.pop %v3195
  %v3197 = vmul.f32 %v3131, 1.442695
  %v3198 = vpow.pop %v3197
  %v3199 = vmul.f32 %v3132, 1.442695
  %v3200 = vpow.pop %v3199
  %v3201 = vmul.f32 %v3133, 1.442695
  %v3202 = vpow.pop %v3201
  %v3203 = vmul.f32 %v3134, 1.442695
  %v3204 = vpow.pop %v3203
  %v3205 = vmul.f32 %v3135, 1.442695
  %v3206 = vpow.pop %v3205
  %v3207 = vmul.f32 %v3136, 1.442695
  %v3208 = vpow.pop %v3207
  %v3209 = vmul.f32 %v3137, 1.442695
  %v3210 = vpow.pop %v3209
  %v3211 = vmul.f32 %v3138, 1.442695
  %v3212 = vpow.pop %v3211
  %v3213 = vmul.f32 %v3139, 1.442695
  %v3214 = vpow.pop %v3213
  %v3215 = vmul.f32 %v3140, 1.442695
  %v3216 = vpow.pop %v3215
  %v3217 = vmul.f32 %v3141, 1.442695
  %v3218 = vpow.pop %v3217
  %v3219 = vmul.f32 %v3142, 1.442695
  %v3220 = vpow.pop %v3219
  %v3221 = vmul.f32 %v3143, 1.442695
  %v3222 = vpow.pop %v3221
  %v3223 = vmul.f32 %v3144, 1.442695
  %v3224 = vpow.pop %v3223
  %v3225 = vmul.f32 %v3145, 1.442695
  %v3226 = vpow.pop %v3225
  %v3227 = vmul.f32 %v3146, 1.442695
  %v3228 = vpow.pop %v3227
  %v3229 = vmul.f32 %v3147, 1.442695
  %v3230 = vpow.pop %v3229
  %v3231 = vmul.f32 %v3148, 1.442695
  %v3232 = vpow.pop %v3231
  %v3233 = vmul.f32 %v3149, 1.442695
  %v3234 = vpow.pop %v3233
  %v3235 = vmul.f32 %v3150, 1.442695
  %v3236 = vpow.pop %v3235
  %v3237 = vmul.f32 %v3151, 1.442695
  %v3238 = vpow.pop %v3237
  %v3239 = vmul.f32 %v3152, 1.442695
  %v3240 = vpow.pop %v3239
  %v3241 = vmul.f32 %v3153, 1.442695
  %v3242 = vpow.pop %v3241
  %v3243 = vmul.f32 %v3154, 1.442695
  %v3244 = vpow.pop %v3243
  %v3245 = vmul.f32 %v3155, 1.442695
  %v3246 = vpow.pop %v3245
  %v3247 = vmul.f32 %v3156, 1.442695
  %v3248 = vpow.pop %v3247
  %v3249 = vmul.f32 %v3157, 1.442695
  %v3250 = vpow.pop %v3249
  %v3251 = vmul.f32 %v3158, 1.442695
  %v3252 = vpow.pop %v3251
  %v3253 = vmul.f32 %v3159, 1.442695
  %v3254 = vpow.pop %v3253
  %v3255 = vmul.f32 %v3160, 1.442695
  %v3256 = vpow.pop %v3255
  %v3257 = vmul.f32 %v3161, 1.442695
  %v3258 = vpow.pop %v3257
  %v3259 = vmul.f32 %v3162, 1.442695
  %v3260 = vpow.pop %v3259
  %v3261 = vmul.f32 %v3163, 1.442695
  %v3262 = vpow.pop %v3261
  %v3263 = vmul.f32 %v3164, 1.442695
  %v3264 = vpow.pop %v3263
  %v3265 = vmul.f32 %v3165, 1.442695
  %v3266 = vpow.pop %v3265
  %v3267 = vmul.f32 %v3166, 1.442695
  %v3268 = vpow.pop %v3267
  %v3269 = vmul.f32 %v3167, 1.442695
  %v3270 = vpow.pop %v3269
  %v3271 = vmul.f32 %v3168, 1.442695
  %v3272 = vpow.pop %v3271
  %v3273 = vmul.f32 %v3169, 1.442695
  %v3274 = vpow.pop %v3273
  %v3275 = vmul.f32 %v3170, 1.442695
  %v3276 = vpow.pop %v3275
  %v3277 = vmul.f32 %v3171, 1.442695
  %v3278 = vpow.pop %v3277
  %v3279 = vmul.f32 %v3172, 1.442695
  %v3280 = vpow.pop %v3279
  %v3281 = vmul.f32 %v3173, 1.442695
  %v3282 = vpow.pop %v3281
  %v3283 = vmul.f32 %v3174, 1.442695
  %v3284 = vpow.pop %v3283
  %v3285 = vmul.f32 %v3175, 1.442695
  %v3286 = vpow.pop %v3285
  %v3287 = vmul.f32 %v3176, 1.442695
  %v3288 = vpow.pop %v3287
  %v3289 = vmul.f32 %v3177, 1.442695
  %v3290 = vpow.pop %v3289
  %v3291 = vmul.f32 %v3178, 1.442695
  %v3292 = vpow.pop %v3291
  %v3293 = vmul.f32 %v3179, 1.442695
  %v3294 = vpow.pop %v3293
  %v3295 = vmul.f32 %v3180, 1.442695
  %v3296 = vpow.pop %v3295
  %v3297 = vmul.f32 %v3181, 1.442695
  %v3298 = vpow.pop %v3297
  %v3299 = vmul.f32 %v3182, 1.442695
  %v3300 = vpow.pop %v3299
  %v3301 = vmul.f32 %v3183, 1.442695
  %v3302 = vpow.pop %v3301
  %v3303 = vmul.f32 %v3184, 1.442695
  %v3304 = vpow.pop %v3303
  %v3305 = vmul.f32 %v3185, 1.442695
  %v3306 = vpow.pop %v3305
  %v3307 = vmul.f32 %v3186, 1.442695
  %v3308 = vpow.pop %v3307
  %v3309 = vmul.f32 %v3187, 1.442695
  %v3310 = vpow.pop %v3309
  %v3311 = vmul.f32 %v3188, 1.442695
  %v3312 = vpow.pop %v3311
  %v3313 = vmul.f32 %v3189, 1.442695
  %v3314 = vpow.pop %v3313
  %v3315 = vmul.f32 %v3190, 1.442695
  %v3316 = vpow.pop %v3315
  %v3317 = vmul.f32 %v3191, 1.442695
  %v3318 = vpow.pop %v3317
  %v3319 = vmul.f32 %v3192, 1.442695
  %v3320 = vpow.pop %v3319
  %3385 = vrot.lane.b32.xlu0 %v3194, 127
  %v3386 = vpop.permute.xlu0 %3385
  %3387 = vrot.lane.b32.xlu0 %v3196, 127
  %v3388 = vpop.permute.xlu0 %3387
  %3389 = vrot.lane.b32.xlu0 %v3198, 127
  %v3390 = vpop.permute.xlu0 %3389
  %3391 = vrot.lane.b32.xlu0 %v3200, 127
  %v3392 = vpop.permute.xlu0 %3391
  %3393 = vrot.lane.b32.xlu0 %v3202, 127
  %v3394 = vpop.permute.xlu0 %3393
  %3395 = vrot.lane.b32.xlu0 %v3204, 127
  %v3396 = vpop.permute.xlu0 %3395
  %3397 = vrot.lane.b32.xlu0 %v3206, 127
  %v3398 = vpop.permute.xlu0 %3397
  %3399 = vrot.lane.b32.xlu0 %v3208, 127
  %v3400 = vpop.permute.xlu0 %3399
  %3401 = vrot.lane.b32.xlu0 %v3210, 127
  %v3402 = vpop.permute.xlu0 %3401
  %3403 = vrot.lane.b32.xlu0 %v3212, 127
  %v3404 = vpop.permute.xlu0 %3403
  %3405 = vrot.lane.b32.xlu0 %v3214, 127
  %v3406 = vpop.permute.xlu0 %3405
  %3407 = vrot.lane.b32.xlu0 %v3216, 127
  %v3408 = vpop.permute.xlu0 %3407
  %3409 = vrot.lane.b32.xlu0 %v3218, 127
  %v3410 = vpop.permute.xlu0 %3409
  %3411 = vrot.lane.b32.xlu0 %v3220, 127
  %v3412 = vpop.permute.xlu0 %3411
  %3413 = vrot.lane.b32.xlu0 %v3222, 127
  %v3414 = vpop.permute.xlu0 %3413
  %3415 = vrot.lane.b32.xlu0 %v3224, 127
  %v3416 = vpop.permute.xlu0 %3415
  %3417 = vrot.lane.b32.xlu0 %v3226, 127
  %v3418 = vpop.permute.xlu0 %3417
  %3419 = vrot.lane.b32.xlu0 %v3228, 127
  %v3420 = vpop.permute.xlu0 %3419
  %3421 = vrot.lane.b32.xlu0 %v3230, 127
  %v3422 = vpop.permute.xlu0 %3421
  %3423 = vrot.lane.b32.xlu0 %v3232, 127
  %v3424 = vpop.permute.xlu0 %3423
  %3425 = vrot.lane.b32.xlu0 %v3234, 127
  %v3426 = vpop.permute.xlu0 %3425
  %3427 = vrot.lane.b32.xlu0 %v3236, 127
  %v3428 = vpop.permute.xlu0 %3427
  %3429 = vrot.lane.b32.xlu0 %v3238, 127
  %v3430 = vpop.permute.xlu0 %3429
  %3431 = vrot.lane.b32.xlu0 %v3240, 127
  %v3432 = vpop.permute.xlu0 %3431
  %3433 = vrot.lane.b32.xlu0 %v3242, 127
  %v3434 = vpop.permute.xlu0 %3433
  %3435 = vrot.lane.b32.xlu0 %v3244, 127
  %v3436 = vpop.permute.xlu0 %3435
  %3437 = vrot.lane.b32.xlu0 %v3246, 127
  %v3438 = vpop.permute.xlu0 %3437
  %3439 = vrot.lane.b32.xlu0 %v3248, 127
  %v3440 = vpop.permute.xlu0 %3439
  %3441 = vrot.lane.b32.xlu0 %v3250, 127
  %v3442 = vpop.permute.xlu0 %3441
  %3443 = vrot.lane.b32.xlu0 %v3252, 127
  %v3444 = vpop.permute.xlu0 %3443
  %3445 = vrot.lane.b32.xlu0 %v3254, 127
  %v3446 = vpop.permute.xlu0 %3445
  %3447 = vrot.lane.b32.xlu0 %v3256, 127
  %v3448 = vpop.permute.xlu0 %3447
  %3449 = vrot.lane.b32.xlu0 %v3258, 127
  %v3450 = vpop.permute.xlu0 %3449
  %3451 = vrot.lane.b32.xlu0 %v3260, 127
  %v3452 = vpop.permute.xlu0 %3451
  %3453 = vrot.lane.b32.xlu0 %v3262, 127
  %v3454 = vpop.permute.xlu0 %3453
  %3455 = vrot.lane.b32.xlu0 %v3264, 127
  %v3456 = vpop.permute.xlu0 %3455
  %3457 = vrot.lane.b32.xlu0 %v3266, 127
  %v3458 = vpop.permute.xlu0 %3457
  %3459 = vrot.lane.b32.xlu0 %v3268, 127
  %v3460 = vpop.permute.xlu0 %3459
  %3461 = vrot.lane.b32.xlu0 %v3270, 127
  %v3462 = vpop.permute.xlu0 %3461
  %3463 = vrot.lane.b32.xlu0 %v3272, 127
  %v3464 = vpop.permute.xlu0 %3463
  %3465 = vrot.lane.b32.xlu0 %v3274, 127
  %v3466 = vpop.permute.xlu0 %3465
  %3467 = vrot.lane.b32.xlu0 %v3276, 127
  %v3468 = vpop.permute.xlu0 %3467
  %3469 = vrot.lane.b32.xlu0 %v3278, 127
  %v3470 = vpop.permute.xlu0 %3469
  %3471 = vrot.lane.b32.xlu0 %v3280, 127
  %v3472 = vpop.permute.xlu0 %3471
  %3473 = vrot.lane.b32.xlu0 %v3282, 127
  %v3474 = vpop.permute.xlu0 %3473
  %3475 = vrot.lane.b32.xlu0 %v3284, 127
  %v3476 = vpop.permute.xlu0 %3475
  %3477 = vrot.lane.b32.xlu0 %v3286, 127
  %v3478 = vpop.permute.xlu0 %3477
  %3479 = vrot.lane.b32.xlu0 %v3288, 127
  %v3480 = vpop.permute.xlu0 %3479
  %3481 = vrot.lane.b32.xlu0 %v3290, 127
  %v3482 = vpop.permute.xlu0 %3481
  %3483 = vrot.lane.b32.xlu0 %v3292, 127
  %v3484 = vpop.permute.xlu0 %3483
  %3485 = vrot.lane.b32.xlu0 %v3294, 127
  %v3486 = vpop.permute.xlu0 %3485
  %3487 = vrot.lane.b32.xlu0 %v3296, 127
  %v3488 = vpop.permute.xlu0 %3487
  %3489 = vrot.lane.b32.xlu0 %v3298, 127
  %v3490 = vpop.permute.xlu0 %3489
  %3491 = vrot.lane.b32.xlu0 %v3300, 127
  %v3492 = vpop.permute.xlu0 %3491
  %3493 = vrot.lane.b32.xlu0 %v3302, 127
  %v3494 = vpop.permute.xlu0 %3493
  %3495 = vrot.lane.b32.xlu0 %v3304, 127
  %v3496 = vpop.permute.xlu0 %3495
  %3497 = vrot.lane.b32.xlu0 %v3306, 127
  %v3498 = vpop.permute.xlu0 %3497
  %3499 = vrot.lane.b32.xlu0 %v3308, 127
  %v3500 = vpop.permute.xlu0 %3499
  %3501 = vrot.lane.b32.xlu0 %v3310, 127
  %v3502 = vpop.permute.xlu0 %3501
  %3503 = vrot.lane.b32.xlu0 %v3312, 127
  %v3504 = vpop.permute.xlu0 %3503
  %3505 = vrot.lane.b32.xlu0 %v3314, 127
  %v3506 = vpop.permute.xlu0 %3505
  %3507 = vrot.lane.b32.xlu0 %v3316, 127
  %v3508 = vpop.permute.xlu0 %3507
  %3509 = vrot.lane.b32.xlu0 %v3318, 127
  %v3510 = vpop.permute.xlu0 %3509
  %3511 = vrot.lane.b32.xlu0 %v3320, 127
  %v3512 = vpop.permute.xlu0 %3511
  %v3577 = vadd.f32 %v2746, %v3386
  %v3578 = vadd.f32 %v2748, %v3388
  %v3579 = vadd.f32 %v2750, %v3390
  %v3580 = vadd.f32 %v2752, %v3392
  %v3581 = vadd.f32 %v2754, %v3394
  %v3582 = vadd.f32 %v2756, %v3396
  %v3583 = vadd.f32 %v2758, %v3398
  %v3584 = vadd.f32 %v2760, %v3400
  %v3585 = vadd.f32 %v2762, %v3402
  %v3586 = vadd.f32 %v2764, %v3404
  %v3587 = vadd.f32 %v2766, %v3406
  %v3588 = vadd.f32 %v2768, %v3408
  %v3589 = vadd.f32 %v2770, %v3410
  %v3590 = vadd.f32 %v2772, %v3412
  %v3591 = vadd.f32 %v2774, %v3414
  %v3592 = vadd.f32 %v2776, %v3416
  %v3593 = vadd.f32 %v2778, %v3418
  %v3594 = vadd.f32 %v2780, %v3420
  %v3595 = vadd.f32 %v2782, %v3422
  %v3596 = vadd.f32 %v2784, %v3424
  %v3597 = vadd.f32 %v2786, %v3426
  %v3598 = vadd.f32 %v2788, %v3428
  %v3599 = vadd.f32 %v2790, %v3430
  %v3600 = vadd.f32 %v2792, %v3432
  %v3601 = vadd.f32 %v2794, %v3434
  %v3602 = vadd.f32 %v2796, %v3436
  %v3603 = vadd.f32 %v2798, %v3438
  %v3604 = vadd.f32 %v2800, %v3440
  %v3605 = vadd.f32 %v2802, %v3442
  %v3606 = vadd.f32 %v2804, %v3444
  %v3607 = vadd.f32 %v2806, %v3446
  %v3608 = vadd.f32 %v2808, %v3448
  %v3609 = vadd.f32 %v2810, %v3450
  %v3610 = vadd.f32 %v2812, %v3452
  %v3611 = vadd.f32 %v2814, %v3454
  %v3612 = vadd.f32 %v2816, %v3456
  %v3613 = vadd.f32 %v2818, %v3458
  %v3614 = vadd.f32 %v2820, %v3460
  %v3615 = vadd.f32 %v2822, %v3462
  %v3616 = vadd.f32 %v2824, %v3464
  %v3617 = vadd.f32 %v2826, %v3466
  %v3618 = vadd.f32 %v2828, %v3468
  %v3619 = vadd.f32 %v2830, %v3470
  %v3620 = vadd.f32 %v2832, %v3472
  %v3621 = vadd.f32 %v2834, %v3474
  %v3622 = vadd.f32 %v2836, %v3476
  %v3623 = vadd.f32 %v2838, %v3478
  %v3624 = vadd.f32 %v2840, %v3480
  %v3625 = vadd.f32 %v2842, %v3482
  %v3626 = vadd.f32 %v2844, %v3484
  %v3627 = vadd.f32 %v2846, %v3486
  %v3628 = vadd.f32 %v2848, %v3488
  %v3629 = vadd.f32 %v2850, %v3490
  %v3630 = vadd.f32 %v2852, %v3492
  %v3631 = vadd.f32 %v2854, %v3494
  %v3632 = vadd.f32 %v2856, %v3496
  %v3633 = vadd.f32 %v2858, %v3498
  %v3634 = vadd.f32 %v2860, %v3500
  %v3635 = vadd.f32 %v2862, %v3502
  %v3636 = vadd.f32 %v2864, %v3504
  %v3637 = vadd.f32 %v2866, %v3506
  %v3638 = vadd.f32 %v2868, %v3508
  %v3639 = vadd.f32 %v2870, %v3510
  %v3640 = vadd.f32 %v2872, %v3512
  %v3641 = vlog2.pop %v3577
  %v3642 = vmul.f32 %v3641, 0.6931472
  %v3643 = vlog2.pop %v3578
  %v3644 = vmul.f32 %v3643, 0.6931472
  %v3645 = vlog2.pop %v3579
  %v3646 = vmul.f32 %v3645, 0.6931472
  %v3647 = vlog2.pop %v3580
  %v3648 = vmul.f32 %v3647, 0.6931472
  %v3649 = vlog2.pop %v3581
  %v3650 = vmul.f32 %v3649, 0.6931472
  %v3651 = vlog2.pop %v3582
  %v3652 = vmul.f32 %v3651, 0.6931472
  %v3653 = vlog2.pop %v3583
  %v3654 = vmul.f32 %v3653, 0.6931472
  %v3655 = vlog2.pop %v3584
  %v3656 = vmul.f32 %v3655, 0.6931472
  %v3657 = vlog2.pop %v3585
  %v3658 = vmul.f32 %v3657, 0.6931472
  %v3659 = vlog2.pop %v3586
  %v3660 = vmul.f32 %v3659, 0.6931472
  %v3661 = vlog2.pop %v3587
  %v3662 = vmul.f32 %v3661, 0.6931472
  %v3663 = vlog2.pop %v3588
  %v3664 = vmul.f32 %v3663, 0.6931472
  %v3665 = vlog2.pop %v3589
  %v3666 = vmul.f32 %v3665, 0.6931472
  %v3667 = vlog2.pop %v3590
  %v3668 = vmul.f32 %v3667, 0.6931472
  %v3669 = vlog2.pop %v3591
  %v3670 = vmul.f32 %v3669, 0.6931472
  %v3671 = vlog2.pop %v3592
  %v3672 = vmul.f32 %v3671, 0.6931472
  %v3673 = vlog2.pop %v3593
  %v3674 = vmul.f32 %v3673, 0.6931472
  %v3675 = vlog2.pop %v3594
  %v3676 = vmul.f32 %v3675, 0.6931472
  %v3677 = vlog2.pop %v3595
  %v3678 = vmul.f32 %v3677, 0.6931472
  %v3679 = vlog2.pop %v3596
  %v3680 = vmul.f32 %v3679, 0.6931472
  %v3681 = vlog2.pop %v3597
  %v3682 = vmul.f32 %v3681, 0.6931472
  %v3683 = vlog2.pop %v3598
  %v3684 = vmul.f32 %v3683, 0.6931472
  %v3685 = vlog2.pop %v3599
  %v3686 = vmul.f32 %v3685, 0.6931472
  %v3687 = vlog2.pop %v3600
  %v3688 = vmul.f32 %v3687, 0.6931472
  %v3689 = vlog2.pop %v3601
  %v3690 = vmul.f32 %v3689, 0.6931472
  %v3691 = vlog2.pop %v3602
  %v3692 = vmul.f32 %v3691, 0.6931472
  %v3693 = vlog2.pop %v3603
  %v3694 = vmul.f32 %v3693, 0.6931472
  %v3695 = vlog2.pop %v3604
  %v3696 = vmul.f32 %v3695, 0.6931472
  %v3697 = vlog2.pop %v3605
  %v3698 = vmul.f32 %v3697, 0.6931472
  %v3699 = vlog2.pop %v3606
  %v3700 = vmul.f32 %v3699, 0.6931472
  %v3701 = vlog2.pop %v3607
  %v3702 = vmul.f32 %v3701, 0.6931472
  %v3703 = vlog2.pop %v3608
  %v3704 = vmul.f32 %v3703, 0.6931472
  %v3705 = vlog2.pop %v3609
  %v3706 = vmul.f32 %v3705, 0.6931472
  %v3707 = vlog2.pop %v3610
  %v3708 = vmul.f32 %v3707, 0.6931472
  %v3709 = vlog2.pop %v3611
  %v3710 = vmul.f32 %v3709, 0.6931472
  %v3711 = vlog2.pop %v3612
  %v3712 = vmul.f32 %v3711, 0.6931472
  %v3713 = vlog2.pop %v3613
  %v3714 = vmul.f32 %v3713, 0.6931472
  %v3715 = vlog2.pop %v3614
  %v3716 = vmul.f32 %v3715, 0.6931472
  %v3717 = vlog2.pop %v3615
  %v3718 = vmul.f32 %v3717, 0.6931472
  %v3719 = vlog2.pop %v3616
  %v3720 = vmul.f32 %v3719, 0.6931472
  %v3721 = vlog2.pop %v3617
  %v3722 = vmul.f32 %v3721, 0.6931472
  %v3723 = vlog2.pop %v3618
  %v3724 = vmul.f32 %v3723, 0.6931472
  %v3725 = vlog2.pop %v3619
  %v3726 = vmul.f32 %v3725, 0.6931472
  %v3727 = vlog2.pop %v3620
  %v3728 = vmul.f32 %v3727, 0.6931472
  %v3729 = vlog2.pop %v3621
  %v3730 = vmul.f32 %v3729, 0.6931472
  %v3731 = vlog2.pop %v3622
  %v3732 = vmul.f32 %v3731, 0.6931472
  %v3733 = vlog2.pop %v3623
  %v3734 = vmul.f32 %v3733, 0.6931472
  %v3735 = vlog2.pop %v3624
  %v3736 = vmul.f32 %v3735, 0.6931472
  %v3737 = vlog2.pop %v3625
  %v3738 = vmul.f32 %v3737, 0.6931472
  %v3739 = vlog2.pop %v3626
  %v3740 = vmul.f32 %v3739, 0.6931472
  %v3741 = vlog2.pop %v3627
  %v3742 = vmul.f32 %v3741, 0.6931472
  %v3743 = vlog2.pop %v3628
  %v3744 = vmul.f32 %v3743, 0.6931472
  %v3745 = vlog2.pop %v3629
  %v3746 = vmul.f32 %v3745, 0.6931472
  %v3747 = vlog2.pop %v3630
  %v3748 = vmul.f32 %v3747, 0.6931472
  %v3749 = vlog2.pop %v3631
  %v3750 = vmul.f32 %v3749, 0.6931472
  %v3751 = vlog2.pop %v3632
  %v3752 = vmul.f32 %v3751, 0.6931472
  %v3753 = vlog2.pop %v3633
  %v3754 = vmul.f32 %v3753, 0.6931472
  %v3755 = vlog2.pop %v3634
  %v3756 = vmul.f32 %v3755, 0.6931472
  %v3757 = vlog2.pop %v3635
  %v3758 = vmul.f32 %v3757, 0.6931472
  %v3759 = vlog2.pop %v3636
  %v3760 = vmul.f32 %v3759, 0.6931472
  %v3761 = vlog2.pop %v3637
  %v3762 = vmul.f32 %v3761, 0.6931472
  %v3763 = vlog2.pop %v3638
  %v3764 = vmul.f32 %v3763, 0.6931472
  %v3765 = vlog2.pop %v3639
  %v3766 = vmul.f32 %v3765, 0.6931472
  %v3767 = vlog2.pop %v3640
  %v3768 = vmul.f32 %v3767, 0.6931472
  %v3769 = vadd.f32 %v2617, %v3642
  %v3770 = vadd.f32 %v2618, %v3644
  %v3771 = vadd.f32 %v2619, %v3646
  %v3772 = vadd.f32 %v2620, %v3648
  %v3773 = vadd.f32 %v2621, %v3650
  %v3774 = vadd.f32 %v2622, %v3652
  %v3775 = vadd.f32 %v2623, %v3654
  %v3776 = vadd.f32 %v2624, %v3656
  %v3777 = vadd.f32 %v2625, %v3658
  %v3778 = vadd.f32 %v2626, %v3660
  %v3779 = vadd.f32 %v2627, %v3662
  %v3780 = vadd.f32 %v2628, %v3664
  %v3781 = vadd.f32 %v2629, %v3666
  %v3782 = vadd.f32 %v2630, %v3668
  %v3783 = vadd.f32 %v2631, %v3670
  %v3784 = vadd.f32 %v2632, %v3672
  %v3785 = vadd.f32 %v2633, %v3674
  %v3786 = vadd.f32 %v2634, %v3676
  %v3787 = vadd.f32 %v2635, %v3678
  %v3788 = vadd.f32 %v2636, %v3680
  %v3789 = vadd.f32 %v2637, %v3682
  %v3790 = vadd.f32 %v2638, %v3684
  %v3791 = vadd.f32 %v2639, %v3686
  %v3792 = vadd.f32 %v2640, %v3688
  %v3793 = vadd.f32 %v2641, %v3690
  %v3794 = vadd.f32 %v2642, %v3692
  %v3795 = vadd.f32 %v2643, %v3694
  %v3796 = vadd.f32 %v2644, %v3696
  %v3797 = vadd.f32 %v2645, %v3698
  %v3798 = vadd.f32 %v2646, %v3700
  %v3799 = vadd.f32 %v2647, %v3702
  %v3800 = vadd.f32 %v2648, %v3704
  %v3801 = vadd.f32 %v2649, %v3706
  %v3802 = vadd.f32 %v2650, %v3708
  %v3803 = vadd.f32 %v2651, %v3710
  %v3804 = vadd.f32 %v2652, %v3712
  %v3805 = vadd.f32 %v2653, %v3714
  %v3806 = vadd.f32 %v2654, %v3716
  %v3807 = vadd.f32 %v2655, %v3718
  %v3808 = vadd.f32 %v2656, %v3720
  %v3809 = vadd.f32 %v2657, %v3722
  %v3810 = vadd.f32 %v2658, %v3724
  %v3811 = vadd.f32 %v2659, %v3726
  %v3812 = vadd.f32 %v2660, %v3728
  %v3813 = vadd.f32 %v2661, %v3730
  %v3814 = vadd.f32 %v2662, %v3732
  %v3815 = vadd.f32 %v2663, %v3734
  %v3816 = vadd.f32 %v2664, %v3736
  %v3817 = vadd.f32 %v2665, %v3738
  %v3818 = vadd.f32 %v2666, %v3740
  %v3819 = vadd.f32 %v2667, %v3742
  %v3820 = vadd.f32 %v2668, %v3744
  %v3821 = vadd.f32 %v2669, %v3746
  %v3822 = vadd.f32 %v2670, %v3748
  %v3823 = vadd.f32 %v2671, %v3750
  %v3824 = vadd.f32 %v2672, %v3752
  %v3825 = vadd.f32 %v2673, %v3754
  %v3826 = vadd.f32 %v2674, %v3756
  %v3827 = vadd.f32 %v2675, %v3758
  %v3828 = vadd.f32 %v2676, %v3760
  %v3829 = vadd.f32 %v2677, %v3762
  %v3830 = vadd.f32 %v2678, %v3764
  %v3831 = vadd.f32 %v2679, %v3766
  %v3832 = vadd.f32 %v2680, %v3768
  %3834 = vset.pattern.permute.xlu0 0
  %3835 = vperm.xlu0 %3834, %v3769
  %v3836 = vpop.permute.xlu0 %3835
  %3839 = vset.pattern.permute.xlu0 0
  %3840 = vperm.xlu0 %3839, %v3770
  %v3841 = vpop.permute.xlu0 %3840
  %3844 = vset.pattern.permute.xlu0 0
  %3845 = vperm.xlu0 %3844, %v3771
  %v3846 = vpop.permute.xlu0 %3845
  %3849 = vset.pattern.permute.xlu0 0
  %3850 = vperm.xlu0 %3849, %v3772
  %v3851 = vpop.permute.xlu0 %3850
  %3854 = vset.pattern.permute.xlu0 0
  %3855 = vperm.xlu0 %3854, %v3773
  %v3856 = vpop.permute.xlu0 %3855
  %3859 = vset.pattern.permute.xlu0 0
  %3860 = vperm.xlu0 %3859, %v3774
  %v3861 = vpop.permute.xlu0 %3860
  %3864 = vset.pattern.permute.xlu0 0
  %3865 = vperm.xlu0 %3864, %v3775
  %v3866 = vpop.permute.xlu0 %3865
  %3869 = vset.pattern.permute.xlu0 0
  %3870 = vperm.xlu0 %3869, %v3776
  %v3871 = vpop.permute.xlu0 %3870
  %3874 = vset.pattern.permute.xlu0 0
  %3875 = vperm.xlu0 %3874, %v3777
  %v3876 = vpop.permute.xlu0 %3875
  %3879 = vset.pattern.permute.xlu0 0
  %3880 = vperm.xlu0 %3879, %v3778
  %v3881 = vpop.permute.xlu0 %3880
  %3884 = vset.pattern.permute.xlu0 0
  %3885 = vperm.xlu0 %3884, %v3779
  %v3886 = vpop.permute.xlu0 %3885
  %3889 = vset.pattern.permute.xlu0 0
  %3890 = vperm.xlu0 %3889, %v3780
  %v3891 = vpop.permute.xlu0 %3890
  %3894 = vset.pattern.permute.xlu0 0
  %3895 = vperm.xlu0 %3894, %v3781
  %v3896 = vpop.permute.xlu0 %3895
  %3899 = vset.pattern.permute.xlu0 0
  %3900 = vperm.xlu0 %3899, %v3782
  %v3901 = vpop.permute.xlu0 %3900
  %3904 = vset.pattern.permute.xlu0 0
  %3905 = vperm.xlu0 %3904, %v3783
  %v3906 = vpop.permute.xlu0 %3905
  %3909 = vset.pattern.permute.xlu0 0
  %3910 = vperm.xlu0 %3909, %v3784
  %v3911 = vpop.permute.xlu0 %3910
  %3914 = vset.pattern.permute.xlu0 0
  %3915 = vperm.xlu0 %3914, %v3785
  %v3916 = vpop.permute.xlu0 %3915
  %3919 = vset.pattern.permute.xlu0 0
  %3920 = vperm.xlu0 %3919, %v3786
  %v3921 = vpop.permute.xlu0 %3920
  %3924 = vset.pattern.permute.xlu0 0
  %3925 = vperm.xlu0 %3924, %v3787
  %v3926 = vpop.permute.xlu0 %3925
  %3929 = vset.pattern.permute.xlu0 0
  %3930 = vperm.xlu0 %3929, %v3788
  %v3931 = vpop.permute.xlu0 %3930
  %3934 = vset.pattern.permute.xlu0 0
  %3935 = vperm.xlu0 %3934, %v3789
  %v3936 = vpop.permute.xlu0 %3935
  %3939 = vset.pattern.permute.xlu0 0
  %3940 = vperm.xlu0 %3939, %v3790
  %v3941 = vpop.permute.xlu0 %3940
  %3944 = vset.pattern.permute.xlu0 0
  %3945 = vperm.xlu0 %3944, %v3791
  %v3946 = vpop.permute.xlu0 %3945
  %3949 = vset.pattern.permute.xlu0 0
  %3950 = vperm.xlu0 %3949, %v3792
  %v3951 = vpop.permute.xlu0 %3950
  %3954 = vset.pattern.permute.xlu0 0
  %3955 = vperm.xlu0 %3954, %v3793
  %v3956 = vpop.permute.xlu0 %3955
  %3959 = vset.pattern.permute.xlu0 0
  %3960 = vperm.xlu0 %3959, %v3794
  %v3961 = vpop.permute.xlu0 %3960
  %3964 = vset.pattern.permute.xlu0 0
  %3965 = vperm.xlu0 %3964, %v3795
  %v3966 = vpop.permute.xlu0 %3965
  %3969 = vset.pattern.permute.xlu0 0
  %3970 = vperm.xlu0 %3969, %v3796
  %v3971 = vpop.permute.xlu0 %3970
  %3974 = vset.pattern.permute.xlu0 0
  %3975 = vperm.xlu0 %3974, %v3797
  %v3976 = vpop.permute.xlu0 %3975
  %3979 = vset.pattern.permute.xlu0 0
  %3980 = vperm.xlu0 %3979, %v3798
  %v3981 = vpop.permute.xlu0 %3980
  %3984 = vset.pattern.permute.xlu0 0
  %3985 = vperm.xlu0 %3984, %v3799
  %v3986 = vpop.permute.xlu0 %3985
  %3989 = vset.pattern.permute.xlu0 0
  %3990 = vperm.xlu0 %3989, %v3800
  %v3991 = vpop.permute.xlu0 %3990
  %3994 = vset.pattern.permute.xlu0 0
  %3995 = vperm.xlu0 %3994, %v3801
  %v3996 = vpop.permute.xlu0 %3995
  %3999 = vset.pattern.permute.xlu0 0
  %4000 = vperm.xlu0 %3999, %v3802
  %v4001 = vpop.permute.xlu0 %4000
  %4004 = vset.pattern.permute.xlu0 0
  %4005 = vperm.xlu0 %4004, %v3803
  %v4006 = vpop.permute.xlu0 %4005
  %4009 = vset.pattern.permute.xlu0 0
  %4010 = vperm.xlu0 %4009, %v3804
  %v4011 = vpop.permute.xlu0 %4010
  %4014 = vset.pattern.permute.xlu0 0
  %4015 = vperm.xlu0 %4014, %v3805
  %v4016 = vpop.permute.xlu0 %4015
  %4019 = vset.pattern.permute.xlu0 0
  %4020 = vperm.xlu0 %4019, %v3806
  %v4021 = vpop.permute.xlu0 %4020
  %4024 = vset.pattern.permute.xlu0 0
  %4025 = vperm.xlu0 %4024, %v3807
  %v4026 = vpop.permute.xlu0 %4025
  %4029 = vset.pattern.permute.xlu0 0
  %4030 = vperm.xlu0 %4029, %v3808
  %v4031 = vpop.permute.xlu0 %4030
  %4034 = vset.pattern.permute.xlu0 0
  %4035 = vperm.xlu0 %4034, %v3809
  %v4036 = vpop.permute.xlu0 %4035
  %4039 = vset.pattern.permute.xlu0 0
  %4040 = vperm.xlu0 %4039, %v3810
  %v4041 = vpop.permute.xlu0 %4040
  %4044 = vset.pattern.permute.xlu0 0
  %4045 = vperm.xlu0 %4044, %v3811
  %v4046 = vpop.permute.xlu0 %4045
  %4049 = vset.pattern.permute.xlu0 0
  %4050 = vperm.xlu0 %4049, %v3812
  %v4051 = vpop.permute.xlu0 %4050
  %4054 = vset.pattern.permute.xlu0 0
  %4055 = vperm.xlu0 %4054, %v3813
  %v4056 = vpop.permute.xlu0 %4055
  %4059 = vset.pattern.permute.xlu0 0
  %4060 = vperm.xlu0 %4059, %v3814
  %v4061 = vpop.permute.xlu0 %4060
  %4064 = vset.pattern.permute.xlu0 0
  %4065 = vperm.xlu0 %4064, %v3815
  %v4066 = vpop.permute.xlu0 %4065
  %4069 = vset.pattern.permute.xlu0 0
  %4070 = vperm.xlu0 %4069, %v3816
  %v4071 = vpop.permute.xlu0 %4070
  %4074 = vset.pattern.permute.xlu0 0
  %4075 = vperm.xlu0 %4074, %v3817
  %v4076 = vpop.permute.xlu0 %4075
  %4079 = vset.pattern.permute.xlu0 0
  %4080 = vperm.xlu0 %4079, %v3818
  %v4081 = vpop.permute.xlu0 %4080
  %4084 = vset.pattern.permute.xlu0 0
  %4085 = vperm.xlu0 %4084, %v3819
  %v4086 = vpop.permute.xlu0 %4085
  %4089 = vset.pattern.permute.xlu0 0
  %4090 = vperm.xlu0 %4089, %v3820
  %v4091 = vpop.permute.xlu0 %4090
  %4094 = vset.pattern.permute.xlu0 0
  %4095 = vperm.xlu0 %4094, %v3821
  %v4096 = vpop.permute.xlu0 %4095
  %4099 = vset.pattern.permute.xlu0 0
  %4100 = vperm.xlu0 %4099, %v3822
  %v4101 = vpop.permute.xlu0 %4100
  %4104 = vset.pattern.permute.xlu0 0
  %4105 = vperm.xlu0 %4104, %v3823
  %v4106 = vpop.permute.xlu0 %4105
  %4109 = vset.pattern.permute.xlu0 0
  %4110 = vperm.xlu0 %4109, %v3824
  %v4111 = vpop.permute.xlu0 %4110
  %4114 = vset.pattern.permute.xlu0 0
  %4115 = vperm.xlu0 %4114, %v3825
  %v4116 = vpop.permute.xlu0 %4115
  %4119 = vset.pattern.permute.xlu0 0
  %4120 = vperm.xlu0 %4119, %v3826
  %v4121 = vpop.permute.xlu0 %4120
  %4124 = vset.pattern.permute.xlu0 0
  %4125 = vperm.xlu0 %4124, %v3827
  %v4126 = vpop.permute.xlu0 %4125
  %4129 = vset.pattern.permute.xlu0 0
  %4130 = vperm.xlu0 %4129, %v3828
  %v4131 = vpop.permute.xlu0 %4130
  %4134 = vset.pattern.permute.xlu0 0
  %4135 = vperm.xlu0 %4134, %v3829
  %v4136 = vpop.permute.xlu0 %4135
  %4139 = vset.pattern.permute.xlu0 0
  %4140 = vperm.xlu0 %4139, %v3830
  %v4141 = vpop.permute.xlu0 %4140
  %4144 = vset.pattern.permute.xlu0 0
  %4145 = vperm.xlu0 %4144, %v3831
  %v4146 = vpop.permute.xlu0 %4145
  %4149 = vset.pattern.permute.xlu0 0
  %4150 = vperm.xlu0 %4149, %v3832
  %v4151 = vpop.permute.xlu0 %4150
  %v4153 = vsub.f32 %v2043, %v3836
  %v4154 = vsub.f32 %v2048, %v3841
  %v4155 = vsub.f32 %v2053, %v3846
  %v4156 = vsub.f32 %v2058, %v3851
  %v4157 = vsub.f32 %v2063, %v3856
  %v4158 = vsub.f32 %v2068, %v3861
  %v4159 = vsub.f32 %v2073, %v3866
  %v4160 = vsub.f32 %v2078, %v3871
  %v4161 = vsub.f32 %v2083, %v3876
  %v4162 = vsub.f32 %v2088, %v3881
  %v4163 = vsub.f32 %v2093, %v3886
  %v4164 = vsub.f32 %v2098, %v3891
  %v4165 = vsub.f32 %v2103, %v3896
  %v4166 = vsub.f32 %v2108, %v3901
  %v4167 = vsub.f32 %v2113, %v3906
  %v4168 = vsub.f32 %v2118, %v3911
  %v4169 = vsub.f32 %v2123, %v3916
  %v4170 = vsub.f32 %v2128, %v3921
  %v4171 = vsub.f32 %v2133, %v3926
  %v4172 = vsub.f32 %v2138, %v3931
  %v4173 = vsub.f32 %v2143, %v3936
  %v4174 = vsub.f32 %v2148, %v3941
  %v4175 = vsub.f32 %v2153, %v3946
  %v4176 = vsub.f32 %v2158, %v3951
  %v4177 = vsub.f32 %v2163, %v3956
  %v4178 = vsub.f32 %v2168, %v3961
  %v4179 = vsub.f32 %v2173, %v3966
  %v4180 = vsub.f32 %v2178, %v3971
  %v4181 = vsub.f32 %v2183, %v3976
  %v4182 = vsub.f32 %v2188, %v3981
  %v4183 = vsub.f32 %v2193, %v3986
  %v4184 = vsub.f32 %v2198, %v3991
  %v4185 = vsub.f32 %v2203, %v3996
  %v4186 = vsub.f32 %v2208, %v4001
  %v4187 = vsub.f32 %v2213, %v4006
  %v4188 = vsub.f32 %v2218, %v4011
  %v4189 = vsub.f32 %v2223, %v4016
  %v4190 = vsub.f32 %v2228, %v4021
  %v4191 = vsub.f32 %v2233, %v4026
  %v4192 = vsub.f32 %v2238, %v4031
  %v4193 = vsub.f32 %v2243, %v4036
  %v4194 = vsub.f32 %v2248, %v4041
  %v4195 = vsub.f32 %v2253, %v4046
  %v4196 = vsub.f32 %v2258, %v4051
  %v4197 = vsub.f32 %v2263, %v4056
  %v4198 = vsub.f32 %v2268, %v4061
  %v4199 = vsub.f32 %v2273, %v4066
  %v4200 = vsub.f32 %v2278, %v4071
  %v4201 = vsub.f32 %v2283, %v4076
  %v4202 = vsub.f32 %v2288, %v4081
  %v4203 = vsub.f32 %v2293, %v4086
  %v4204 = vsub.f32 %v2298, %v4091
  %v4205 = vsub.f32 %v2303, %v4096
  %v4206 = vsub.f32 %v2308, %v4101
  %v4207 = vsub.f32 %v2313, %v4106
  %v4208 = vsub.f32 %v2318, %v4111
  %v4209 = vsub.f32 %v2323, %v4116
  %v4210 = vsub.f32 %v2328, %v4121
  %v4211 = vsub.f32 %v2333, %v4126
  %v4212 = vsub.f32 %v2338, %v4131
  %v4213 = vsub.f32 %v2343, %v4136
  %v4214 = vsub.f32 %v2348, %v4141
  %v4215 = vsub.f32 %v2353, %v4146
  %v4216 = vsub.f32 %v2358, %v4151
  %vm4217 = vcmask 15360
  %4218 = vst.msk [vmem:[%s9] sm:$0xff] %vm4217, %v4153
  %4219 = vst.msk [vmem:[%s9 + $0x8] sm:$0xff] %vm4217, %v4154
  %4220 = vst.msk [vmem:[%s9 + $0x10] sm:$0xff] %vm4217, %v4155
  %4221 = vst.msk [vmem:[%s9 + $0x18] sm:$0xff] %vm4217, %v4156
  %4222 = vst.msk [vmem:[%s9 + $0x20] sm:$0xff] %vm4217, %v4157
  %4223 = vst.msk [vmem:[%s9 + $0x28] sm:$0xff] %vm4217, %v4158
  %4224 = vst.msk [vmem:[%s9 + $0x30] sm:$0xff] %vm4217, %v4159
  %4225 = vst.msk [vmem:[%s9 + $0x38] sm:$0xff] %vm4217, %v4160
  %4226 = vst.msk [vmem:[%s9 + $0x40] sm:$0xff] %vm4217, %v4161
  %4227 = vst.msk [vmem:[%s9 + $0x48] sm:$0xff] %vm4217, %v4162
  %4228 = vst.msk [vmem:[%s9 + $0x50] sm:$0xff] %vm4217, %v4163
  %4229 = vst.msk [vmem:[%s9 + $0x58] sm:$0xff] %vm4217, %v4164
  %4230 = vst.msk [vmem:[%s9 + $0x60] sm:$0xff] %vm4217, %v4165
  %4231 = vst.msk [vmem:[%s9 + $0x68] sm:$0xff] %vm4217, %v4166
  %4232 = vst.msk [vmem:[%s9 + $0x70] sm:$0xff] %vm4217, %v4167
  %4233 = vst.msk [vmem:[%s9 + $0x78] sm:$0xff] %vm4217, %v4168
  %4234 = vst.msk [vmem:[%s9 + $0x80] sm:$0xff] %vm4217, %v4169
  %4235 = vst.msk [vmem:[%s9 + $0x88] sm:$0xff] %vm4217, %v4170
  %4236 = vst.msk [vmem:[%s9 + $0x90] sm:$0xff] %vm4217, %v4171
  %4237 = vst.msk [vmem:[%s9 + $0x98] sm:$0xff] %vm4217, %v4172
  %4238 = vst.msk [vmem:[%s9 + $0xa0] sm:$0xff] %vm4217, %v4173
  %4239 = vst.msk [vmem:[%s9 + $0xa8] sm:$0xff] %vm4217, %v4174
  %4240 = vst.msk [vmem:[%s9 + $0xb0] sm:$0xff] %vm4217, %v4175
  %4241 = vst.msk [vmem:[%s9 + $0xb8] sm:$0xff] %vm4217, %v4176
  %4242 = vst.msk [vmem:[%s9 + $0xc0] sm:$0xff] %vm4217, %v4177
  %4243 = vst.msk [vmem:[%s9 + $0xc8] sm:$0xff] %vm4217, %v4178
  %4244 = vst.msk [vmem:[%s9 + $0xd0] sm:$0xff] %vm4217, %v4179
  %4245 = vst.msk [vmem:[%s9 + $0xd8] sm:$0xff] %vm4217, %v4180
  %4246 = vst.msk [vmem:[%s9 + $0xe0] sm:$0xff] %vm4217, %v4181
  %4247 = vst.msk [vmem:[%s9 + $0xe8] sm:$0xff] %vm4217, %v4182
  %4248 = vst.msk [vmem:[%s9 + $0xf0] sm:$0xff] %vm4217, %v4183
  %4249 = vst.msk [vmem:[%s9 + $0xf8] sm:$0xff] %vm4217, %v4184
  %4250 = vst.msk [vmem:[%s9 + $0x100] sm:$0xff] %vm4217, %v4185
  %4251 = vst.msk [vmem:[%s9 + $0x108] sm:$0xff] %vm4217, %v4186
  %4252 = vst.msk [vmem:[%s9 + $0x110] sm:$0xff] %vm4217, %v4187
  %4253 = vst.msk [vmem:[%s9 + $0x118] sm:$0xff] %vm4217, %v4188
  %4254 = vst.msk [vmem:[%s9 + $0x120] sm:$0xff] %vm4217, %v4189
  %4255 = vst.msk [vmem:[%s9 + $0x128] sm:$0xff] %vm4217, %v4190
  %4256 = vst.msk [vmem:[%s9 + $0x130] sm:$0xff] %vm4217, %v4191
  %4257 = vst.msk [vmem:[%s9 + $0x138] sm:$0xff] %vm4217, %v4192
  %4258 = vst.msk [vmem:[%s9 + $0x140] sm:$0xff] %vm4217, %v4193
  %4259 = vst.msk [vmem:[%s9 + $0x148] sm:$0xff] %vm4217, %v4194
  %4260 = vst.msk [vmem:[%s9 + $0x150] sm:$0xff] %vm4217, %v4195
  %4261 = vst.msk [vmem:[%s9 + $0x158] sm:$0xff] %vm4217, %v4196
  %4262 = vst.msk [vmem:[%s9 + $0x160] sm:$0xff] %vm4217, %v4197
  %4263 = vst.msk [vmem:[%s9 + $0x168] sm:$0xff] %vm4217, %v4198
  %4264 = vst.msk [vmem:[%s9 + $0x170] sm:$0xff] %vm4217, %v4199
  %4265 = vst.msk [vmem:[%s9 + $0x178] sm:$0xff] %vm4217, %v4200
  %4266 = vst.msk [vmem:[%s9 + $0x180] sm:$0xff] %vm4217, %v4201
  %4267 = vst.msk [vmem:[%s9 + $0x188] sm:$0xff] %vm4217, %v4202
  %4268 = vst.msk [vmem:[%s9 + $0x190] sm:$0xff] %vm4217, %v4203
  %4269 = vst.msk [vmem:[%s9 + $0x198] sm:$0xff] %vm4217, %v4204
  %4270 = vst.msk [vmem:[%s9 + $0x1a0] sm:$0xff] %vm4217, %v4205
  %4271 = vst.msk [vmem:[%s9 + $0x1a8] sm:$0xff] %vm4217, %v4206
  %4272 = vst.msk [vmem:[%s9 + $0x1b0] sm:$0xff] %vm4217, %v4207
  %4273 = vst.msk [vmem:[%s9 + $0x1b8] sm:$0xff] %vm4217, %v4208
  %4274 = vst.msk [vmem:[%s9 + $0x1c0] sm:$0xff] %vm4217, %v4209
  %4275 = vst.msk [vmem:[%s9 + $0x1c8] sm:$0xff] %vm4217, %v4210
  %4276 = vst.msk [vmem:[%s9 + $0x1d0] sm:$0xff] %vm4217, %v4211
  %4277 = vst.msk [vmem:[%s9 + $0x1d8] sm:$0xff] %vm4217, %v4212
  %4278 = vst.msk [vmem:[%s9 + $0x1e0] sm:$0xff] %vm4217, %v4213
  %4279 = vst.msk [vmem:[%s9 + $0x1e8] sm:$0xff] %vm4217, %v4214
  %4280 = vst.msk [vmem:[%s9 + $0x1f0] sm:$0xff] %vm4217, %v4215
  %4281 = vst.msk [vmem:[%s9 + $0x1f8] sm:$0xff] %vm4217, %v4216
  // Predicated region
  $region38: #{mlp_forward.1} parent=0 // pred_check
    _
  $region39: #{mlp_forward.1} parent=0 // pred_check_branch
    %4283 = sbr.rel (0) target = $region41
  $region40: #{mlp_forward.1} parent=0 // pred_region
    _
  $region41: #{mlp_forward.1} parent=0 // pred_fallthru
    _
  // Predicated region
  $region42: #{mlp_forward.1} parent=0 // pred_check
    _
  $region43: #{mlp_forward.1} parent=0 // pred_check_branch
    %4285 = sbr.rel (0) target = $region45
  $region44: #{mlp_forward.1} parent=0 // pred_region
    _
  $region45: #{mlp_forward.1} parent=0 // pred_fallthru
    _

</llo_original>
